<compile_context>
chip_gen: v5e
topology: v5e:2x2
jax: 0.10.0
libtpu: 0.0.40
codegen_flags: <defaults>
</compile_context>

<pallas_src>
import numpy as np

import jax
import jax.numpy as jnp
from jax.experimental import pallas as pl
from jax.experimental.pallas import tpu as pltpu


def _round_up(x, m):
    return ((x + m - 1) // m) * m


def _pick_feature_tile(d, target=2048):
    """Feature-axis tile: full dim when small or not 128-aligned, otherwise the
    largest 128-multiple divisor of d that is <= target (so the eps^2 reduction
    never sees out-of-bounds lanes)."""
    if d % 128 != 0 or d <= target:
        # TODO(synk): for d % 128 != 0 we fall back to a single full-width block
        # (legal, but z stores become lane-masked); pad D once in the wrapper if
        # odd Glow shapes ever matter.
        return d
    for td in range(target, 127, -128):
        if d % td == 0:
            return td
    return d  # unreachable: 128 always divides d on this branch


def _pick_batch_tile(n, td, step_budget_bytes=8 << 20):
    """Rows per grid step: largest multiple of 128 whose eps+z tiles fit the
    per-step VMEM budget; if everything would fit in one block, split into >= 2
    blocks so both v7x TensorCores get work (harmless on single-TC v5e/v6e)."""
    bytes_per_row = 2 * td * 4                       # eps tile + z tile, f32
    rows_budget = max(128, (step_budget_bytes // bytes_per_row) // 128 * 128)
    rows_all = _round_up(n, 128)
    tm = min(rows_budget, rows_all)
    if tm >= rows_all and n > 128:                   # would be a single batch block
        rows_half = _round_up(-(-n // 2), 128)       # ceil(n/2) rounded to 128
        tm = min(tm, max(128, rows_half))
    return tm


def _glow_base_kernel(eps_ref, scale_ref, loc_ref, z_ref, logp_ref):
    """One (batch, feature) tile:
         z          = eps * scale + loc
         logp_raw  += -0.5 * sum(eps^2)   (accumulated over the D grid axis)
    The log_p output block is resident across the D axis (its index_map ignores j),
    so it serves directly as the accumulator (init on the first D block)."""
    j = pl.program_id(1)                                    # feature / reduction axis
    eps = eps_ref[...]                                      # [tm, td]
    z_ref[...] = eps * scale_ref[...] + loc_ref[...]        # [tm, td]
    sq = jnp.sum(eps * eps, axis=1)                         # [tm]

    @pl.when(j == 0)
    def _():
        logp_ref[...] = jnp.zeros_like(logp_ref)

    logp_ref[...] -= 0.5 * sq[None, :]                      # [1, tm] lane-dense slab


@jax.jit
def glow_base_forward_pallas(eps, scale_row, loc_row, logp_bias):
    """Runs the GlowBase forward math in a single tiled Pallas kernel.

    eps:       [N, D] float32 standard-normal draws
    scale_row: [1, D] float32 per-feature std-dev
    loc_row:   [1, D] float32 per-feature mean
    logp_bias: scalar float32 constant part of log_p
    returns (z [N, D], log_p [N])
    """
    n, d = eps.shape
    td = _pick_feature_tile(d)
    tm = _pick_batch_tile(n, td)
    grid = (pl.cdiv(n, tm), d // td)                        # batch (parallel), D (arbitrary)

    flops = 4 * n * d                                       # mul+add for z, mul+add for sum
    bytes_accessed = 4 * (2 * n * d + n + 2 * d)

    # Actual double-buffered footprint (eps + z tiles dominate), with headroom,
    # capped at 48 MiB so v7x's 64 MiB VMEM per TensorCore is never exceeded.
    vmem_bytes = 4 * (2 * 2 * tm * td + 2 * 2 * 8 * td + 2 * 8 * tm)
    vmem_limit = int(min(max(vmem_bytes + (8 << 20), 32 << 20), 48 << 20))

    z, logp_raw = pl.pallas_call(
        _glow_base_kernel,
        out_shape=(
            jax.ShapeDtypeStruct((n, d), jnp.float32),
            jax.ShapeDtypeStruct((1, n), jnp.float32),
        ),
        grid=grid,
        in_specs=[
            pl.BlockSpec((tm, td), lambda i, j: (i, j)),    # eps tile
            pl.BlockSpec((1, td), lambda i, j: (0, j)),     # scale row (replicated over batch)
            pl.BlockSpec((1, td), lambda i, j: (0, j)),     # loc row (replicated over batch)
        ],
        out_specs=(
            pl.BlockSpec((tm, td), lambda i, j: (i, j)),    # z tile
            pl.BlockSpec((1, tm), lambda i, j: (0, i)),     # log_p slab, resident over D axis
        ),
        compiler_params=pltpu.CompilerParams(
            dimension_semantics=("parallel", "arbitrary"),  # batch shards across TCs on v7x
            vmem_limit_bytes=vmem_limit,
        ),
        cost_estimate=pl.CostEstimate(
            flops=flops, transcendentals=0, bytes_accessed=bytes_accessed),
    )(eps, scale_row, loc_row)

    # Scalar bias is added here (cheap [N]-sized op) instead of wasting a padded
    # VMEM block on a (1,1) operand inside the kernel.
    return z, logp_bias + logp_raw[0]


class GlowBaseJax:
    """JAX/Pallas port of normflows GlowBase (unconditional forward pass)."""

    # TODO(synk): class-conditional branch (num_classes is not None), i.e. the
    # per-sample y @ loc_cc / y @ log_scale_cc channel shifts, is not implemented
    # in the Pallas path (module default is unconditional).

    def __init__(self, shape, logscale_factor=3.0, key=None):
        if isinstance(shape, int):
            shape = (shape,)
        shape = tuple(shape)
        self.shape = shape
        self.n_dim = len(shape)
        self.num_pix = int(np.prod(shape[1:])) if len(shape) > 1 else 1
        self.d = int(np.prod(shape))
        self.channels = shape[0]
        self.logscale_factor = float(logscale_factor)
        self.temperature = None

        if key is None:
            # Module defaults: all-zero parameters.
            self.loc = jnp.zeros((self.channels,), jnp.float32)
            self.loc_logs = jnp.zeros((self.channels,), jnp.float32)
            self.log_scale = jnp.zeros((self.channels,), jnp.float32)
            self.log_scale_logs = jnp.zeros((self.channels,), jnp.float32)
        else:
            # Small deterministic values so the test exercises non-trivial math.
            k1, k2, k3, k4 = jax.random.split(key, 4)
            self.loc = 0.1 * jax.random.normal(k1, (self.channels,), jnp.float32)
            self.loc_logs = 0.1 * jax.random.normal(k2, (self.channels,), jnp.float32)
            self.log_scale = 0.1 * jax.random.normal(k3, (self.channels,), jnp.float32)
            self.log_scale_logs = 0.1 * jax.random.normal(k4, (self.channels,), jnp.float32)

    def _prepared_params(self):
        """Hoisted parameter-only math: per-feature scale/loc rows + log_p bias."""
        loc_c = self.loc * jnp.exp(self.loc_logs * self.logscale_factor)               # [C]
        log_scale_c = self.log_scale * jnp.exp(self.log_scale_logs * self.logscale_factor)
        if self.temperature is not None:
            log_scale_c = log_scale_c + np.log(self.temperature)
        loc_row = jnp.repeat(loc_c, self.num_pix)[None, :]                             # [1, D]
        scale_row = jnp.exp(jnp.repeat(log_scale_c, self.num_pix))[None, :]            # [1, D]
        logp_bias = (-0.5 * self.d * np.log(2.0 * np.pi)
                     - self.num_pix * jnp.sum(log_scale_c)).astype(jnp.float32)
        return loc_row, scale_row, logp_bias

    def forward(self, num_samples=1, key=None, eps=None):
        loc_row, scale_row, logp_bias = self._prepared_params()
        if eps is None:
            # TODO(synk): eps could be drawn in-kernel (pltpu.prng_seed +
            # pltpu.stateful_normal per tile) to roughly halve HBM traffic; kept
            # as an explicit input for torch.randn parity and reference checks.
            eps = jax.random.normal(key, (num_samples, self.d), jnp.float32)
        z_flat, log_p = glow_base_forward_pallas(eps, scale_row, loc_row, logp_bias)
        z = z_flat.reshape((eps.shape[0],) + self.shape)
        return z, log_p


if __name__ == "__main__":
    key = jax.random.PRNGKey(0)
    k_param, k_eps = jax.random.split(key)

    shape = (4, 16, 16)        # (channels, H, W)  ->  d = 1024, num_pix = 256
    num_samples = 260          # not a multiple of the 128/256-row tiles: exercises the
                               # ragged final block and the 2-way batch-grid split

    model = GlowBaseJax(shape, logscale_factor=3.0, key=k_param)

    eps = jax.random.normal(k_eps, (num_samples, model.d), jnp.float32)
    z, log_p = model.forward(num_samples, eps=eps)
    jax.block_until_ready((z, log_p))

    assert z.shape == (num_samples,) + shape
    assert log_p.shape == (num_samples,)
    assert bool(jnp.all(jnp.isfinite(z))) and bool(jnp.all(jnp.isfinite(log_p)))

    # Pure-JAX reference of the original torch math.
    lsf = model.logscale_factor
    loc_c = model.loc * jnp.exp(model.loc_logs * lsf)                       # [C]
    log_scale_c = model.log_scale * jnp.exp(model.log_scale_logs * lsf)     # [C]
    bshape = (1, model.channels) + (1,) * (model.n_dim - 1)
    eps_im = eps.reshape((num_samples,) + shape)
    z_ref = loc_c.reshape(bshape) + jnp.exp(log_scale_c).reshape(bshape) * eps_im
    logp_ref = (-0.5 * model.d * np.log(2.0 * np.pi)
                - model.num_pix * jnp.sum(log_scale_c)
                - 0.5 * jnp.sum(eps_im ** 2, axis=tuple(range(1, model.n_dim + 1))))
    assert bool(jnp.allclose(z, z_ref, rtol=1e-5, atol=1e-5))
    assert bool(jnp.allclose(log_p, logp_ref, rtol=1e-5, atol=1e-3))

    print("KERNEL_OK")
</pallas_src>

<mosaic_0001>
module attributes {stable_mosaic.version = 11 : i64} {
  func.func @_glow_base_kernel(%arg0: i32, %arg1: i32, %arg2: memref<256x1024xf32, #tpu.memory_space<vmem>>, %arg3: memref<1x1024xf32, #tpu.memory_space<vmem>>, %arg4: memref<1x1024xf32, #tpu.memory_space<vmem>>, %arg5: memref<256x1024xf32, #tpu.memory_space<vmem>>, %arg6: memref<1x256xf32, #tpu.memory_space<vmem>>) attributes {dimension_semantics = [#tpu.dimension_semantics<parallel>, #tpu.dimension_semantics<arbitrary>], iteration_bounds = array<i64: 2, 1>, scalar_prefetch = 0 : i64, scratch_operands = 0 : i64, tpu.core_type = #tpu.core_type<tc>, window_params = [{transform_indices = @transform_0, window_bounds = array<i64: 256, 1024>}, {transform_indices = @transform_1, window_bounds = array<i64: 1, 1024>}, {transform_indices = @transform_2, window_bounds = array<i64: 1, 1024>}, {transform_indices = @transform_3, window_bounds = array<i64: 256, 1024>}, {transform_indices = @transform_4, window_bounds = array<i64: 1, 256>}]} {
    %c0 = arith.constant 0 : index
    %c0_0 = arith.constant 0 : index
    %0 = vector.load %arg2[%c0, %c0_0] : memref<256x1024xf32, #tpu.memory_space<vmem>>, vector<256x1024xf32>
    %c0_1 = arith.constant 0 : index
    %c0_2 = arith.constant 0 : index
    %1 = vector.load %arg3[%c0_1, %c0_2] : memref<1x1024xf32, #tpu.memory_space<vmem>>, vector<1x1024xf32>
    %2 = vector.broadcast %1 : vector<1x1024xf32> to vector<256x1024xf32>
    %3 = arith.mulf %0, %2 : vector<256x1024xf32>
    %c0_3 = arith.constant 0 : index
    %c0_4 = arith.constant 0 : index
    %4 = vector.load %arg4[%c0_3, %c0_4] : memref<1x1024xf32, #tpu.memory_space<vmem>>, vector<1x1024xf32>
    %5 = vector.broadcast %4 : vector<1x1024xf32> to vector<256x1024xf32>
    %6 = arith.addf %3, %5 : vector<256x1024xf32>
    %c0_5 = arith.constant 0 : index
    %c0_6 = arith.constant 0 : index
    %7 = vector.load %arg5[%c0_5, %c0_6] : memref<256x1024xf32, #tpu.memory_space<vmem>>, vector<256x1024xf32>
    tpu.vector_store %arg5[%c0_5, %c0_6], %6 {strides = array<i32>} : memref<256x1024xf32, #tpu.memory_space<vmem>>, vector<256x1024xf32>,
    %8 = arith.mulf %0, %0 : vector<256x1024xf32>
    %cst = arith.constant dense<0.000000e+00> : vector<256xf32>
    %9 = vector.multi_reduction <add>, %8, %cst [1] : vector<256x1024xf32> to vector<256xf32>
    %c0_i32 = arith.constant 0 : i32
    %10 = arith.cmpi eq, %arg1, %c0_i32 : i32
    %11 = arith.extui %10 : i1 to i32
    %c0_i32_7 = arith.constant 0 : i32
    %12 = arith.cmpi ne, %11, %c0_i32_7 : i32
    scf.if %12 {
      %cst_13 = arith.constant 0.000000e+00 : f32
      %19 = vector.broadcast %cst_13 : f32 to vector<1x256xf32>
      %c0_14 = arith.constant 0 : index
      %c0_15 = arith.constant 0 : index
      %20 = vector.load %arg6[%c0_14, %c0_15] : memref<1x256xf32, #tpu.memory_space<vmem>>, vector<1x256xf32>
      tpu.vector_store %arg6[%c0_14, %c0_15], %19 {strides = array<i32>} : memref<1x256xf32, #tpu.memory_space<vmem>>, vector<1x256xf32>,
    } else {
    }
    %c0_8 = arith.constant 0 : index
    %c0_9 = arith.constant 0 : index
    %13 = vector.load %arg6[%c0_8, %c0_9] : memref<1x256xf32, #tpu.memory_space<vmem>>, vector<1x256xf32>
    %14 = vector.shape_cast %9 : vector<256xf32> to vector<1x256xf32>
    %cst_10 = arith.constant 5.000000e-01 : f32
    %15 = vector.broadcast %cst_10 : f32 to vector<1x256xf32>
    %16 = arith.mulf %15, %14 : vector<1x256xf32>
    %17 = arith.subf %13, %16 : vector<1x256xf32>
    %c0_11 = arith.constant 0 : index
    %c0_12 = arith.constant 0 : index
    %18 = vector.load %arg6[%c0_11, %c0_12] : memref<1x256xf32, #tpu.memory_space<vmem>>, vector<1x256xf32>
    tpu.vector_store %arg6[%c0_11, %c0_12], %17 {strides = array<i32>} : memref<1x256xf32, #tpu.memory_space<vmem>>, vector<1x256xf32>,
    return
  }
  func.func @transform_0(%arg0: i32, %arg1: i32) -> (i32, i32) {
    %c0_i32 = arith.constant 0 : i32
    return %arg0, %arg1 : i32, i32
  }
  func.func @transform_1(%arg0: i32, %arg1: i32) -> (i32, i32) {
    %c0_i32 = arith.constant 0 : i32
    %c0_i32_0 = arith.constant 0 : i32
    return %c0_i32, %arg1 : i32, i32
  }
  func.func @transform_2(%arg0: i32, %arg1: i32) -> (i32, i32) {
    %c0_i32 = arith.constant 0 : i32
    %c0_i32_0 = arith.constant 0 : i32
    return %c0_i32, %arg1 : i32, i32
  }
  func.func @transform_3(%arg0: i32, %arg1: i32) -> (i32, i32) {
    %c0_i32 = arith.constant 0 : i32
    return %arg0, %arg1 : i32, i32
  }
  func.func @transform_4(%arg0: i32, %arg1: i32) -> (i32, i32) {
    %c0_i32 = arith.constant 0 : i32
    %c0_i32_0 = arith.constant 0 : i32
    return %c0_i32, %arg0 : i32, i32
  }
}

</mosaic_0001>

<llo_original>
// kernel: glow_base_forward_pallas.1
$region0: #{glow_base_forward_pallas.1}
  #allocation0 [shape = 'u32[]', space=smem, size = 0x4, offset = 0x4, fixed_abs, tag = 'smem constant byte address 0x4 - core index']
  #allocation1 [shape = 'u32[72,128]{1,0:T(1,128)}', space=vmem, size = 0x9000, scoped, tag = 'internal scratch']
  %s0 = inlined_call_operand.hbm [shape: f32[260,1024], index: 0, kind: input, shape index: {}]
  %s1 = inlined_call_operand.hbm [shape: f32[1,1024], index: 1, kind: input, shape index: {}]
  %s2 = inlined_call_operand.hbm [shape: f32[1,1024], index: 2, kind: input, shape index: {}]
  %s3 = inlined_call_operand.hbm [shape: f32[260,1024], index: 3, kind: output, shape index: {0}]
  %s4 = inlined_call_operand.vmem [shape: f32[1,260], index: 4, kind: output, shape index: {1}]
  %5 = xla_tuple %s3, %s4
  %s6 = sld [smem:[#allocation0]]
  $region131: #{glow_base_forward_pallas.1} parent=0
    _
  %s8 = ssub.s32 1, %s6
  %s9 = scalar_select 0, %s8, %s6
  $region1: #{glow_base_forward_pallas.1} parent=0
    #allocation2 [shape = 'u8[2097152]{0}', space=vmem, size = 0x200000, scoped, tag = 'input window, operand 0']
    #allocation3 [shape = 's32[2]{0}', space=sflag, size = 0x8, scoped, tag = 'scoped memory for glow_base_forward_pallas.1']
    #allocation4 [shape = 's32[2]{0}', space=sflag, size = 0x8, scoped, tag = 'scoped memory for glow_base_forward_pallas.1']
    #allocation5 [shape = 'u8[4096]{0}', space=vmem, size = 0x1000, scoped, tag = 'input window, operand 1, single buffered']
    #allocation6 [shape = 's32[1]{0}', space=sflag, size = 0x4, scoped, tag = 'scoped memory for glow_base_forward_pallas.1']
    #allocation7 [shape = 'u8[4096]{0}', space=vmem, size = 0x1000, scoped, tag = 'input window, operand 2, single buffered']
    #allocation8 [shape = 'u8[2097152]{0}', space=vmem, size = 0x200000, scoped, tag = 'output window, operand 0']
    #allocation9 [shape = 'u8[2048]{0}', space=vmem, size = 0x800, scoped, tag = 'output window, operand 1']
    %10 = vsyncpa [#allocation3], 0
    %s11 = scalar_lea.sflag [#allocation3], 1
    %12 = vsyncpa %s11, 0
    %13 = vsyncpa [#allocation6], 0
    %14 = vsyncpa [#allocation4], 0
    %s15 = scalar_lea.sflag [#allocation4], 1
    %16 = vsyncpa %s15, 0
    loop: start=0, step=1, limit=4
    $region2: #{glow_base_forward_pallas.1} parent=1 // loop_pre_header
      _
    $region3: #{glow_base_forward_pallas.1} parent=1 // loop_header
      %s18 = sphi 0, %s22
      %p19 = scmp.ge.s32.totalorder %s18, 4
      %s25 = sphi 0, %s37
      %s26 = sphi 0, %s33
      %s27 = sphi 0, %s25
      %s28 = sphi 0, %s26
      %s29 = sphi 0, %s27
      %s30 = sphi 0, %s28
      %s42 = sphi 0, %s44
      %s45 = sphi 0, %s42
      %s46 = sphi 0, %s45
      %s62 = sphi 0, %s46
      %s68 = sphi 0, %s70
      %s71 = sphi 0, %s68
      %s72 = sphi 0, %s71
      %s88 = sphi 0, %s72
      %s94 = sphi 0, %s96
      %s97 = sphi 0, %s94
      %s98 = sphi 0, %s97
      %s114 = sphi 0, %s98
      %s122 = sphi 0, %s124
      %s125 = sphi 0, %s122
      %s126 = sphi 0, %s125
      %s142 = sphi 0, %s126
      %s148 = sphi 0, %s150
      %s151 = sphi 0, %s148
      %s152 = sphi 0, %s151
      %s168 = sphi 0, %s152
    $region4: #{glow_base_forward_pallas.1} parent=1 // loop_header_branch
      %21 = sbr.rel (%p19) target = $region8
    $region5: #{glow_base_forward_pallas.1} parent=1 // loop_body
      %s23 = ssub.s32 %s18, 1
      %s24 = ssub.s32 %s18, 2
      %s31 = sadd.s32 1, %s26
      %p32 = scmp.ge.s32.totalorder %s31, 1
      %s33 = scalar_select %p32, 0, %s31
      %s34 = sadd.s32 1, %s25
      %s35 = scalar_select %p32, %s34, %s25
      %p36 = scmp.ge.s32.totalorder %s35, 2
      %s37 = scalar_select %p36, 0, %s35
      %s38 = ssub.s32 %s25, %s37
      %s39 = ssub.s32 %s26, %s33
      %s40 = sor.u32 %s38, %s39
      %p41 = scmp.eq.s32.totalorder %s40, 0
      %s43 = sadd.s32 %s42, 1
      %s44 = scalar_select %p41, %s42, %s43
      %p47 = pneg %p41
      %p48 = scmp.eq.s32.totalorder %s18, 1
      %p49 = por %p47, %p48
      %p50 = scmp.ne.s32.totalorder %s42, %s45
      %p51 = scmp.eq.s32.totalorder %s18, 0
      %p52 = por %p50, %p51
      %p53 = scmp.ne.s32.totalorder %s42, %s45
      %p54 = scmp.eq.s32.totalorder %s23, 1
      %p55 = por %p53, %p54
      %p56 = scmp.ne.s32.totalorder %s45, %s46
      %p57 = scmp.eq.s32.totalorder %s23, 0
      %p58 = por %p56, %p57
      %p59 = scmp.ne.s32.totalorder %s45, %s46
      %p60 = scmp.eq.s32.totalorder %s24, 1
      %p61 = por %p59, %p60
      %p63 = scmp.ne.s32.totalorder %s46, %s62
      %p64 = scmp.eq.s32.totalorder %s24, 0
      %p65 = por %p63, %p64
      %s66 = ssub.s32 %s26, %s33
      %p67 = scmp.eq.s32.totalorder %s66, 0
      %s69 = sadd.s32 %s68, 1
      %s70 = scalar_select %p67, %s68, %s69
      %p73 = pneg %p67
      %p74 = scmp.eq.s32.totalorder %s18, 1
      %p75 = por %p73, %p74
      %p76 = scmp.ne.s32.totalorder %s68, %s71
      %p77 = scmp.eq.s32.totalorder %s18, 0
      %p78 = por %p76, %p77
      %p79 = scmp.ne.s32.totalorder %s68, %s71
      %p80 = scmp.eq.s32.totalorder %s23, 1
      %p81 = por %p79, %p80
      %p82 = scmp.ne.s32.totalorder %s71, %s72
      %p83 = scmp.eq.s32.totalorder %s23, 0
      %p84 = por %p82, %p83
      %p85 = scmp.ne.s32.totalorder %s71, %s72
      %p86 = scmp.eq.s32.totalorder %s24, 1
      %p87 = por %p85, %p86
      %p89 = scmp.ne.s32.totalorder %s72, %s88
      %p90 = scmp.eq.s32.totalorder %s24, 0
      %p91 = por %p89, %p90
      %s92 = ssub.s32 %s26, %s33
      %p93 = scmp.eq.s32.totalorder %s92, 0
      %s95 = sadd.s32 %s94, 1
      %s96 = scalar_select %p93, %s94, %s95
      %p99 = pneg %p93
      %p100 = scmp.eq.s32.totalorder %s18, 1
      %p101 = por %p99, %p100
      %p102 = scmp.ne.s32.totalorder %s94, %s97
      %p103 = scmp.eq.s32.totalorder %s18, 0
      %p104 = por %p102, %p103
      %p105 = scmp.ne.s32.totalorder %s94, %s97
      %p106 = scmp.eq.s32.totalorder %s23, 1
      %p107 = por %p105, %p106
      %p108 = scmp.ne.s32.totalorder %s97, %s98
      %p109 = scmp.eq.s32.totalorder %s23, 0
      %p110 = por %p108, %p109
      %p111 = scmp.ne.s32.totalorder %s97, %s98
      %p112 = scmp.eq.s32.totalorder %s24, 1
      %p113 = por %p111, %p112
      %p115 = scmp.ne.s32.totalorder %s98, %s114
      %p116 = scmp.eq.s32.totalorder %s24, 0
      %p117 = por %p115, %p116
      %s118 = ssub.s32 %s25, %s37
      %s119 = ssub.s32 %s26, %s33
      %s120 = sor.u32 %s118, %s119
      %p121 = scmp.eq.s32.totalorder %s120, 0
      %s123 = sadd.s32 %s122, 1
      %s124 = scalar_select %p121, %s122, %s123
      %p127 = pneg %p121
      %p128 = scmp.eq.s32.totalorder %s18, 1
      %p129 = por %p127, %p128
      %p130 = scmp.ne.s32.totalorder %s122, %s125
      %p131 = scmp.eq.s32.totalorder %s18, 0
      %p132 = por %p130, %p131
      %p133 = scmp.ne.s32.totalorder %s122, %s125
      %p134 = scmp.eq.s32.totalorder %s23, 1
      %p135 = por %p133, %p134
      %p136 = scmp.ne.s32.totalorder %s125, %s126
      %p137 = scmp.eq.s32.totalorder %s23, 0
      %p138 = por %p136, %p137
      %p139 = scmp.ne.s32.totalorder %s125, %s126
      %p140 = scmp.eq.s32.totalorder %s24, 1
      %p141 = por %p139, %p140
      %p143 = scmp.ne.s32.totalorder %s126, %s142
      %p144 = scmp.eq.s32.totalorder %s24, 0
      %p145 = por %p143, %p144
      %s146 = ssub.s32 %s25, %s37
      %p147 = scmp.eq.s32.totalorder %s146, 0
      %s149 = sadd.s32 %s148, 1
      %s150 = scalar_select %p147, %s148, %s149
      %p153 = pneg %p147
      %p154 = scmp.eq.s32.totalorder %s18, 1
      %p155 = por %p153, %p154
      %p156 = scmp.ne.s32.totalorder %s148, %s151
      %p157 = scmp.eq.s32.totalorder %s18, 0
      %p158 = por %p156, %p157
      %p159 = scmp.ne.s32.totalorder %s148, %s151
      %p160 = scmp.eq.s32.totalorder %s23, 1
      %p161 = por %p159, %p160
      %p162 = scmp.ne.s32.totalorder %s151, %s152
      %p163 = scmp.eq.s32.totalorder %s23, 0
      %p164 = por %p162, %p163
      %p165 = scmp.ne.s32.totalorder %s151, %s152
      %p166 = scmp.eq.s32.totalorder %s24, 1
      %p167 = por %p165, %p166
      %p169 = scmp.ne.s32.totalorder %s152, %s168
      %p170 = scmp.eq.s32.totalorder %s24, 0
      %p171 = por %p169, %p170
      %p172 = scmp.le.s32.totalorder 1, %s18
      %p173 = scmp.lt.s32.totalorder %s18, 3
      %p174 = pnand %p172, %p173
      %p175 = pneg %p174
      // Predicated region
      $region9: #{glow_base_forward_pallas.1} parent=5 // pred_check
        _
      $region10: #{glow_base_forward_pallas.1} parent=5 // pred_check_branch
        %177 = sbr.rel (%p174) target = $region12
      $region11: #{glow_base_forward_pallas.1} parent=5 // pred_region
        %s178 = ssub.s32 %s18, 1
        // Predicated region
        $region13: #{glow_base_forward_pallas.1} parent=11 // pred_check
          %p179 = pneg %p84
        $region14: #{glow_base_forward_pallas.1} parent=11 // pred_check_branch
          %181 = sbr.rel (%p179) target = $region16
        $region15: #{glow_base_forward_pallas.1} parent=11 // pred_region
          %s182 = smul.u32 8, %s28
          %184 = vsyncadd [#allocation6], 0
          %s185 = scalar_lea.hbm %s1, %s182
          %s187 = sshll.u32 %s185, 4
          %s188 = int_to_ptr.hbm [resolvable:$true] %s187
          %s189 = sshll.u32 [#allocation5], 4
          %s190 = int_to_ptr.vmem [resolvable:$true] %s189
          %192 = dma.hbm_to_vmem [thread:$0]  %s188, 128, %s190, [#allocation6]
        $region16: #{glow_base_forward_pallas.1} parent=11 // pred_fallthru
          _
        // Predicated region
        $region17: #{glow_base_forward_pallas.1} parent=11 // pred_check
          %p193 = pneg %p110
        $region18: #{glow_base_forward_pallas.1} parent=11 // pred_check_branch
          %195 = sbr.rel (%p193) target = $region20
        $region19: #{glow_base_forward_pallas.1} parent=11 // pred_region
          %s196 = smul.u32 8, %s28
          %198 = vsyncadd [#allocation6], 0
          %s199 = scalar_lea.hbm %s2, %s196
          %s201 = sshll.u32 %s199, 4
          %s202 = int_to_ptr.hbm [resolvable:$true] %s201
          %s203 = sshll.u32 [#allocation7], 4
          %s204 = int_to_ptr.vmem [resolvable:$true] %s203
          %206 = dma.hbm_to_vmem [thread:$0]  %s202, 128, %s204, [#allocation6]
        $region20: #{glow_base_forward_pallas.1} parent=11 // pred_fallthru
          _
      $region12: #{glow_base_forward_pallas.1} parent=5 // pred_fallthru
        _
      %p207 = scmp.lt.s32.totalorder %s18, 2
      // Predicated region
      $region21: #{glow_base_forward_pallas.1} parent=5 // pred_check
        %p208 = pneg %p207
      $region22: #{glow_base_forward_pallas.1} parent=5 // pred_check_branch
        %210 = sbr.rel (%p208) target = $region24
      $region23: #{glow_base_forward_pallas.1} parent=5 // pred_region
        // Predicated region
        $region25: #{glow_base_forward_pallas.1} parent=23 // pred_check
          %p211 = pneg %p52
        $region26: #{glow_base_forward_pallas.1} parent=23 // pred_check_branch
          %213 = sbr.rel (%p211) target = $region28
        $region27: #{glow_base_forward_pallas.1} parent=23 // pred_region
          %s214 = sand.u32 %s42, 1
          %s215 = scalar_lea.sflag [#allocation3], %s214
          %s216 = sand.u32 %s42, 1
          %s217 = smul.addr %s216, 2048
          %s218 = scalar_lea.vmem [#allocation2], %s217
          %s219 = smul.u32 32, %s25
          %s220 = smul.u32 8, %s26
          %s221 = ssub.s32 33, %s219
          %p222 = scmp.lt.s32.totalorder %s221, 32
          %s223 = scalar_select %p222, %s221, 32
          %s224 = smul.u32 8, %s223
          %s225 = smul.u32 %s224, 8
          %s226 = ssub.s32 2048, %s225
          %s227 = sshll.u32 %s226, 4
          %228 = vsyncadd %s215, %s227
          %p229 = scmp.ne.s32.totalorder 0, %s225
          %s230 = smul.addr %s219, 8
          %s231 = sadd.s32 %s220, %s230
          %s232 = smul.addr %s231, 8
          %s233 = scalar_lea.hbm %s0, %s232
          %s234 = smul.u32 64, %s223
          %s235 = sshll.u32 %s233, 4
          %s236 = int_to_ptr.hbm [resolvable:$true] %s235
          %s237 = sshll.u32 %s218, 4
          %s238 = int_to_ptr.vmem [resolvable:$true] %s237
          %s239 = sshll.u32 %s234, 4
          %243 = dma.hbm_to_vmem [thread:$0]  (%p229), %s236, %s239, %s238, %s215, 1024, 1024, 64
        $region28: #{glow_base_forward_pallas.1} parent=23 // pred_fallthru
          _
      $region24: #{glow_base_forward_pallas.1} parent=5 // pred_fallthru
        _
      %p244 = scmp.le.s32.totalorder 1, %s18
      %p245 = scmp.lt.s32.totalorder %s18, 3
      %p246 = pnand %p244, %p245
      %p247 = pneg %p246
      // Predicated region
      $region29: #{glow_base_forward_pallas.1} parent=5 // pred_check
        _
      $region30: #{glow_base_forward_pallas.1} parent=5 // pred_check_branch
        %249 = sbr.rel (%p246) target = $region32
      $region31: #{glow_base_forward_pallas.1} parent=5 // pred_region
        %s250 = ssub.s32 %s18, 1
        %s251 = sand.u32 %s45, 1
        %s252 = scalar_lea.sflag [#allocation3], %s251
        %s253 = sand.u32 %s45, 1
        %s254 = smul.addr %s253, 2048
        %s255 = scalar_lea.vmem [#allocation2], %s254
        // Predicated region
        $region33: #{glow_base_forward_pallas.1} parent=31 // pred_check
          %p256 = pneg %p58
        $region34: #{glow_base_forward_pallas.1} parent=31 // pred_check_branch
          %258 = sbr.rel (%p256) target = $region36
        $region35: #{glow_base_forward_pallas.1} parent=31 // pred_region
          %260 = dma.done %s252, 32768
        $region36: #{glow_base_forward_pallas.1} parent=31 // pred_fallthru
          _
        // Predicated region
        $region37: #{glow_base_forward_pallas.1} parent=31 // pred_check
          %p261 = pneg %p84
        $region38: #{glow_base_forward_pallas.1} parent=31 // pred_check_branch
          %263 = sbr.rel (%p261) target = $region40
        $region39: #{glow_base_forward_pallas.1} parent=31 // pred_region
          %265 = dma.done [#allocation6], 128
        $region40: #{glow_base_forward_pallas.1} parent=31 // pred_fallthru
          _
        // Predicated region
        $region41: #{glow_base_forward_pallas.1} parent=31 // pred_check
          %p266 = pneg %p110
        $region42: #{glow_base_forward_pallas.1} parent=31 // pred_check_branch
          %268 = sbr.rel (%p266) target = $region44
        $region43: #{glow_base_forward_pallas.1} parent=31 // pred_region
          %270 = dma.done [#allocation6], 128
        $region44: #{glow_base_forward_pallas.1} parent=31 // pred_fallthru
          _
        %s271 = sand.u32 %s45, 1
        %s272 = scalar_lea.sflag [#allocation3], %s271
        %s273 = sand.u32 %s45, 1
        %s274 = smul.addr %s273, 2048
        %s275 = scalar_lea.vmem [#allocation2], %s274
        %p276 = pneg %p58
        %p277 = pneg %p55
        %p278 = pneg %p84
        %p279 = pneg %p81
        %p280 = pneg %p110
        %p281 = pneg %p107
        %p282 = pneg %p138
        %p283 = pneg %p135
        %s284 = sand.u32 %s125, 1
        %s285 = scalar_lea.sflag [#allocation4], %s284
        %s286 = sand.u32 %s125, 1
        %s287 = smul.addr %s286, 2048
        %s288 = scalar_lea.vmem [#allocation8], %s287
        %p289 = pneg %p164
        %p290 = pneg %p161
        %s291 = sand.u32 %s151, 1
        %s292 = sand.u32 %s151, 1
        %s293 = smul.addr %s292, 2
        %s294 = scalar_lea.vmem [#allocation9], %s293
        %s295 = smul.u32 32, %s27
        %s296 = smul.u32 8, %s28
        %s297 = ssub.s32 33, %s295
        %p298 = scmp.lt.s32.totalorder %s297, 32
        %s299 = scalar_select %p298, %s297, 32
        %s300 = smul.u32 8, %s299
        %s301 = smul.u32 %s300, 8
        %s302 = smul.u32 8, %s28
        %s303 = smul.u32 8, %s28
        %s304 = smul.u32 32, %s27
        %s305 = smul.u32 8, %s28
        %s306 = ssub.s32 33, %s304
        %p307 = scmp.lt.s32.totalorder %s306, 32
        %s308 = scalar_select %p307, %s306, 32
        %s309 = smul.u32 8, %s308
        %s310 = smul.u32 %s309, 8
        %s311 = smul.u32 2, %s27
        %s312 = ssub.s32 3, %s311
        %p313 = scmp.lt.s32.totalorder %s312, 2
        %s314 = scalar_select %p313, %s312, 2
        %v315 = vld [vmem:[%s255] sm:$0xff]
        %v316 = vld [vmem:[%s255 + $0x8] sm:$0xff]
        %v317 = vld [vmem:[%s255 + $0x10] sm:$0xff]
        %v318 = vld [vmem:[%s255 + $0x18] sm:$0xff]
        %v319 = vld [vmem:[%s255 + $0x20] sm:$0xff]
        %v320 = vld [vmem:[%s255 + $0x28] sm:$0xff]
        %v321 = vld [vmem:[%s255 + $0x30] sm:$0xff]
        %v322 = vld [vmem:[%s255 + $0x38] sm:$0xff]
        %v323 = vld [vmem:[%s255 + $0x40] sm:$0xff]
        %v324 = vld [vmem:[%s255 + $0x48] sm:$0xff]
        %v325 = vld [vmem:[%s255 + $0x50] sm:$0xff]
        %v326 = vld [vmem:[%s255 + $0x58] sm:$0xff]
        %v327 = vld [vmem:[%s255 + $0x60] sm:$0xff]
        %v328 = vld [vmem:[%s255 + $0x68] sm:$0xff]
        %v329 = vld [vmem:[%s255 + $0x70] sm:$0xff]
        %v330 = vld [vmem:[%s255 + $0x78] sm:$0xff]
        %v331 = vld [vmem:[%s255 + $0x80] sm:$0xff]
        %v332 = vld [vmem:[%s255 + $0x88] sm:$0xff]
        %v333 = vld [vmem:[%s255 + $0x90] sm:$0xff]
        %v334 = vld [vmem:[%s255 + $0x98] sm:$0xff]
        %v335 = vld [vmem:[%s255 + $0xa0] sm:$0xff]
        %v336 = vld [vmem:[%s255 + $0xa8] sm:$0xff]
        %v337 = vld [vmem:[%s255 + $0xb0] sm:$0xff]
        %v338 = vld [vmem:[%s255 + $0xb8] sm:$0xff]
        %v339 = vld [vmem:[%s255 + $0xc0] sm:$0xff]
        %v340 = vld [vmem:[%s255 + $0xc8] sm:$0xff]
        %v341 = vld [vmem:[%s255 + $0xd0] sm:$0xff]
        %v342 = vld [vmem:[%s255 + $0xd8] sm:$0xff]
        %v343 = vld [vmem:[%s255 + $0xe0] sm:$0xff]
        %v344 = vld [vmem:[%s255 + $0xe8] sm:$0xff]
        %v345 = vld [vmem:[%s255 + $0xf0] sm:$0xff]
        %v346 = vld [vmem:[%s255 + $0xf8] sm:$0xff]
        %v347 = vld [vmem:[%s255 + $0x100] sm:$0xff]
        %v348 = vld [vmem:[%s255 + $0x108] sm:$0xff]
        %v349 = vld [vmem:[%s255 + $0x110] sm:$0xff]
        %v350 = vld [vmem:[%s255 + $0x118] sm:$0xff]
        %v351 = vld [vmem:[%s255 + $0x120] sm:$0xff]
        %v352 = vld [vmem:[%s255 + $0x128] sm:$0xff]
        %v353 = vld [vmem:[%s255 + $0x130] sm:$0xff]
        %v354 = vld [vmem:[%s255 + $0x138] sm:$0xff]
        %v355 = vld [vmem:[%s255 + $0x140] sm:$0xff]
        %v356 = vld [vmem:[%s255 + $0x148] sm:$0xff]
        %v357 = vld [vmem:[%s255 + $0x150] sm:$0xff]
        %v358 = vld [vmem:[%s255 + $0x158] sm:$0xff]
        %v359 = vld [vmem:[%s255 + $0x160] sm:$0xff]
        %v360 = vld [vmem:[%s255 + $0x168] sm:$0xff]
        %v361 = vld [vmem:[%s255 + $0x170] sm:$0xff]
        %v362 = vld [vmem:[%s255 + $0x178] sm:$0xff]
        %v363 = vld [vmem:[%s255 + $0x180] sm:$0xff]
        %v364 = vld [vmem:[%s255 + $0x188] sm:$0xff]
        %v365 = vld [vmem:[%s255 + $0x190] sm:$0xff]
        %v366 = vld [vmem:[%s255 + $0x198] sm:$0xff]
        %v367 = vld [vmem:[%s255 + $0x1a0] sm:$0xff]
        %v368 = vld [vmem:[%s255 + $0x1a8] sm:$0xff]
        %v369 = vld [vmem:[%s255 + $0x1b0] sm:$0xff]
        %v370 = vld [vmem:[%s255 + $0x1b8] sm:$0xff]
        %v371 = vld [vmem:[%s255 + $0x1c0] sm:$0xff]
        %v372 = vld [vmem:[%s255 + $0x1c8] sm:$0xff]
        %v373 = vld [vmem:[%s255 + $0x1d0] sm:$0xff]
        %v374 = vld [vmem:[%s255 + $0x1d8] sm:$0xff]
        %v375 = vld [vmem:[%s255 + $0x1e0] sm:$0xff]
        %v376 = vld [vmem:[%s255 + $0x1e8] sm:$0xff]
        %v377 = vld [vmem:[%s255 + $0x1f0] sm:$0xff]
        %v378 = vld [vmem:[%s255 + $0x1f8] sm:$0xff]
        %v379 = vld [vmem:[%s255 + $0x200] sm:$0xff]
        %v380 = vld [vmem:[%s255 + $0x208] sm:$0xff]
        %v381 = vld [vmem:[%s255 + $0x210] sm:$0xff]
        %v382 = vld [vmem:[%s255 + $0x218] sm:$0xff]
        %v383 = vld [vmem:[%s255 + $0x220] sm:$0xff]
        %v384 = vld [vmem:[%s255 + $0x228] sm:$0xff]
        %v385 = vld [vmem:[%s255 + $0x230] sm:$0xff]
        %v386 = vld [vmem:[%s255 + $0x238] sm:$0xff]
        %v387 = vld [vmem:[%s255 + $0x240] sm:$0xff]
        %v388 = vld [vmem:[%s255 + $0x248] sm:$0xff]
        %v389 = vld [vmem:[%s255 + $0x250] sm:$0xff]
        %v390 = vld [vmem:[%s255 + $0x258] sm:$0xff]
        %v391 = vld [vmem:[%s255 + $0x260] sm:$0xff]
        %v392 = vld [vmem:[%s255 + $0x268] sm:$0xff]
        %v393 = vld [vmem:[%s255 + $0x270] sm:$0xff]
        %v394 = vld [vmem:[%s255 + $0x278] sm:$0xff]
        %v395 = vld [vmem:[%s255 + $0x280] sm:$0xff]
        %v396 = vld [vmem:[%s255 + $0x288] sm:$0xff]
        %v397 = vld [vmem:[%s255 + $0x290] sm:$0xff]
        %v398 = vld [vmem:[%s255 + $0x298] sm:$0xff]
        %v399 = vld [vmem:[%s255 + $0x2a0] sm:$0xff]
        %v400 = vld [vmem:[%s255 + $0x2a8] sm:$0xff]
        %v401 = vld [vmem:[%s255 + $0x2b0] sm:$0xff]
        %v402 = vld [vmem:[%s255 + $0x2b8] sm:$0xff]
        %v403 = vld [vmem:[%s255 + $0x2c0] sm:$0xff]
        %v404 = vld [vmem:[%s255 + $0x2c8] sm:$0xff]
        %v405 = vld [vmem:[%s255 + $0x2d0] sm:$0xff]
        %v406 = vld [vmem:[%s255 + $0x2d8] sm:$0xff]
        %v407 = vld [vmem:[%s255 + $0x2e0] sm:$0xff]
        %v408 = vld [vmem:[%s255 + $0x2e8] sm:$0xff]
        %v409 = vld [vmem:[%s255 + $0x2f0] sm:$0xff]
        %v410 = vld [vmem:[%s255 + $0x2f8] sm:$0xff]
        %v411 = vld [vmem:[%s255 + $0x300] sm:$0xff]
        %v412 = vld [vmem:[%s255 + $0x308] sm:$0xff]
        %v413 = vld [vmem:[%s255 + $0x310] sm:$0xff]
        %v414 = vld [vmem:[%s255 + $0x318] sm:$0xff]
        %v415 = vld [vmem:[%s255 + $0x320] sm:$0xff]
        %v416 = vld [vmem:[%s255 + $0x328] sm:$0xff]
        %v417 = vld [vmem:[%s255 + $0x330] sm:$0xff]
        %v418 = vld [vmem:[%s255 + $0x338] sm:$0xff]
        %v419 = vld [vmem:[%s255 + $0x340] sm:$0xff]
        %v420 = vld [vmem:[%s255 + $0x348] sm:$0xff]
        %v421 = vld [vmem:[%s255 + $0x350] sm:$0xff]
        %v422 = vld [vmem:[%s255 + $0x358] sm:$0xff]
        %v423 = vld [vmem:[%s255 + $0x360] sm:$0xff]
        %v424 = vld [vmem:[%s255 + $0x368] sm:$0xff]
        %v425 = vld [vmem:[%s255 + $0x370] sm:$0xff]
        %v426 = vld [vmem:[%s255 + $0x378] sm:$0xff]
        %v427 = vld [vmem:[%s255 + $0x380] sm:$0xff]
        %v428 = vld [vmem:[%s255 + $0x388] sm:$0xff]
        %v429 = vld [vmem:[%s255 + $0x390] sm:$0xff]
        %v430 = vld [vmem:[%s255 + $0x398] sm:$0xff]
        %v431 = vld [vmem:[%s255 + $0x3a0] sm:$0xff]
        %v432 = vld [vmem:[%s255 + $0x3a8] sm:$0xff]
        %v433 = vld [vmem:[%s255 + $0x3b0] sm:$0xff]
        %v434 = vld [vmem:[%s255 + $0x3b8] sm:$0xff]
        %v435 = vld [vmem:[%s255 + $0x3c0] sm:$0xff]
        %v436 = vld [vmem:[%s255 + $0x3c8] sm:$0xff]
        %v437 = vld [vmem:[%s255 + $0x3d0] sm:$0xff]
        %v438 = vld [vmem:[%s255 + $0x3d8] sm:$0xff]
        %v439 = vld [vmem:[%s255 + $0x3e0] sm:$0xff]
        %v440 = vld [vmem:[%s255 + $0x3e8] sm:$0xff]
        %v441 = vld [vmem:[%s255 + $0x3f0] sm:$0xff]
        %v442 = vld [vmem:[%s255 + $0x3f8] sm:$0xff]
        %v443 = vld [vmem:[%s255 + $0x400] sm:$0xff]
        %v444 = vld [vmem:[%s255 + $0x408] sm:$0xff]
        %v445 = vld [vmem:[%s255 + $0x410] sm:$0xff]
        %v446 = vld [vmem:[%s255 + $0x418] sm:$0xff]
        %v447 = vld [vmem:[%s255 + $0x420] sm:$0xff]
        %v448 = vld [vmem:[%s255 + $0x428] sm:$0xff]
        %v449 = vld [vmem:[%s255 + $0x430] sm:$0xff]
        %v450 = vld [vmem:[%s255 + $0x438] sm:$0xff]
        %v451 = vld [vmem:[%s255 + $0x440] sm:$0xff]
        %v452 = vld [vmem:[%s255 + $0x448] sm:$0xff]
        %v453 = vld [vmem:[%s255 + $0x450] sm:$0xff]
        %v454 = vld [vmem:[%s255 + $0x458] sm:$0xff]
        %v455 = vld [vmem:[%s255 + $0x460] sm:$0xff]
        %v456 = vld [vmem:[%s255 + $0x468] sm:$0xff]
        %v457 = vld [vmem:[%s255 + $0x470] sm:$0xff]
        %v458 = vld [vmem:[%s255 + $0x478] sm:$0xff]
        %v459 = vld [vmem:[%s255 + $0x480] sm:$0xff]
        %v460 = vld [vmem:[%s255 + $0x488] sm:$0xff]
        %v461 = vld [vmem:[%s255 + $0x490] sm:$0xff]
        %v462 = vld [vmem:[%s255 + $0x498] sm:$0xff]
        %v463 = vld [vmem:[%s255 + $0x4a0] sm:$0xff]
        %v464 = vld [vmem:[%s255 + $0x4a8] sm:$0xff]
        %v465 = vld [vmem:[%s255 + $0x4b0] sm:$0xff]
        %v466 = vld [vmem:[%s255 + $0x4b8] sm:$0xff]
        %v467 = vld [vmem:[%s255 + $0x4c0] sm:$0xff]
        %v468 = vld [vmem:[%s255 + $0x4c8] sm:$0xff]
        %v469 = vld [vmem:[%s255 + $0x4d0] sm:$0xff]
        %v470 = vld [vmem:[%s255 + $0x4d8] sm:$0xff]
        %v471 = vld [vmem:[%s255 + $0x4e0] sm:$0xff]
        %v472 = vld [vmem:[%s255 + $0x4e8] sm:$0xff]
        %v473 = vld [vmem:[%s255 + $0x4f0] sm:$0xff]
        %v474 = vld [vmem:[%s255 + $0x4f8] sm:$0xff]
        %v475 = vld [vmem:[%s255 + $0x500] sm:$0xff]
        %v476 = vld [vmem:[%s255 + $0x508] sm:$0xff]
        %v477 = vld [vmem:[%s255 + $0x510] sm:$0xff]
        %v478 = vld [vmem:[%s255 + $0x518] sm:$0xff]
        %v479 = vld [vmem:[%s255 + $0x520] sm:$0xff]
        %v480 = vld [vmem:[%s255 + $0x528] sm:$0xff]
        %v481 = vld [vmem:[%s255 + $0x530] sm:$0xff]
        %v482 = vld [vmem:[%s255 + $0x538] sm:$0xff]
        %v483 = vld [vmem:[%s255 + $0x540] sm:$0xff]
        %v484 = vld [vmem:[%s255 + $0x548] sm:$0xff]
        %v485 = vld [vmem:[%s255 + $0x550] sm:$0xff]
        %v486 = vld [vmem:[%s255 + $0x558] sm:$0xff]
        %v487 = vld [vmem:[%s255 + $0x560] sm:$0xff]
        %v488 = vld [vmem:[%s255 + $0x568] sm:$0xff]
        %v489 = vld [vmem:[%s255 + $0x570] sm:$0xff]
        %v490 = vld [vmem:[%s255 + $0x578] sm:$0xff]
        %v491 = vld [vmem:[%s255 + $0x580] sm:$0xff]
        %v492 = vld [vmem:[%s255 + $0x588] sm:$0xff]
        %v493 = vld [vmem:[%s255 + $0x590] sm:$0xff]
        %v494 = vld [vmem:[%s255 + $0x598] sm:$0xff]
        %v495 = vld [vmem:[%s255 + $0x5a0] sm:$0xff]
        %v496 = vld [vmem:[%s255 + $0x5a8] sm:$0xff]
        %v497 = vld [vmem:[%s255 + $0x5b0] sm:$0xff]
        %v498 = vld [vmem:[%s255 + $0x5b8] sm:$0xff]
        %v499 = vld [vmem:[%s255 + $0x5c0] sm:$0xff]
        %v500 = vld [vmem:[%s255 + $0x5c8] sm:$0xff]
        %v501 = vld [vmem:[%s255 + $0x5d0] sm:$0xff]
        %v502 = vld [vmem:[%s255 + $0x5d8] sm:$0xff]
        %v503 = vld [vmem:[%s255 + $0x5e0] sm:$0xff]
        %v504 = vld [vmem:[%s255 + $0x5e8] sm:$0xff]
        %v505 = vld [vmem:[%s255 + $0x5f0] sm:$0xff]
        %v506 = vld [vmem:[%s255 + $0x5f8] sm:$0xff]
        %v507 = vld [vmem:[%s255 + $0x600] sm:$0xff]
        %v508 = vld [vmem:[%s255 + $0x608] sm:$0xff]
        %v509 = vld [vmem:[%s255 + $0x610] sm:$0xff]
        %v510 = vld [vmem:[%s255 + $0x618] sm:$0xff]
        %v511 = vld [vmem:[%s255 + $0x620] sm:$0xff]
        %v512 = vld [vmem:[%s255 + $0x628] sm:$0xff]
        %v513 = vld [vmem:[%s255 + $0x630] sm:$0xff]
        %v514 = vld [vmem:[%s255 + $0x638] sm:$0xff]
        %v515 = vld [vmem:[%s255 + $0x640] sm:$0xff]
        %v516 = vld [vmem:[%s255 + $0x648] sm:$0xff]
        %v517 = vld [vmem:[%s255 + $0x650] sm:$0xff]
        %v518 = vld [vmem:[%s255 + $0x658] sm:$0xff]
        %v519 = vld [vmem:[%s255 + $0x660] sm:$0xff]
        %v520 = vld [vmem:[%s255 + $0x668] sm:$0xff]
        %v521 = vld [vmem:[%s255 + $0x670] sm:$0xff]
        %v522 = vld [vmem:[%s255 + $0x678] sm:$0xff]
        %v523 = vld [vmem:[%s255 + $0x680] sm:$0xff]
        %v524 = vld [vmem:[%s255 + $0x688] sm:$0xff]
        %v525 = vld [vmem:[%s255 + $0x690] sm:$0xff]
        %v526 = vld [vmem:[%s255 + $0x698] sm:$0xff]
        %v527 = vld [vmem:[%s255 + $0x6a0] sm:$0xff]
        %v528 = vld [vmem:[%s255 + $0x6a8] sm:$0xff]
        %v529 = vld [vmem:[%s255 + $0x6b0] sm:$0xff]
        %v530 = vld [vmem:[%s255 + $0x6b8] sm:$0xff]
        %v531 = vld [vmem:[%s255 + $0x6c0] sm:$0xff]
        %v532 = vld [vmem:[%s255 + $0x6c8] sm:$0xff]
        %v533 = vld [vmem:[%s255 + $0x6d0] sm:$0xff]
        %v534 = vld [vmem:[%s255 + $0x6d8] sm:$0xff]
        %v535 = vld [vmem:[%s255 + $0x6e0] sm:$0xff]
        %v536 = vld [vmem:[%s255 + $0x6e8] sm:$0xff]
        %v537 = vld [vmem:[%s255 + $0x6f0] sm:$0xff]
        %v538 = vld [vmem:[%s255 + $0x6f8] sm:$0xff]
        %v539 = vld [vmem:[%s255 + $0x700] sm:$0xff]
        %v540 = vld [vmem:[%s255 + $0x708] sm:$0xff]
        %v541 = vld [vmem:[%s255 + $0x710] sm:$0xff]
        %v542 = vld [vmem:[%s255 + $0x718] sm:$0xff]
        %v543 = vld [vmem:[%s255 + $0x720] sm:$0xff]
        %v544 = vld [vmem:[%s255 + $0x728] sm:$0xff]
        %v545 = vld [vmem:[%s255 + $0x730] sm:$0xff]
        %v546 = vld [vmem:[%s255 + $0x738] sm:$0xff]
        %v547 = vld [vmem:[%s255 + $0x740] sm:$0xff]
        %v548 = vld [vmem:[%s255 + $0x748] sm:$0xff]
        %v549 = vld [vmem:[%s255 + $0x750] sm:$0xff]
        %v550 = vld [vmem:[%s255 + $0x758] sm:$0xff]
        %v551 = vld [vmem:[%s255 + $0x760] sm:$0xff]
        %v552 = vld [vmem:[%s255 + $0x768] sm:$0xff]
        %v553 = vld [vmem:[%s255 + $0x770] sm:$0xff]
        %v554 = vld [vmem:[%s255 + $0x778] sm:$0xff]
        %v555 = vld [vmem:[%s255 + $0x780] sm:$0xff]
        %v556 = vld [vmem:[%s255 + $0x788] sm:$0xff]
        %v557 = vld [vmem:[%s255 + $0x790] sm:$0xff]
        %v558 = vld [vmem:[%s255 + $0x798] sm:$0xff]
        %v559 = vld [vmem:[%s255 + $0x7a0] sm:$0xff]
        %v560 = vld [vmem:[%s255 + $0x7a8] sm:$0xff]
        %v561 = vld [vmem:[%s255 + $0x7b0] sm:$0xff]
        %v562 = vld [vmem:[%s255 + $0x7b8] sm:$0xff]
        %v563 = vld [vmem:[%s255 + $0x7c0] sm:$0xff]
        %v564 = vld [vmem:[%s255 + $0x7c8] sm:$0xff]
        %v565 = vld [vmem:[%s255 + $0x7d0] sm:$0xff]
        %v566 = vld [vmem:[%s255 + $0x7d8] sm:$0xff]
        %v567 = vld [vmem:[%s255 + $0x7e0] sm:$0xff]
        %v568 = vld [vmem:[%s255 + $0x7e8] sm:$0xff]
        %v569 = vld [vmem:[%s255 + $0x7f0] sm:$0xff]
        %v570 = vld [vmem:[%s255 + $0x7f8] sm:$0xff]
        %v571 = vld [vmem:[#allocation5] sm:$0xff]
        %v573 = vperm.slane %v571, 0
        %v574 = vperm.slane %v571, 1
        %v575 = vperm.slane %v571, 2
        %v576 = vperm.slane %v571, 3
        %v577 = vperm.slane %v571, 4
        %v578 = vperm.slane %v571, 5
        %v579 = vperm.slane %v571, 6
        %v580 = vperm.slane %v571, 7
        %v589 = vmul.f32 %v315, %v573
        %v590 = vmul.f32 %v316, %v574
        %v591 = vmul.f32 %v317, %v575
        %v592 = vmul.f32 %v318, %v576
        %v593 = vmul.f32 %v319, %v577
        %v594 = vmul.f32 %v320, %v578
        %v595 = vmul.f32 %v321, %v579
        %v596 = vmul.f32 %v322, %v580
        %v597 = vmul.f32 %v323, %v573
        %v598 = vmul.f32 %v324, %v574
        %v599 = vmul.f32 %v325, %v575
        %v600 = vmul.f32 %v326, %v576
        %v601 = vmul.f32 %v327, %v577
        %v602 = vmul.f32 %v328, %v578
        %v603 = vmul.f32 %v329, %v579
        %v604 = vmul.f32 %v330, %v580
        %v605 = vmul.f32 %v331, %v573
        %v606 = vmul.f32 %v332, %v574
        %v607 = vmul.f32 %v333, %v575
        %v608 = vmul.f32 %v334, %v576
        %v609 = vmul.f32 %v335, %v577
        %v610 = vmul.f32 %v336, %v578
        %v611 = vmul.f32 %v337, %v579
        %v612 = vmul.f32 %v338, %v580
        %v613 = vmul.f32 %v339, %v573
        %v614 = vmul.f32 %v340, %v574
        %v615 = vmul.f32 %v341, %v575
        %v616 = vmul.f32 %v342, %v576
        %v617 = vmul.f32 %v343, %v577
        %v618 = vmul.f32 %v344, %v578
        %v619 = vmul.f32 %v345, %v579
        %v620 = vmul.f32 %v346, %v580
        %v621 = vmul.f32 %v347, %v573
        %v622 = vmul.f32 %v348, %v574
        %v623 = vmul.f32 %v349, %v575
        %v624 = vmul.f32 %v350, %v576
        %v625 = vmul.f32 %v351, %v577
        %v626 = vmul.f32 %v352, %v578
        %v627 = vmul.f32 %v353, %v579
        %v628 = vmul.f32 %v354, %v580
        %v629 = vmul.f32 %v355, %v573
        %v630 = vmul.f32 %v356, %v574
        %v631 = vmul.f32 %v357, %v575
        %v632 = vmul.f32 %v358, %v576
        %v633 = vmul.f32 %v359, %v577
        %v634 = vmul.f32 %v360, %v578
        %v635 = vmul.f32 %v361, %v579
        %v636 = vmul.f32 %v362, %v580
        %v637 = vmul.f32 %v363, %v573
        %v638 = vmul.f32 %v364, %v574
        %v639 = vmul.f32 %v365, %v575
        %v640 = vmul.f32 %v366, %v576
        %v641 = vmul.f32 %v367, %v577
        %v642 = vmul.f32 %v368, %v578
        %v643 = vmul.f32 %v369, %v579
        %v644 = vmul.f32 %v370, %v580
        %v645 = vmul.f32 %v371, %v573
        %v646 = vmul.f32 %v372, %v574
        %v647 = vmul.f32 %v373, %v575
        %v648 = vmul.f32 %v374, %v576
        %v649 = vmul.f32 %v375, %v577
        %v650 = vmul.f32 %v376, %v578
        %v651 = vmul.f32 %v377, %v579
        %v652 = vmul.f32 %v378, %v580
        %v653 = vmul.f32 %v379, %v573
        %v654 = vmul.f32 %v380, %v574
        %v655 = vmul.f32 %v381, %v575
        %v656 = vmul.f32 %v382, %v576
        %v657 = vmul.f32 %v383, %v577
        %v658 = vmul.f32 %v384, %v578
        %v659 = vmul.f32 %v385, %v579
        %v660 = vmul.f32 %v386, %v580
        %v661 = vmul.f32 %v387, %v573
        %v662 = vmul.f32 %v388, %v574
        %v663 = vmul.f32 %v389, %v575
        %v664 = vmul.f32 %v390, %v576
        %v665 = vmul.f32 %v391, %v577
        %v666 = vmul.f32 %v392, %v578
        %v667 = vmul.f32 %v393, %v579
        %v668 = vmul.f32 %v394, %v580
        %v669 = vmul.f32 %v395, %v573
        %v670 = vmul.f32 %v396, %v574
        %v671 = vmul.f32 %v397, %v575
        %v672 = vmul.f32 %v398, %v576
        %v673 = vmul.f32 %v399, %v577
        %v674 = vmul.f32 %v400, %v578
        %v675 = vmul.f32 %v401, %v579
        %v676 = vmul.f32 %v402, %v580
        %v677 = vmul.f32 %v403, %v573
        %v678 = vmul.f32 %v404, %v574
        %v679 = vmul.f32 %v405, %v575
        %v680 = vmul.f32 %v406, %v576
        %v681 = vmul.f32 %v407, %v577
        %v682 = vmul.f32 %v408, %v578
        %v683 = vmul.f32 %v409, %v579
        %v684 = vmul.f32 %v410, %v580
        %v685 = vmul.f32 %v411, %v573
        %v686 = vmul.f32 %v412, %v574
        %v687 = vmul.f32 %v413, %v575
        %v688 = vmul.f32 %v414, %v576
        %v689 = vmul.f32 %v415, %v577
        %v690 = vmul.f32 %v416, %v578
        %v691 = vmul.f32 %v417, %v579
        %v692 = vmul.f32 %v418, %v580
        %v693 = vmul.f32 %v419, %v573
        %v694 = vmul.f32 %v420, %v574
        %v695 = vmul.f32 %v421, %v575
        %v696 = vmul.f32 %v422, %v576
        %v697 = vmul.f32 %v423, %v577
        %v698 = vmul.f32 %v424, %v578
        %v699 = vmul.f32 %v425, %v579
        %v700 = vmul.f32 %v426, %v580
        %v701 = vmul.f32 %v427, %v573
        %v702 = vmul.f32 %v428, %v574
        %v703 = vmul.f32 %v429, %v575
        %v704 = vmul.f32 %v430, %v576
        %v705 = vmul.f32 %v431, %v577
        %v706 = vmul.f32 %v432, %v578
        %v707 = vmul.f32 %v433, %v579
        %v708 = vmul.f32 %v434, %v580
        %v709 = vmul.f32 %v435, %v573
        %v710 = vmul.f32 %v436, %v574
        %v711 = vmul.f32 %v437, %v575
        %v712 = vmul.f32 %v438, %v576
        %v713 = vmul.f32 %v439, %v577
        %v714 = vmul.f32 %v440, %v578
        %v715 = vmul.f32 %v441, %v579
        %v716 = vmul.f32 %v442, %v580
        %v717 = vmul.f32 %v443, %v573
        %v718 = vmul.f32 %v444, %v574
        %v719 = vmul.f32 %v445, %v575
        %v720 = vmul.f32 %v446, %v576
        %v721 = vmul.f32 %v447, %v577
        %v722 = vmul.f32 %v448, %v578
        %v723 = vmul.f32 %v449, %v579
        %v724 = vmul.f32 %v450, %v580
        %v725 = vmul.f32 %v451, %v573
        %v726 = vmul.f32 %v452, %v574
        %v727 = vmul.f32 %v453, %v575
        %v728 = vmul.f32 %v454, %v576
        %v729 = vmul.f32 %v455, %v577
        %v730 = vmul.f32 %v456, %v578
        %v731 = vmul.f32 %v457, %v579
        %v732 = vmul.f32 %v458, %v580
        %v733 = vmul.f32 %v459, %v573
        %v734 = vmul.f32 %v460, %v574
        %v735 = vmul.f32 %v461, %v575
        %v736 = vmul.f32 %v462, %v576
        %v737 = vmul.f32 %v463, %v577
        %v738 = vmul.f32 %v464, %v578
        %v739 = vmul.f32 %v465, %v579
        %v740 = vmul.f32 %v466, %v580
        %v741 = vmul.f32 %v467, %v573
        %v742 = vmul.f32 %v468, %v574
        %v743 = vmul.f32 %v469, %v575
        %v744 = vmul.f32 %v470, %v576
        %v745 = vmul.f32 %v471, %v577
        %v746 = vmul.f32 %v472, %v578
        %v747 = vmul.f32 %v473, %v579
        %v748 = vmul.f32 %v474, %v580
        %v749 = vmul.f32 %v475, %v573
        %v750 = vmul.f32 %v476, %v574
        %v751 = vmul.f32 %v477, %v575
        %v752 = vmul.f32 %v478, %v576
        %v753 = vmul.f32 %v479, %v577
        %v754 = vmul.f32 %v480, %v578
        %v755 = vmul.f32 %v481, %v579
        %v756 = vmul.f32 %v482, %v580
        %v757 = vmul.f32 %v483, %v573
        %v758 = vmul.f32 %v484, %v574
        %v759 = vmul.f32 %v485, %v575
        %v760 = vmul.f32 %v486, %v576
        %v761 = vmul.f32 %v487, %v577
        %v762 = vmul.f32 %v488, %v578
        %v763 = vmul.f32 %v489, %v579
        %v764 = vmul.f32 %v490, %v580
        %v765 = vmul.f32 %v491, %v573
        %v766 = vmul.f32 %v492, %v574
        %v767 = vmul.f32 %v493, %v575
        %v768 = vmul.f32 %v494, %v576
        %v769 = vmul.f32 %v495, %v577
        %v770 = vmul.f32 %v496, %v578
        %v771 = vmul.f32 %v497, %v579
        %v772 = vmul.f32 %v498, %v580
        %v773 = vmul.f32 %v499, %v573
        %v774 = vmul.f32 %v500, %v574
        %v775 = vmul.f32 %v501, %v575
        %v776 = vmul.f32 %v502, %v576
        %v777 = vmul.f32 %v503, %v577
        %v778 = vmul.f32 %v504, %v578
        %v779 = vmul.f32 %v505, %v579
        %v780 = vmul.f32 %v506, %v580
        %v781 = vmul.f32 %v507, %v573
        %v782 = vmul.f32 %v508, %v574
        %v783 = vmul.f32 %v509, %v575
        %v784 = vmul.f32 %v510, %v576
        %v785 = vmul.f32 %v511, %v577
        %v786 = vmul.f32 %v512, %v578
        %v787 = vmul.f32 %v513, %v579
        %v788 = vmul.f32 %v514, %v580
        %v789 = vmul.f32 %v515, %v573
        %v790 = vmul.f32 %v516, %v574
        %v791 = vmul.f32 %v517, %v575
        %v792 = vmul.f32 %v518, %v576
        %v793 = vmul.f32 %v519, %v577
        %v794 = vmul.f32 %v520, %v578
        %v795 = vmul.f32 %v521, %v579
        %v796 = vmul.f32 %v522, %v580
        %v797 = vmul.f32 %v523, %v573
        %v798 = vmul.f32 %v524, %v574
        %v799 = vmul.f32 %v525, %v575
        %v800 = vmul.f32 %v526, %v576
        %v801 = vmul.f32 %v527, %v577
        %v802 = vmul.f32 %v528, %v578
        %v803 = vmul.f32 %v529, %v579
        %v804 = vmul.f32 %v530, %v580
        %v805 = vmul.f32 %v531, %v573
        %v806 = vmul.f32 %v532, %v574
        %v807 = vmul.f32 %v533, %v575
        %v808 = vmul.f32 %v534, %v576
        %v809 = vmul.f32 %v535, %v577
        %v810 = vmul.f32 %v536, %v578
        %v811 = vmul.f32 %v537, %v579
        %v812 = vmul.f32 %v538, %v580
        %v813 = vmul.f32 %v539, %v573
        %v814 = vmul.f32 %v540, %v574
        %v815 = vmul.f32 %v541, %v575
        %v816 = vmul.f32 %v542, %v576
        %v817 = vmul.f32 %v543, %v577
        %v818 = vmul.f32 %v544, %v578
        %v819 = vmul.f32 %v545, %v579
        %v820 = vmul.f32 %v546, %v580
        %v821 = vmul.f32 %v547, %v573
        %v822 = vmul.f32 %v548, %v574
        %v823 = vmul.f32 %v549, %v575
        %v824 = vmul.f32 %v550, %v576
        %v825 = vmul.f32 %v551, %v577
        %v826 = vmul.f32 %v552, %v578
        %v827 = vmul.f32 %v553, %v579
        %v828 = vmul.f32 %v554, %v580
        %v829 = vmul.f32 %v555, %v573
        %v830 = vmul.f32 %v556, %v574
        %v831 = vmul.f32 %v557, %v575
        %v832 = vmul.f32 %v558, %v576
        %v833 = vmul.f32 %v559, %v577
        %v834 = vmul.f32 %v560, %v578
        %v835 = vmul.f32 %v561, %v579
        %v836 = vmul.f32 %v562, %v580
        %v837 = vmul.f32 %v563, %v573
        %v838 = vmul.f32 %v564, %v574
        %v839 = vmul.f32 %v565, %v575
        %v840 = vmul.f32 %v566, %v576
        %v841 = vmul.f32 %v567, %v577
        %v842 = vmul.f32 %v568, %v578
        %v843 = vmul.f32 %v569, %v579
        %v844 = vmul.f32 %v570, %v580
        %v845 = vld [vmem:[#allocation7] sm:$0xff]
        %v847 = vperm.slane %v845, 0
        %v848 = vperm.slane %v845, 1
        %v849 = vperm.slane %v845, 2
        %v850 = vperm.slane %v845, 3
        %v851 = vperm.slane %v845, 4
        %v852 = vperm.slane %v845, 5
        %v853 = vperm.slane %v845, 6
        %v854 = vperm.slane %v845, 7
        %v863 = vadd.f32 %v589, %v847
        %v864 = vadd.f32 %v590, %v848
        %v865 = vadd.f32 %v591, %v849
        %v866 = vadd.f32 %v592, %v850
        %v867 = vadd.f32 %v593, %v851
        %v868 = vadd.f32 %v594, %v852
        %v869 = vadd.f32 %v595, %v853
        %v870 = vadd.f32 %v596, %v854
        %v871 = vadd.f32 %v597, %v847
        %v872 = vadd.f32 %v598, %v848
        %v873 = vadd.f32 %v599, %v849
        %v874 = vadd.f32 %v600, %v850
        %v875 = vadd.f32 %v601, %v851
        %v876 = vadd.f32 %v602, %v852
        %v877 = vadd.f32 %v603, %v853
        %v878 = vadd.f32 %v604, %v854
        %v879 = vadd.f32 %v605, %v847
        %v880 = vadd.f32 %v606, %v848
        %v881 = vadd.f32 %v607, %v849
        %v882 = vadd.f32 %v608, %v850
        %v883 = vadd.f32 %v609, %v851
        %v884 = vadd.f32 %v610, %v852
        %v885 = vadd.f32 %v611, %v853
        %v886 = vadd.f32 %v612, %v854
        %v887 = vadd.f32 %v613, %v847
        %v888 = vadd.f32 %v614, %v848
        %v889 = vadd.f32 %v615, %v849
        %v890 = vadd.f32 %v616, %v850
        %v891 = vadd.f32 %v617, %v851
        %v892 = vadd.f32 %v618, %v852
        %v893 = vadd.f32 %v619, %v853
        %v894 = vadd.f32 %v620, %v854
        %v895 = vadd.f32 %v621, %v847
        %v896 = vadd.f32 %v622, %v848
        %v897 = vadd.f32 %v623, %v849
        %v898 = vadd.f32 %v624, %v850
        %v899 = vadd.f32 %v625, %v851
        %v900 = vadd.f32 %v626, %v852
        %v901 = vadd.f32 %v627, %v853
        %v902 = vadd.f32 %v628, %v854
        %v903 = vadd.f32 %v629, %v847
        %v904 = vadd.f32 %v630, %v848
        %v905 = vadd.f32 %v631, %v849
        %v906 = vadd.f32 %v632, %v850
        %v907 = vadd.f32 %v633, %v851
        %v908 = vadd.f32 %v634, %v852
        %v909 = vadd.f32 %v635, %v853
        %v910 = vadd.f32 %v636, %v854
        %v911 = vadd.f32 %v637, %v847
        %v912 = vadd.f32 %v638, %v848
        %v913 = vadd.f32 %v639, %v849
        %v914 = vadd.f32 %v640, %v850
        %v915 = vadd.f32 %v641, %v851
        %v916 = vadd.f32 %v642, %v852
        %v917 = vadd.f32 %v643, %v853
        %v918 = vadd.f32 %v644, %v854
        %v919 = vadd.f32 %v645, %v847
        %v920 = vadd.f32 %v646, %v848
        %v921 = vadd.f32 %v647, %v849
        %v922 = vadd.f32 %v648, %v850
        %v923 = vadd.f32 %v649, %v851
        %v924 = vadd.f32 %v650, %v852
        %v925 = vadd.f32 %v651, %v853
        %v926 = vadd.f32 %v652, %v854
        %v927 = vadd.f32 %v653, %v847
        %v928 = vadd.f32 %v654, %v848
        %v929 = vadd.f32 %v655, %v849
        %v930 = vadd.f32 %v656, %v850
        %v931 = vadd.f32 %v657, %v851
        %v932 = vadd.f32 %v658, %v852
        %v933 = vadd.f32 %v659, %v853
        %v934 = vadd.f32 %v660, %v854
        %v935 = vadd.f32 %v661, %v847
        %v936 = vadd.f32 %v662, %v848
        %v937 = vadd.f32 %v663, %v849
        %v938 = vadd.f32 %v664, %v850
        %v939 = vadd.f32 %v665, %v851
        %v940 = vadd.f32 %v666, %v852
        %v941 = vadd.f32 %v667, %v853
        %v942 = vadd.f32 %v668, %v854
        %v943 = vadd.f32 %v669, %v847
        %v944 = vadd.f32 %v670, %v848
        %v945 = vadd.f32 %v671, %v849
        %v946 = vadd.f32 %v672, %v850
        %v947 = vadd.f32 %v673, %v851
        %v948 = vadd.f32 %v674, %v852
        %v949 = vadd.f32 %v675, %v853
        %v950 = vadd.f32 %v676, %v854
        %v951 = vadd.f32 %v677, %v847
        %v952 = vadd.f32 %v678, %v848
        %v953 = vadd.f32 %v679, %v849
        %v954 = vadd.f32 %v680, %v850
        %v955 = vadd.f32 %v681, %v851
        %v956 = vadd.f32 %v682, %v852
        %v957 = vadd.f32 %v683, %v853
        %v958 = vadd.f32 %v684, %v854
        %v959 = vadd.f32 %v685, %v847
        %v960 = vadd.f32 %v686, %v848
        %v961 = vadd.f32 %v687, %v849
        %v962 = vadd.f32 %v688, %v850
        %v963 = vadd.f32 %v689, %v851
        %v964 = vadd.f32 %v690, %v852
        %v965 = vadd.f32 %v691, %v853
        %v966 = vadd.f32 %v692, %v854
        %v967 = vadd.f32 %v693, %v847
        %v968 = vadd.f32 %v694, %v848
        %v969 = vadd.f32 %v695, %v849
        %v970 = vadd.f32 %v696, %v850
        %v971 = vadd.f32 %v697, %v851
        %v972 = vadd.f32 %v698, %v852
        %v973 = vadd.f32 %v699, %v853
        %v974 = vadd.f32 %v700, %v854
        %v975 = vadd.f32 %v701, %v847
        %v976 = vadd.f32 %v702, %v848
        %v977 = vadd.f32 %v703, %v849
        %v978 = vadd.f32 %v704, %v850
        %v979 = vadd.f32 %v705, %v851
        %v980 = vadd.f32 %v706, %v852
        %v981 = vadd.f32 %v707, %v853
        %v982 = vadd.f32 %v708, %v854
        %v983 = vadd.f32 %v709, %v847
        %v984 = vadd.f32 %v710, %v848
        %v985 = vadd.f32 %v711, %v849
        %v986 = vadd.f32 %v712, %v850
        %v987 = vadd.f32 %v713, %v851
        %v988 = vadd.f32 %v714, %v852
        %v989 = vadd.f32 %v715, %v853
        %v990 = vadd.f32 %v716, %v854
        %v991 = vadd.f32 %v717, %v847
        %v992 = vadd.f32 %v718, %v848
        %v993 = vadd.f32 %v719, %v849
        %v994 = vadd.f32 %v720, %v850
        %v995 = vadd.f32 %v721, %v851
        %v996 = vadd.f32 %v722, %v852
        %v997 = vadd.f32 %v723, %v853
        %v998 = vadd.f32 %v724, %v854
        %v999 = vadd.f32 %v725, %v847
        %v1000 = vadd.f32 %v726, %v848
        %v1001 = vadd.f32 %v727, %v849
        %v1002 = vadd.f32 %v728, %v850
        %v1003 = vadd.f32 %v729, %v851
        %v1004 = vadd.f32 %v730, %v852
        %v1005 = vadd.f32 %v731, %v853
        %v1006 = vadd.f32 %v732, %v854
        %v1007 = vadd.f32 %v733, %v847
        %v1008 = vadd.f32 %v734, %v848
        %v1009 = vadd.f32 %v735, %v849
        %v1010 = vadd.f32 %v736, %v850
        %v1011 = vadd.f32 %v737, %v851
        %v1012 = vadd.f32 %v738, %v852
        %v1013 = vadd.f32 %v739, %v853
        %v1014 = vadd.f32 %v740, %v854
        %v1015 = vadd.f32 %v741, %v847
        %v1016 = vadd.f32 %v742, %v848
        %v1017 = vadd.f32 %v743, %v849
        %v1018 = vadd.f32 %v744, %v850
        %v1019 = vadd.f32 %v745, %v851
        %v1020 = vadd.f32 %v746, %v852
        %v1021 = vadd.f32 %v747, %v853
        %v1022 = vadd.f32 %v748, %v854
        %v1023 = vadd.f32 %v749, %v847
        %v1024 = vadd.f32 %v750, %v848
        %v1025 = vadd.f32 %v751, %v849
        %v1026 = vadd.f32 %v752, %v850
        %v1027 = vadd.f32 %v753, %v851
        %v1028 = vadd.f32 %v754, %v852
        %v1029 = vadd.f32 %v755, %v853
        %v1030 = vadd.f32 %v756, %v854
        %v1031 = vadd.f32 %v757, %v847
        %v1032 = vadd.f32 %v758, %v848
        %v1033 = vadd.f32 %v759, %v849
        %v1034 = vadd.f32 %v760, %v850
        %v1035 = vadd.f32 %v761, %v851
        %v1036 = vadd.f32 %v762, %v852
        %v1037 = vadd.f32 %v763, %v853
        %v1038 = vadd.f32 %v764, %v854
        %v1039 = vadd.f32 %v765, %v847
        %v1040 = vadd.f32 %v766, %v848
        %v1041 = vadd.f32 %v767, %v849
        %v1042 = vadd.f32 %v768, %v850
        %v1043 = vadd.f32 %v769, %v851
        %v1044 = vadd.f32 %v770, %v852
        %v1045 = vadd.f32 %v771, %v853
        %v1046 = vadd.f32 %v772, %v854
        %v1047 = vadd.f32 %v773, %v847
        %v1048 = vadd.f32 %v774, %v848
        %v1049 = vadd.f32 %v775, %v849
        %v1050 = vadd.f32 %v776, %v850
        %v1051 = vadd.f32 %v777, %v851
        %v1052 = vadd.f32 %v778, %v852
        %v1053 = vadd.f32 %v779, %v853
        %v1054 = vadd.f32 %v780, %v854
        %v1055 = vadd.f32 %v781, %v847
        %v1056 = vadd.f32 %v782, %v848
        %v1057 = vadd.f32 %v783, %v849
        %v1058 = vadd.f32 %v784, %v850
        %v1059 = vadd.f32 %v785, %v851
        %v1060 = vadd.f32 %v786, %v852
        %v1061 = vadd.f32 %v787, %v853
        %v1062 = vadd.f32 %v788, %v854
        %v1063 = vadd.f32 %v789, %v847
        %v1064 = vadd.f32 %v790, %v848
        %v1065 = vadd.f32 %v791, %v849
        %v1066 = vadd.f32 %v792, %v850
        %v1067 = vadd.f32 %v793, %v851
        %v1068 = vadd.f32 %v794, %v852
        %v1069 = vadd.f32 %v795, %v853
        %v1070 = vadd.f32 %v796, %v854
        %v1071 = vadd.f32 %v797, %v847
        %v1072 = vadd.f32 %v798, %v848
        %v1073 = vadd.f32 %v799, %v849
        %v1074 = vadd.f32 %v800, %v850
        %v1075 = vadd.f32 %v801, %v851
        %v1076 = vadd.f32 %v802, %v852
        %v1077 = vadd.f32 %v803, %v853
        %v1078 = vadd.f32 %v804, %v854
        %v1079 = vadd.f32 %v805, %v847
        %v1080 = vadd.f32 %v806, %v848
        %v1081 = vadd.f32 %v807, %v849
        %v1082 = vadd.f32 %v808, %v850
        %v1083 = vadd.f32 %v809, %v851
        %v1084 = vadd.f32 %v810, %v852
        %v1085 = vadd.f32 %v811, %v853
        %v1086 = vadd.f32 %v812, %v854
        %v1087 = vadd.f32 %v813, %v847
        %v1088 = vadd.f32 %v814, %v848
        %v1089 = vadd.f32 %v815, %v849
        %v1090 = vadd.f32 %v816, %v850
        %v1091 = vadd.f32 %v817, %v851
        %v1092 = vadd.f32 %v818, %v852
        %v1093 = vadd.f32 %v819, %v853
        %v1094 = vadd.f32 %v820, %v854
        %v1095 = vadd.f32 %v821, %v847
        %v1096 = vadd.f32 %v822, %v848
        %v1097 = vadd.f32 %v823, %v849
        %v1098 = vadd.f32 %v824, %v850
        %v1099 = vadd.f32 %v825, %v851
        %v1100 = vadd.f32 %v826, %v852
        %v1101 = vadd.f32 %v827, %v853
        %v1102 = vadd.f32 %v828, %v854
        %v1103 = vadd.f32 %v829, %v847
        %v1104 = vadd.f32 %v830, %v848
        %v1105 = vadd.f32 %v831, %v849
        %v1106 = vadd.f32 %v832, %v850
        %v1107 = vadd.f32 %v833, %v851
        %v1108 = vadd.f32 %v834, %v852
        %v1109 = vadd.f32 %v835, %v853
        %v1110 = vadd.f32 %v836, %v854
        %v1111 = vadd.f32 %v837, %v847
        %v1112 = vadd.f32 %v838, %v848
        %v1113 = vadd.f32 %v839, %v849
        %v1114 = vadd.f32 %v840, %v850
        %v1115 = vadd.f32 %v841, %v851
        %v1116 = vadd.f32 %v842, %v852
        %v1117 = vadd.f32 %v843, %v853
        %v1118 = vadd.f32 %v844, %v854
        %1119 = vst [vmem:[%s288] sm:$0xff] %v863
        %1120 = vst [vmem:[%s288 + $0x8] sm:$0xff] %v864
        %1121 = vst [vmem:[%s288 + $0x10] sm:$0xff] %v865
        %1122 = vst [vmem:[%s288 + $0x18] sm:$0xff] %v866
        %1123 = vst [vmem:[%s288 + $0x20] sm:$0xff] %v867
        %1124 = vst [vmem:[%s288 + $0x28] sm:$0xff] %v868
        %1125 = vst [vmem:[%s288 + $0x30] sm:$0xff] %v869
        %1126 = vst [vmem:[%s288 + $0x38] sm:$0xff] %v870
        %1127 = vst [vmem:[%s288 + $0x40] sm:$0xff] %v871
        %1128 = vst [vmem:[%s288 + $0x48] sm:$0xff] %v872
        %1129 = vst [vmem:[%s288 + $0x50] sm:$0xff] %v873
        %1130 = vst [vmem:[%s288 + $0x58] sm:$0xff] %v874
        %1131 = vst [vmem:[%s288 + $0x60] sm:$0xff] %v875
        %1132 = vst [vmem:[%s288 + $0x68] sm:$0xff] %v876
        %1133 = vst [vmem:[%s288 + $0x70] sm:$0xff] %v877
        %1134 = vst [vmem:[%s288 + $0x78] sm:$0xff] %v878
        %1135 = vst [vmem:[%s288 + $0x80] sm:$0xff] %v879
        %1136 = vst [vmem:[%s288 + $0x88] sm:$0xff] %v880
        %1137 = vst [vmem:[%s288 + $0x90] sm:$0xff] %v881
        %1138 = vst [vmem:[%s288 + $0x98] sm:$0xff] %v882
        %1139 = vst [vmem:[%s288 + $0xa0] sm:$0xff] %v883
        %1140 = vst [vmem:[%s288 + $0xa8] sm:$0xff] %v884
        %1141 = vst [vmem:[%s288 + $0xb0] sm:$0xff] %v885
        %1142 = vst [vmem:[%s288 + $0xb8] sm:$0xff] %v886
        %1143 = vst [vmem:[%s288 + $0xc0] sm:$0xff] %v887
        %1144 = vst [vmem:[%s288 + $0xc8] sm:$0xff] %v888
        %1145 = vst [vmem:[%s288 + $0xd0] sm:$0xff] %v889
        %1146 = vst [vmem:[%s288 + $0xd8] sm:$0xff] %v890
        %1147 = vst [vmem:[%s288 + $0xe0] sm:$0xff] %v891
        %1148 = vst [vmem:[%s288 + $0xe8] sm:$0xff] %v892
        %1149 = vst [vmem:[%s288 + $0xf0] sm:$0xff] %v893
        %1150 = vst [vmem:[%s288 + $0xf8] sm:$0xff] %v894
        %1151 = vst [vmem:[%s288 + $0x100] sm:$0xff] %v895
        %1152 = vst [vmem:[%s288 + $0x108] sm:$0xff] %v896
        %1153 = vst [vmem:[%s288 + $0x110] sm:$0xff] %v897
        %1154 = vst [vmem:[%s288 + $0x118] sm:$0xff] %v898
        %1155 = vst [vmem:[%s288 + $0x120] sm:$0xff] %v899
        %1156 = vst [vmem:[%s288 + $0x128] sm:$0xff] %v900
        %1157 = vst [vmem:[%s288 + $0x130] sm:$0xff] %v901
        %1158 = vst [vmem:[%s288 + $0x138] sm:$0xff] %v902
        %1159 = vst [vmem:[%s288 + $0x140] sm:$0xff] %v903
        %1160 = vst [vmem:[%s288 + $0x148] sm:$0xff] %v904
        %1161 = vst [vmem:[%s288 + $0x150] sm:$0xff] %v905
        %1162 = vst [vmem:[%s288 + $0x158] sm:$0xff] %v906
        %1163 = vst [vmem:[%s288 + $0x160] sm:$0xff] %v907
        %1164 = vst [vmem:[%s288 + $0x168] sm:$0xff] %v908
        %1165 = vst [vmem:[%s288 + $0x170] sm:$0xff] %v909
        %1166 = vst [vmem:[%s288 + $0x178] sm:$0xff] %v910
        %1167 = vst [vmem:[%s288 + $0x180] sm:$0xff] %v911
        %1168 = vst [vmem:[%s288 + $0x188] sm:$0xff] %v912
        %1169 = vst [vmem:[%s288 + $0x190] sm:$0xff] %v913
        %1170 = vst [vmem:[%s288 + $0x198] sm:$0xff] %v914
        %1171 = vst [vmem:[%s288 + $0x1a0] sm:$0xff] %v915
        %1172 = vst [vmem:[%s288 + $0x1a8] sm:$0xff] %v916
        %1173 = vst [vmem:[%s288 + $0x1b0] sm:$0xff] %v917
        %1174 = vst [vmem:[%s288 + $0x1b8] sm:$0xff] %v918
        %1175 = vst [vmem:[%s288 + $0x1c0] sm:$0xff] %v919
        %1176 = vst [vmem:[%s288 + $0x1c8] sm:$0xff] %v920
        %1177 = vst [vmem:[%s288 + $0x1d0] sm:$0xff] %v921
        %1178 = vst [vmem:[%s288 + $0x1d8] sm:$0xff] %v922
        %1179 = vst [vmem:[%s288 + $0x1e0] sm:$0xff] %v923
        %1180 = vst [vmem:[%s288 + $0x1e8] sm:$0xff] %v924
        %1181 = vst [vmem:[%s288 + $0x1f0] sm:$0xff] %v925
        %1182 = vst [vmem:[%s288 + $0x1f8] sm:$0xff] %v926
        %1183 = vst [vmem:[%s288 + $0x200] sm:$0xff] %v927
        %1184 = vst [vmem:[%s288 + $0x208] sm:$0xff] %v928
        %1185 = vst [vmem:[%s288 + $0x210] sm:$0xff] %v929
        %1186 = vst [vmem:[%s288 + $0x218] sm:$0xff] %v930
        %1187 = vst [vmem:[%s288 + $0x220] sm:$0xff] %v931
        %1188 = vst [vmem:[%s288 + $0x228] sm:$0xff] %v932
        %1189 = vst [vmem:[%s288 + $0x230] sm:$0xff] %v933
        %1190 = vst [vmem:[%s288 + $0x238] sm:$0xff] %v934
        %1191 = vst [vmem:[%s288 + $0x240] sm:$0xff] %v935
        %1192 = vst [vmem:[%s288 + $0x248] sm:$0xff] %v936
        %1193 = vst [vmem:[%s288 + $0x250] sm:$0xff] %v937
        %1194 = vst [vmem:[%s288 + $0x258] sm:$0xff] %v938
        %1195 = vst [vmem:[%s288 + $0x260] sm:$0xff] %v939
        %1196 = vst [vmem:[%s288 + $0x268] sm:$0xff] %v940
        %1197 = vst [vmem:[%s288 + $0x270] sm:$0xff] %v941
        %1198 = vst [vmem:[%s288 + $0x278] sm:$0xff] %v942
        %1199 = vst [vmem:[%s288 + $0x280] sm:$0xff] %v943
        %1200 = vst [vmem:[%s288 + $0x288] sm:$0xff] %v944
        %1201 = vst [vmem:[%s288 + $0x290] sm:$0xff] %v945
        %1202 = vst [vmem:[%s288 + $0x298] sm:$0xff] %v946
        %1203 = vst [vmem:[%s288 + $0x2a0] sm:$0xff] %v947
        %1204 = vst [vmem:[%s288 + $0x2a8] sm:$0xff] %v948
        %1205 = vst [vmem:[%s288 + $0x2b0] sm:$0xff] %v949
        %1206 = vst [vmem:[%s288 + $0x2b8] sm:$0xff] %v950
        %1207 = vst [vmem:[%s288 + $0x2c0] sm:$0xff] %v951
        %1208 = vst [vmem:[%s288 + $0x2c8] sm:$0xff] %v952
        %1209 = vst [vmem:[%s288 + $0x2d0] sm:$0xff] %v953
        %1210 = vst [vmem:[%s288 + $0x2d8] sm:$0xff] %v954
        %1211 = vst [vmem:[%s288 + $0x2e0] sm:$0xff] %v955
        %1212 = vst [vmem:[%s288 + $0x2e8] sm:$0xff] %v956
        %1213 = vst [vmem:[%s288 + $0x2f0] sm:$0xff] %v957
        %1214 = vst [vmem:[%s288 + $0x2f8] sm:$0xff] %v958
        %1215 = vst [vmem:[%s288 + $0x300] sm:$0xff] %v959
        %1216 = vst [vmem:[%s288 + $0x308] sm:$0xff] %v960
        %1217 = vst [vmem:[%s288 + $0x310] sm:$0xff] %v961
        %1218 = vst [vmem:[%s288 + $0x318] sm:$0xff] %v962
        %1219 = vst [vmem:[%s288 + $0x320] sm:$0xff] %v963
        %1220 = vst [vmem:[%s288 + $0x328] sm:$0xff] %v964
        %1221 = vst [vmem:[%s288 + $0x330] sm:$0xff] %v965
        %1222 = vst [vmem:[%s288 + $0x338] sm:$0xff] %v966
        %1223 = vst [vmem:[%s288 + $0x340] sm:$0xff] %v967
        %1224 = vst [vmem:[%s288 + $0x348] sm:$0xff] %v968
        %1225 = vst [vmem:[%s288 + $0x350] sm:$0xff] %v969
        %1226 = vst [vmem:[%s288 + $0x358] sm:$0xff] %v970
        %1227 = vst [vmem:[%s288 + $0x360] sm:$0xff] %v971
        %1228 = vst [vmem:[%s288 + $0x368] sm:$0xff] %v972
        %1229 = vst [vmem:[%s288 + $0x370] sm:$0xff] %v973
        %1230 = vst [vmem:[%s288 + $0x378] sm:$0xff] %v974
        %1231 = vst [vmem:[%s288 + $0x380] sm:$0xff] %v975
        %1232 = vst [vmem:[%s288 + $0x388] sm:$0xff] %v976
        %1233 = vst [vmem:[%s288 + $0x390] sm:$0xff] %v977
        %1234 = vst [vmem:[%s288 + $0x398] sm:$0xff] %v978
        %1235 = vst [vmem:[%s288 + $0x3a0] sm:$0xff] %v979
        %1236 = vst [vmem:[%s288 + $0x3a8] sm:$0xff] %v980
        %1237 = vst [vmem:[%s288 + $0x3b0] sm:$0xff] %v981
        %1238 = vst [vmem:[%s288 + $0x3b8] sm:$0xff] %v982
        %1239 = vst [vmem:[%s288 + $0x3c0] sm:$0xff] %v983
        %1240 = vst [vmem:[%s288 + $0x3c8] sm:$0xff] %v984
        %1241 = vst [vmem:[%s288 + $0x3d0] sm:$0xff] %v985
        %1242 = vst [vmem:[%s288 + $0x3d8] sm:$0xff] %v986
        %1243 = vst [vmem:[%s288 + $0x3e0] sm:$0xff] %v987
        %1244 = vst [vmem:[%s288 + $0x3e8] sm:$0xff] %v988
        %1245 = vst [vmem:[%s288 + $0x3f0] sm:$0xff] %v989
        %1246 = vst [vmem:[%s288 + $0x3f8] sm:$0xff] %v990
        %1247 = vst [vmem:[%s288 + $0x400] sm:$0xff] %v991
        %1248 = vst [vmem:[%s288 + $0x408] sm:$0xff] %v992
        %1249 = vst [vmem:[%s288 + $0x410] sm:$0xff] %v993
        %1250 = vst [vmem:[%s288 + $0x418] sm:$0xff] %v994
        %1251 = vst [vmem:[%s288 + $0x420] sm:$0xff] %v995
        %1252 = vst [vmem:[%s288 + $0x428] sm:$0xff] %v996
        %1253 = vst [vmem:[%s288 + $0x430] sm:$0xff] %v997
        %1254 = vst [vmem:[%s288 + $0x438] sm:$0xff] %v998
        %1255 = vst [vmem:[%s288 + $0x440] sm:$0xff] %v999
        %1256 = vst [vmem:[%s288 + $0x448] sm:$0xff] %v1000
        %1257 = vst [vmem:[%s288 + $0x450] sm:$0xff] %v1001
        %1258 = vst [vmem:[%s288 + $0x458] sm:$0xff] %v1002
        %1259 = vst [vmem:[%s288 + $0x460] sm:$0xff] %v1003
        %1260 = vst [vmem:[%s288 + $0x468] sm:$0xff] %v1004
        %1261 = vst [vmem:[%s288 + $0x470] sm:$0xff] %v1005
        %1262 = vst [vmem:[%s288 + $0x478] sm:$0xff] %v1006
        %1263 = vst [vmem:[%s288 + $0x480] sm:$0xff] %v1007
        %1264 = vst [vmem:[%s288 + $0x488] sm:$0xff] %v1008
        %1265 = vst [vmem:[%s288 + $0x490] sm:$0xff] %v1009
        %1266 = vst [vmem:[%s288 + $0x498] sm:$0xff] %v1010
        %1267 = vst [vmem:[%s288 + $0x4a0] sm:$0xff] %v1011
        %1268 = vst [vmem:[%s288 + $0x4a8] sm:$0xff] %v1012
        %1269 = vst [vmem:[%s288 + $0x4b0] sm:$0xff] %v1013
        %1270 = vst [vmem:[%s288 + $0x4b8] sm:$0xff] %v1014
        %1271 = vst [vmem:[%s288 + $0x4c0] sm:$0xff] %v1015
        %1272 = vst [vmem:[%s288 + $0x4c8] sm:$0xff] %v1016
        %1273 = vst [vmem:[%s288 + $0x4d0] sm:$0xff] %v1017
        %1274 = vst [vmem:[%s288 + $0x4d8] sm:$0xff] %v1018
        %1275 = vst [vmem:[%s288 + $0x4e0] sm:$0xff] %v1019
        %1276 = vst [vmem:[%s288 + $0x4e8] sm:$0xff] %v1020
        %1277 = vst [vmem:[%s288 + $0x4f0] sm:$0xff] %v1021
        %1278 = vst [vmem:[%s288 + $0x4f8] sm:$0xff] %v1022
        %1279 = vst [vmem:[%s288 + $0x500] sm:$0xff] %v1023
        %1280 = vst [vmem:[%s288 + $0x508] sm:$0xff] %v1024
        %1281 = vst [vmem:[%s288 + $0x510] sm:$0xff] %v1025
        %1282 = vst [vmem:[%s288 + $0x518] sm:$0xff] %v1026
        %1283 = vst [vmem:[%s288 + $0x520] sm:$0xff] %v1027
        %1284 = vst [vmem:[%s288 + $0x528] sm:$0xff] %v1028
        %1285 = vst [vmem:[%s288 + $0x530] sm:$0xff] %v1029
        %1286 = vst [vmem:[%s288 + $0x538] sm:$0xff] %v1030
        %1287 = vst [vmem:[%s288 + $0x540] sm:$0xff] %v1031
        %1288 = vst [vmem:[%s288 + $0x548] sm:$0xff] %v1032
        %1289 = vst [vmem:[%s288 + $0x550] sm:$0xff] %v1033
        %1290 = vst [vmem:[%s288 + $0x558] sm:$0xff] %v1034
        %1291 = vst [vmem:[%s288 + $0x560] sm:$0xff] %v1035
        %1292 = vst [vmem:[%s288 + $0x568] sm:$0xff] %v1036
        %1293 = vst [vmem:[%s288 + $0x570] sm:$0xff] %v1037
        %1294 = vst [vmem:[%s288 + $0x578] sm:$0xff] %v1038
        %1295 = vst [vmem:[%s288 + $0x580] sm:$0xff] %v1039
        %1296 = vst [vmem:[%s288 + $0x588] sm:$0xff] %v1040
        %1297 = vst [vmem:[%s288 + $0x590] sm:$0xff] %v1041
        %1298 = vst [vmem:[%s288 + $0x598] sm:$0xff] %v1042
        %1299 = vst [vmem:[%s288 + $0x5a0] sm:$0xff] %v1043
        %1300 = vst [vmem:[%s288 + $0x5a8] sm:$0xff] %v1044
        %1301 = vst [vmem:[%s288 + $0x5b0] sm:$0xff] %v1045
        %1302 = vst [vmem:[%s288 + $0x5b8] sm:$0xff] %v1046
        %1303 = vst [vmem:[%s288 + $0x5c0] sm:$0xff] %v1047
        %1304 = vst [vmem:[%s288 + $0x5c8] sm:$0xff] %v1048
        %1305 = vst [vmem:[%s288 + $0x5d0] sm:$0xff] %v1049
        %1306 = vst [vmem:[%s288 + $0x5d8] sm:$0xff] %v1050
        %1307 = vst [vmem:[%s288 + $0x5e0] sm:$0xff] %v1051
        %1308 = vst [vmem:[%s288 + $0x5e8] sm:$0xff] %v1052
        %1309 = vst [vmem:[%s288 + $0x5f0] sm:$0xff] %v1053
        %1310 = vst [vmem:[%s288 + $0x5f8] sm:$0xff] %v1054
        %1311 = vst [vmem:[%s288 + $0x600] sm:$0xff] %v1055
        %1312 = vst [vmem:[%s288 + $0x608] sm:$0xff] %v1056
        %1313 = vst [vmem:[%s288 + $0x610] sm:$0xff] %v1057
        %1314 = vst [vmem:[%s288 + $0x618] sm:$0xff] %v1058
        %1315 = vst [vmem:[%s288 + $0x620] sm:$0xff] %v1059
        %1316 = vst [vmem:[%s288 + $0x628] sm:$0xff] %v1060
        %1317 = vst [vmem:[%s288 + $0x630] sm:$0xff] %v1061
        %1318 = vst [vmem:[%s288 + $0x638] sm:$0xff] %v1062
        %1319 = vst [vmem:[%s288 + $0x640] sm:$0xff] %v1063
        %1320 = vst [vmem:[%s288 + $0x648] sm:$0xff] %v1064
        %1321 = vst [vmem:[%s288 + $0x650] sm:$0xff] %v1065
        %1322 = vst [vmem:[%s288 + $0x658] sm:$0xff] %v1066
        %1323 = vst [vmem:[%s288 + $0x660] sm:$0xff] %v1067
        %1324 = vst [vmem:[%s288 + $0x668] sm:$0xff] %v1068
        %1325 = vst [vmem:[%s288 + $0x670] sm:$0xff] %v1069
        %1326 = vst [vmem:[%s288 + $0x678] sm:$0xff] %v1070
        %1327 = vst [vmem:[%s288 + $0x680] sm:$0xff] %v1071
        %1328 = vst [vmem:[%s288 + $0x688] sm:$0xff] %v1072
        %1329 = vst [vmem:[%s288 + $0x690] sm:$0xff] %v1073
        %1330 = vst [vmem:[%s288 + $0x698] sm:$0xff] %v1074
        %1331 = vst [vmem:[%s288 + $0x6a0] sm:$0xff] %v1075
        %1332 = vst [vmem:[%s288 + $0x6a8] sm:$0xff] %v1076
        %1333 = vst [vmem:[%s288 + $0x6b0] sm:$0xff] %v1077
        %1334 = vst [vmem:[%s288 + $0x6b8] sm:$0xff] %v1078
        %1335 = vst [vmem:[%s288 + $0x6c0] sm:$0xff] %v1079
        %1336 = vst [vmem:[%s288 + $0x6c8] sm:$0xff] %v1080
        %1337 = vst [vmem:[%s288 + $0x6d0] sm:$0xff] %v1081
        %1338 = vst [vmem:[%s288 + $0x6d8] sm:$0xff] %v1082
        %1339 = vst [vmem:[%s288 + $0x6e0] sm:$0xff] %v1083
        %1340 = vst [vmem:[%s288 + $0x6e8] sm:$0xff] %v1084
        %1341 = vst [vmem:[%s288 + $0x6f0] sm:$0xff] %v1085
        %1342 = vst [vmem:[%s288 + $0x6f8] sm:$0xff] %v1086
        %1343 = vst [vmem:[%s288 + $0x700] sm:$0xff] %v1087
        %1344 = vst [vmem:[%s288 + $0x708] sm:$0xff] %v1088
        %1345 = vst [vmem:[%s288 + $0x710] sm:$0xff] %v1089
        %1346 = vst [vmem:[%s288 + $0x718] sm:$0xff] %v1090
        %1347 = vst [vmem:[%s288 + $0x720] sm:$0xff] %v1091
        %1348 = vst [vmem:[%s288 + $0x728] sm:$0xff] %v1092
        %1349 = vst [vmem:[%s288 + $0x730] sm:$0xff] %v1093
        %1350 = vst [vmem:[%s288 + $0x738] sm:$0xff] %v1094
        %1351 = vst [vmem:[%s288 + $0x740] sm:$0xff] %v1095
        %1352 = vst [vmem:[%s288 + $0x748] sm:$0xff] %v1096
        %1353 = vst [vmem:[%s288 + $0x750] sm:$0xff] %v1097
        %1354 = vst [vmem:[%s288 + $0x758] sm:$0xff] %v1098
        %1355 = vst [vmem:[%s288 + $0x760] sm:$0xff] %v1099
        %1356 = vst [vmem:[%s288 + $0x768] sm:$0xff] %v1100
        %1357 = vst [vmem:[%s288 + $0x770] sm:$0xff] %v1101
        %1358 = vst [vmem:[%s288 + $0x778] sm:$0xff] %v1102
        %1359 = vst [vmem:[%s288 + $0x780] sm:$0xff] %v1103
        %1360 = vst [vmem:[%s288 + $0x788] sm:$0xff] %v1104
        %1361 = vst [vmem:[%s288 + $0x790] sm:$0xff] %v1105
        %1362 = vst [vmem:[%s288 + $0x798] sm:$0xff] %v1106
        %1363 = vst [vmem:[%s288 + $0x7a0] sm:$0xff] %v1107
        %1364 = vst [vmem:[%s288 + $0x7a8] sm:$0xff] %v1108
        %1365 = vst [vmem:[%s288 + $0x7b0] sm:$0xff] %v1109
        %1366 = vst [vmem:[%s288 + $0x7b8] sm:$0xff] %v1110
        %1367 = vst [vmem:[%s288 + $0x7c0] sm:$0xff] %v1111
        %1368 = vst [vmem:[%s288 + $0x7c8] sm:$0xff] %v1112
        %1369 = vst [vmem:[%s288 + $0x7d0] sm:$0xff] %v1113
        %1370 = vst [vmem:[%s288 + $0x7d8] sm:$0xff] %v1114
        %1371 = vst [vmem:[%s288 + $0x7e0] sm:$0xff] %v1115
        %1372 = vst [vmem:[%s288 + $0x7e8] sm:$0xff] %v1116
        %1373 = vst [vmem:[%s288 + $0x7f0] sm:$0xff] %v1117
        %1374 = vst [vmem:[%s288 + $0x7f8] sm:$0xff] %v1118
        %v1375 = vmul.f32 %v315, %v315
        %v1376 = vmul.f32 %v316, %v316
        %v1377 = vmul.f32 %v317, %v317
        %v1378 = vmul.f32 %v318, %v318
        %v1379 = vmul.f32 %v319, %v319
        %v1380 = vmul.f32 %v320, %v320
        %v1381 = vmul.f32 %v321, %v321
        %v1382 = vmul.f32 %v322, %v322
        %v1383 = vmul.f32 %v323, %v323
        %v1384 = vmul.f32 %v324, %v324
        %v1385 = vmul.f32 %v325, %v325
        %v1386 = vmul.f32 %v326, %v326
        %v1387 = vmul.f32 %v327, %v327
        %v1388 = vmul.f32 %v328, %v328
        %v1389 = vmul.f32 %v329, %v329
        %v1390 = vmul.f32 %v330, %v330
        %v1391 = vmul.f32 %v331, %v331
        %v1392 = vmul.f32 %v332, %v332
        %v1393 = vmul.f32 %v333, %v333
        %v1394 = vmul.f32 %v334, %v334
        %v1395 = vmul.f32 %v335, %v335
        %v1396 = vmul.f32 %v336, %v336
        %v1397 = vmul.f32 %v337, %v337
        %v1398 = vmul.f32 %v338, %v338
        %v1399 = vmul.f32 %v339, %v339
        %v1400 = vmul.f32 %v340, %v340
        %v1401 = vmul.f32 %v341, %v341
        %v1402 = vmul.f32 %v342, %v342
        %v1403 = vmul.f32 %v343, %v343
        %v1404 = vmul.f32 %v344, %v344
        %v1405 = vmul.f32 %v345, %v345
        %v1406 = vmul.f32 %v346, %v346
        %v1407 = vmul.f32 %v347, %v347
        %v1408 = vmul.f32 %v348, %v348
        %v1409 = vmul.f32 %v349, %v349
        %v1410 = vmul.f32 %v350, %v350
        %v1411 = vmul.f32 %v351, %v351
        %v1412 = vmul.f32 %v352, %v352
        %v1413 = vmul.f32 %v353, %v353
        %v1414 = vmul.f32 %v354, %v354
        %v1415 = vmul.f32 %v355, %v355
        %v1416 = vmul.f32 %v356, %v356
        %v1417 = vmul.f32 %v357, %v357
        %v1418 = vmul.f32 %v358, %v358
        %v1419 = vmul.f32 %v359, %v359
        %v1420 = vmul.f32 %v360, %v360
        %v1421 = vmul.f32 %v361, %v361
        %v1422 = vmul.f32 %v362, %v362
        %v1423 = vmul.f32 %v363, %v363
        %v1424 = vmul.f32 %v364, %v364
        %v1425 = vmul.f32 %v365, %v365
        %v1426 = vmul.f32 %v366, %v366
        %v1427 = vmul.f32 %v367, %v367
        %v1428 = vmul.f32 %v368, %v368
        %v1429 = vmul.f32 %v369, %v369
        %v1430 = vmul.f32 %v370, %v370
        %v1431 = vmul.f32 %v371, %v371
        %v1432 = vmul.f32 %v372, %v372
        %v1433 = vmul.f32 %v373, %v373
        %v1434 = vmul.f32 %v374, %v374
        %v1435 = vmul.f32 %v375, %v375
        %v1436 = vmul.f32 %v376, %v376
        %v1437 = vmul.f32 %v377, %v377
        %v1438 = vmul.f32 %v378, %v378
        %v1439 = vmul.f32 %v379, %v379
        %v1440 = vmul.f32 %v380, %v380
        %v1441 = vmul.f32 %v381, %v381
        %v1442 = vmul.f32 %v382, %v382
        %v1443 = vmul.f32 %v383, %v383
        %v1444 = vmul.f32 %v384, %v384
        %v1445 = vmul.f32 %v385, %v385
        %v1446 = vmul.f32 %v386, %v386
        %v1447 = vmul.f32 %v387, %v387
        %v1448 = vmul.f32 %v388, %v388
        %v1449 = vmul.f32 %v389, %v389
        %v1450 = vmul.f32 %v390, %v390
        %v1451 = vmul.f32 %v391, %v391
        %v1452 = vmul.f32 %v392, %v392
        %v1453 = vmul.f32 %v393, %v393
        %v1454 = vmul.f32 %v394, %v394
        %v1455 = vmul.f32 %v395, %v395
        %v1456 = vmul.f32 %v396, %v396
        %v1457 = vmul.f32 %v397, %v397
        %v1458 = vmul.f32 %v398, %v398
        %v1459 = vmul.f32 %v399, %v399
        %v1460 = vmul.f32 %v400, %v400
        %v1461 = vmul.f32 %v401, %v401
        %v1462 = vmul.f32 %v402, %v402
        %v1463 = vmul.f32 %v403, %v403
        %v1464 = vmul.f32 %v404, %v404
        %v1465 = vmul.f32 %v405, %v405
        %v1466 = vmul.f32 %v406, %v406
        %v1467 = vmul.f32 %v407, %v407
        %v1468 = vmul.f32 %v408, %v408
        %v1469 = vmul.f32 %v409, %v409
        %v1470 = vmul.f32 %v410, %v410
        %v1471 = vmul.f32 %v411, %v411
        %v1472 = vmul.f32 %v412, %v412
        %v1473 = vmul.f32 %v413, %v413
        %v1474 = vmul.f32 %v414, %v414
        %v1475 = vmul.f32 %v415, %v415
        %v1476 = vmul.f32 %v416, %v416
        %v1477 = vmul.f32 %v417, %v417
        %v1478 = vmul.f32 %v418, %v418
        %v1479 = vmul.f32 %v419, %v419
        %v1480 = vmul.f32 %v420, %v420
        %v1481 = vmul.f32 %v421, %v421
        %v1482 = vmul.f32 %v422, %v422
        %v1483 = vmul.f32 %v423, %v423
        %v1484 = vmul.f32 %v424, %v424
        %v1485 = vmul.f32 %v425, %v425
        %v1486 = vmul.f32 %v426, %v426
        %v1487 = vmul.f32 %v427, %v427
        %v1488 = vmul.f32 %v428, %v428
        %v1489 = vmul.f32 %v429, %v429
        %v1490 = vmul.f32 %v430, %v430
        %v1491 = vmul.f32 %v431, %v431
        %v1492 = vmul.f32 %v432, %v432
        %v1493 = vmul.f32 %v433, %v433
        %v1494 = vmul.f32 %v434, %v434
        %v1495 = vmul.f32 %v435, %v435
        %v1496 = vmul.f32 %v436, %v436
        %v1497 = vmul.f32 %v437, %v437
        %v1498 = vmul.f32 %v438, %v438
        %v1499 = vmul.f32 %v439, %v439
        %v1500 = vmul.f32 %v440, %v440
        %v1501 = vmul.f32 %v441, %v441
        %v1502 = vmul.f32 %v442, %v442
        %v1503 = vmul.f32 %v443, %v443
        %v1504 = vmul.f32 %v444, %v444
        %v1505 = vmul.f32 %v445, %v445
        %v1506 = vmul.f32 %v446, %v446
        %v1507 = vmul.f32 %v447, %v447
        %v1508 = vmul.f32 %v448, %v448
        %v1509 = vmul.f32 %v449, %v449
        %v1510 = vmul.f32 %v450, %v450
        %v1511 = vmul.f32 %v451, %v451
        %v1512 = vmul.f32 %v452, %v452
        %v1513 = vmul.f32 %v453, %v453
        %v1514 = vmul.f32 %v454, %v454
        %v1515 = vmul.f32 %v455, %v455
        %v1516 = vmul.f32 %v456, %v456
        %v1517 = vmul.f32 %v457, %v457
        %v1518 = vmul.f32 %v458, %v458
        %v1519 = vmul.f32 %v459, %v459
        %v1520 = vmul.f32 %v460, %v460
        %v1521 = vmul.f32 %v461, %v461
        %v1522 = vmul.f32 %v462, %v462
        %v1523 = vmul.f32 %v463, %v463
        %v1524 = vmul.f32 %v464, %v464
        %v1525 = vmul.f32 %v465, %v465
        %v1526 = vmul.f32 %v466, %v466
        %v1527 = vmul.f32 %v467, %v467
        %v1528 = vmul.f32 %v468, %v468
        %v1529 = vmul.f32 %v469, %v469
        %v1530 = vmul.f32 %v470, %v470
        %v1531 = vmul.f32 %v471, %v471
        %v1532 = vmul.f32 %v472, %v472
        %v1533 = vmul.f32 %v473, %v473
        %v1534 = vmul.f32 %v474, %v474
        %v1535 = vmul.f32 %v475, %v475
        %v1536 = vmul.f32 %v476, %v476
        %v1537 = vmul.f32 %v477, %v477
        %v1538 = vmul.f32 %v478, %v478
        %v1539 = vmul.f32 %v479, %v479
        %v1540 = vmul.f32 %v480, %v480
        %v1541 = vmul.f32 %v481, %v481
        %v1542 = vmul.f32 %v482, %v482
        %v1543 = vmul.f32 %v483, %v483
        %v1544 = vmul.f32 %v484, %v484
        %v1545 = vmul.f32 %v485, %v485
        %v1546 = vmul.f32 %v486, %v486
        %v1547 = vmul.f32 %v487, %v487
        %v1548 = vmul.f32 %v488, %v488
        %v1549 = vmul.f32 %v489, %v489
        %v1550 = vmul.f32 %v490, %v490
        %v1551 = vmul.f32 %v491, %v491
        %v1552 = vmul.f32 %v492, %v492
        %v1553 = vmul.f32 %v493, %v493
        %v1554 = vmul.f32 %v494, %v494
        %v1555 = vmul.f32 %v495, %v495
        %v1556 = vmul.f32 %v496, %v496
        %v1557 = vmul.f32 %v497, %v497
        %v1558 = vmul.f32 %v498, %v498
        %v1559 = vmul.f32 %v499, %v499
        %v1560 = vmul.f32 %v500, %v500
        %v1561 = vmul.f32 %v501, %v501
        %v1562 = vmul.f32 %v502, %v502
        %v1563 = vmul.f32 %v503, %v503
        %v1564 = vmul.f32 %v504, %v504
        %v1565 = vmul.f32 %v505, %v505
        %v1566 = vmul.f32 %v506, %v506
        %v1567 = vmul.f32 %v507, %v507
        %v1568 = vmul.f32 %v508, %v508
        %v1569 = vmul.f32 %v509, %v509
        %v1570 = vmul.f32 %v510, %v510
        %v1571 = vmul.f32 %v511, %v511
        %v1572 = vmul.f32 %v512, %v512
        %v1573 = vmul.f32 %v513, %v513
        %v1574 = vmul.f32 %v514, %v514
        %v1575 = vmul.f32 %v515, %v515
        %v1576 = vmul.f32 %v516, %v516
        %v1577 = vmul.f32 %v517, %v517
        %v1578 = vmul.f32 %v518, %v518
        %v1579 = vmul.f32 %v519, %v519
        %v1580 = vmul.f32 %v520, %v520
        %v1581 = vmul.f32 %v521, %v521
        %v1582 = vmul.f32 %v522, %v522
        %v1583 = vmul.f32 %v523, %v523
        %v1584 = vmul.f32 %v524, %v524
        %v1585 = vmul.f32 %v525, %v525
        %v1586 = vmul.f32 %v526, %v526
        %v1587 = vmul.f32 %v527, %v527
        %v1588 = vmul.f32 %v528, %v528
        %v1589 = vmul.f32 %v529, %v529
        %v1590 = vmul.f32 %v530, %v530
        %v1591 = vmul.f32 %v531, %v531
        %v1592 = vmul.f32 %v532, %v532
        %v1593 = vmul.f32 %v533, %v533
        %v1594 = vmul.f32 %v534, %v534
        %v1595 = vmul.f32 %v535, %v535
        %v1596 = vmul.f32 %v536, %v536
        %v1597 = vmul.f32 %v537, %v537
        %v1598 = vmul.f32 %v538, %v538
        %v1599 = vmul.f32 %v539, %v539
        %v1600 = vmul.f32 %v540, %v540
        %v1601 = vmul.f32 %v541, %v541
        %v1602 = vmul.f32 %v542, %v542
        %v1603 = vmul.f32 %v543, %v543
        %v1604 = vmul.f32 %v544, %v544
        %v1605 = vmul.f32 %v545, %v545
        %v1606 = vmul.f32 %v546, %v546
        %v1607 = vmul.f32 %v547, %v547
        %v1608 = vmul.f32 %v548, %v548
        %v1609 = vmul.f32 %v549, %v549
        %v1610 = vmul.f32 %v550, %v550
        %v1611 = vmul.f32 %v551, %v551
        %v1612 = vmul.f32 %v552, %v552
        %v1613 = vmul.f32 %v553, %v553
        %v1614 = vmul.f32 %v554, %v554
        %v1615 = vmul.f32 %v555, %v555
        %v1616 = vmul.f32 %v556, %v556
        %v1617 = vmul.f32 %v557, %v557
        %v1618 = vmul.f32 %v558, %v558
        %v1619 = vmul.f32 %v559, %v559
        %v1620 = vmul.f32 %v560, %v560
        %v1621 = vmul.f32 %v561, %v561
        %v1622 = vmul.f32 %v562, %v562
        %v1623 = vmul.f32 %v563, %v563
        %v1624 = vmul.f32 %v564, %v564
        %v1625 = vmul.f32 %v565, %v565
        %v1626 = vmul.f32 %v566, %v566
        %v1627 = vmul.f32 %v567, %v567
        %v1628 = vmul.f32 %v568, %v568
        %v1629 = vmul.f32 %v569, %v569
        %v1630 = vmul.f32 %v570, %v570
        %v1631 = vadd.f32 %v1375, %v1376
        %v1632 = vadd.f32 %v1631, %v1377
        %v1633 = vadd.f32 %v1632, %v1378
        %v1634 = vadd.f32 %v1633, %v1379
        %v1635 = vadd.f32 %v1634, %v1380
        %v1636 = vadd.f32 %v1635, %v1381
        %v1637 = vadd.f32 %v1636, %v1382
        %1638 = vadd.xlane.f32.xlu0 %v1637
        %v1639 = vpop.xlane.xlu0 %1638
        %v1640 = vadd.f32 %v1383, %v1384
        %v1641 = vadd.f32 %v1640, %v1385
        %v1642 = vadd.f32 %v1641, %v1386
        %v1643 = vadd.f32 %v1642, %v1387
        %v1644 = vadd.f32 %v1643, %v1388
        %v1645 = vadd.f32 %v1644, %v1389
        %v1646 = vadd.f32 %v1645, %v1390
        %1647 = vadd.xlane.f32.xlu0 %v1646
        %v1648 = vpop.xlane.xlu0 %1647
        %v1649 = vadd.f32 %v1391, %v1392
        %v1650 = vadd.f32 %v1649, %v1393
        %v1651 = vadd.f32 %v1650, %v1394
        %v1652 = vadd.f32 %v1651, %v1395
        %v1653 = vadd.f32 %v1652, %v1396
        %v1654 = vadd.f32 %v1653, %v1397
        %v1655 = vadd.f32 %v1654, %v1398
        %1656 = vadd.xlane.f32.xlu0 %v1655
        %v1657 = vpop.xlane.xlu0 %1656
        %v1658 = vadd.f32 %v1399, %v1400
        %v1659 = vadd.f32 %v1658, %v1401
        %v1660 = vadd.f32 %v1659, %v1402
        %v1661 = vadd.f32 %v1660, %v1403
        %v1662 = vadd.f32 %v1661, %v1404
        %v1663 = vadd.f32 %v1662, %v1405
        %v1664 = vadd.f32 %v1663, %v1406
        %1665 = vadd.xlane.f32.xlu0 %v1664
        %v1666 = vpop.xlane.xlu0 %1665
        %v1667 = vadd.f32 %v1407, %v1408
        %v1668 = vadd.f32 %v1667, %v1409
        %v1669 = vadd.f32 %v1668, %v1410
        %v1670 = vadd.f32 %v1669, %v1411
        %v1671 = vadd.f32 %v1670, %v1412
        %v1672 = vadd.f32 %v1671, %v1413
        %v1673 = vadd.f32 %v1672, %v1414
        %1674 = vadd.xlane.f32.xlu0 %v1673
        %v1675 = vpop.xlane.xlu0 %1674
        %v1676 = vadd.f32 %v1415, %v1416
        %v1677 = vadd.f32 %v1676, %v1417
        %v1678 = vadd.f32 %v1677, %v1418
        %v1679 = vadd.f32 %v1678, %v1419
        %v1680 = vadd.f32 %v1679, %v1420
        %v1681 = vadd.f32 %v1680, %v1421
        %v1682 = vadd.f32 %v1681, %v1422
        %1683 = vadd.xlane.f32.xlu0 %v1682
        %v1684 = vpop.xlane.xlu0 %1683
        %v1685 = vadd.f32 %v1423, %v1424
        %v1686 = vadd.f32 %v1685, %v1425
        %v1687 = vadd.f32 %v1686, %v1426
        %v1688 = vadd.f32 %v1687, %v1427
        %v1689 = vadd.f32 %v1688, %v1428
        %v1690 = vadd.f32 %v1689, %v1429
        %v1691 = vadd.f32 %v1690, %v1430
        %1692 = vadd.xlane.f32.xlu0 %v1691
        %v1693 = vpop.xlane.xlu0 %1692
        %v1694 = vadd.f32 %v1431, %v1432
        %v1695 = vadd.f32 %v1694, %v1433
        %v1696 = vadd.f32 %v1695, %v1434
        %v1697 = vadd.f32 %v1696, %v1435
        %v1698 = vadd.f32 %v1697, %v1436
        %v1699 = vadd.f32 %v1698, %v1437
        %v1700 = vadd.f32 %v1699, %v1438
        %1701 = vadd.xlane.f32.xlu0 %v1700
        %v1702 = vpop.xlane.xlu0 %1701
        %v1703 = vadd.f32 %v1439, %v1440
        %v1704 = vadd.f32 %v1703, %v1441
        %v1705 = vadd.f32 %v1704, %v1442
        %v1706 = vadd.f32 %v1705, %v1443
        %v1707 = vadd.f32 %v1706, %v1444
        %v1708 = vadd.f32 %v1707, %v1445
        %v1709 = vadd.f32 %v1708, %v1446
        %1710 = vadd.xlane.f32.xlu0 %v1709
        %v1711 = vpop.xlane.xlu0 %1710
        %v1712 = vadd.f32 %v1447, %v1448
        %v1713 = vadd.f32 %v1712, %v1449
        %v1714 = vadd.f32 %v1713, %v1450
        %v1715 = vadd.f32 %v1714, %v1451
        %v1716 = vadd.f32 %v1715, %v1452
        %v1717 = vadd.f32 %v1716, %v1453
        %v1718 = vadd.f32 %v1717, %v1454
        %1719 = vadd.xlane.f32.xlu0 %v1718
        %v1720 = vpop.xlane.xlu0 %1719
        %v1721 = vadd.f32 %v1455, %v1456
        %v1722 = vadd.f32 %v1721, %v1457
        %v1723 = vadd.f32 %v1722, %v1458
        %v1724 = vadd.f32 %v1723, %v1459
        %v1725 = vadd.f32 %v1724, %v1460
        %v1726 = vadd.f32 %v1725, %v1461
        %v1727 = vadd.f32 %v1726, %v1462
        %1728 = vadd.xlane.f32.xlu0 %v1727
        %v1729 = vpop.xlane.xlu0 %1728
        %v1730 = vadd.f32 %v1463, %v1464
        %v1731 = vadd.f32 %v1730, %v1465
        %v1732 = vadd.f32 %v1731, %v1466
        %v1733 = vadd.f32 %v1732, %v1467
        %v1734 = vadd.f32 %v1733, %v1468
        %v1735 = vadd.f32 %v1734, %v1469
        %v1736 = vadd.f32 %v1735, %v1470
        %1737 = vadd.xlane.f32.xlu0 %v1736
        %v1738 = vpop.xlane.xlu0 %1737
        %v1739 = vadd.f32 %v1471, %v1472
        %v1740 = vadd.f32 %v1739, %v1473
        %v1741 = vadd.f32 %v1740, %v1474
        %v1742 = vadd.f32 %v1741, %v1475
        %v1743 = vadd.f32 %v1742, %v1476
        %v1744 = vadd.f32 %v1743, %v1477
        %v1745 = vadd.f32 %v1744, %v1478
        %1746 = vadd.xlane.f32.xlu0 %v1745
        %v1747 = vpop.xlane.xlu0 %1746
        %v1748 = vadd.f32 %v1479, %v1480
        %v1749 = vadd.f32 %v1748, %v1481
        %v1750 = vadd.f32 %v1749, %v1482
        %v1751 = vadd.f32 %v1750, %v1483
        %v1752 = vadd.f32 %v1751, %v1484
        %v1753 = vadd.f32 %v1752, %v1485
        %v1754 = vadd.f32 %v1753, %v1486
        %1755 = vadd.xlane.f32.xlu0 %v1754
        %v1756 = vpop.xlane.xlu0 %1755
        %v1757 = vadd.f32 %v1487, %v1488
        %v1758 = vadd.f32 %v1757, %v1489
        %v1759 = vadd.f32 %v1758, %v1490
        %v1760 = vadd.f32 %v1759, %v1491
        %v1761 = vadd.f32 %v1760, %v1492
        %v1762 = vadd.f32 %v1761, %v1493
        %v1763 = vadd.f32 %v1762, %v1494
        %1764 = vadd.xlane.f32.xlu0 %v1763
        %v1765 = vpop.xlane.xlu0 %1764
        %v1766 = vadd.f32 %v1495, %v1496
        %v1767 = vadd.f32 %v1766, %v1497
        %v1768 = vadd.f32 %v1767, %v1498
        %v1769 = vadd.f32 %v1768, %v1499
        %v1770 = vadd.f32 %v1769, %v1500
        %v1771 = vadd.f32 %v1770, %v1501
        %v1772 = vadd.f32 %v1771, %v1502
        %1773 = vadd.xlane.f32.xlu0 %v1772
        %v1774 = vpop.xlane.xlu0 %1773
        %v1775 = vadd.f32 %v1503, %v1504
        %v1776 = vadd.f32 %v1775, %v1505
        %v1777 = vadd.f32 %v1776, %v1506
        %v1778 = vadd.f32 %v1777, %v1507
        %v1779 = vadd.f32 %v1778, %v1508
        %v1780 = vadd.f32 %v1779, %v1509
        %v1781 = vadd.f32 %v1780, %v1510
        %1782 = vadd.xlane.f32.xlu0 %v1781
        %v1783 = vpop.xlane.xlu0 %1782
        %v1784 = vadd.f32 %v1511, %v1512
        %v1785 = vadd.f32 %v1784, %v1513
        %v1786 = vadd.f32 %v1785, %v1514
        %v1787 = vadd.f32 %v1786, %v1515
        %v1788 = vadd.f32 %v1787, %v1516
        %v1789 = vadd.f32 %v1788, %v1517
        %v1790 = vadd.f32 %v1789, %v1518
        %1791 = vadd.xlane.f32.xlu0 %v1790
        %v1792 = vpop.xlane.xlu0 %1791
        %v1793 = vadd.f32 %v1519, %v1520
        %v1794 = vadd.f32 %v1793, %v1521
        %v1795 = vadd.f32 %v1794, %v1522
        %v1796 = vadd.f32 %v1795, %v1523
        %v1797 = vadd.f32 %v1796, %v1524
        %v1798 = vadd.f32 %v1797, %v1525
        %v1799 = vadd.f32 %v1798, %v1526
        %1800 = vadd.xlane.f32.xlu0 %v1799
        %v1801 = vpop.xlane.xlu0 %1800
        %v1802 = vadd.f32 %v1527, %v1528
        %v1803 = vadd.f32 %v1802, %v1529
        %v1804 = vadd.f32 %v1803, %v1530
        %v1805 = vadd.f32 %v1804, %v1531
        %v1806 = vadd.f32 %v1805, %v1532
        %v1807 = vadd.f32 %v1806, %v1533
        %v1808 = vadd.f32 %v1807, %v1534
        %1809 = vadd.xlane.f32.xlu0 %v1808
        %v1810 = vpop.xlane.xlu0 %1809
        %v1811 = vadd.f32 %v1535, %v1536
        %v1812 = vadd.f32 %v1811, %v1537
        %v1813 = vadd.f32 %v1812, %v1538
        %v1814 = vadd.f32 %v1813, %v1539
        %v1815 = vadd.f32 %v1814, %v1540
        %v1816 = vadd.f32 %v1815, %v1541
        %v1817 = vadd.f32 %v1816, %v1542
        %1818 = vadd.xlane.f32.xlu0 %v1817
        %v1819 = vpop.xlane.xlu0 %1818
        %v1820 = vadd.f32 %v1543, %v1544
        %v1821 = vadd.f32 %v1820, %v1545
        %v1822 = vadd.f32 %v1821, %v1546
        %v1823 = vadd.f32 %v1822, %v1547
        %v1824 = vadd.f32 %v1823, %v1548
        %v1825 = vadd.f32 %v1824, %v1549
        %v1826 = vadd.f32 %v1825, %v1550
        %1827 = vadd.xlane.f32.xlu0 %v1826
        %v1828 = vpop.xlane.xlu0 %1827
        %v1829 = vadd.f32 %v1551, %v1552
        %v1830 = vadd.f32 %v1829, %v1553
        %v1831 = vadd.f32 %v1830, %v1554
        %v1832 = vadd.f32 %v1831, %v1555
        %v1833 = vadd.f32 %v1832, %v1556
        %v1834 = vadd.f32 %v1833, %v1557
        %v1835 = vadd.f32 %v1834, %v1558
        %1836 = vadd.xlane.f32.xlu0 %v1835
        %v1837 = vpop.xlane.xlu0 %1836
        %v1838 = vadd.f32 %v1559, %v1560
        %v1839 = vadd.f32 %v1838, %v1561
        %v1840 = vadd.f32 %v1839, %v1562
        %v1841 = vadd.f32 %v1840, %v1563
        %v1842 = vadd.f32 %v1841, %v1564
        %v1843 = vadd.f32 %v1842, %v1565
        %v1844 = vadd.f32 %v1843, %v1566
        %1845 = vadd.xlane.f32.xlu0 %v1844
        %v1846 = vpop.xlane.xlu0 %1845
        %v1847 = vadd.f32 %v1567, %v1568
        %v1848 = vadd.f32 %v1847, %v1569
        %v1849 = vadd.f32 %v1848, %v1570
        %v1850 = vadd.f32 %v1849, %v1571
        %v1851 = vadd.f32 %v1850, %v1572
        %v1852 = vadd.f32 %v1851, %v1573
        %v1853 = vadd.f32 %v1852, %v1574
        %1854 = vadd.xlane.f32.xlu0 %v1853
        %v1855 = vpop.xlane.xlu0 %1854
        %v1856 = vadd.f32 %v1575, %v1576
        %v1857 = vadd.f32 %v1856, %v1577
        %v1858 = vadd.f32 %v1857, %v1578
        %v1859 = vadd.f32 %v1858, %v1579
        %v1860 = vadd.f32 %v1859, %v1580
        %v1861 = vadd.f32 %v1860, %v1581
        %v1862 = vadd.f32 %v1861, %v1582
        %1863 = vadd.xlane.f32.xlu0 %v1862
        %v1864 = vpop.xlane.xlu0 %1863
        %v1865 = vadd.f32 %v1583, %v1584
        %v1866 = vadd.f32 %v1865, %v1585
        %v1867 = vadd.f32 %v1866, %v1586
        %v1868 = vadd.f32 %v1867, %v1587
        %v1869 = vadd.f32 %v1868, %v1588
        %v1870 = vadd.f32 %v1869, %v1589
        %v1871 = vadd.f32 %v1870, %v1590
        %1872 = vadd.xlane.f32.xlu0 %v1871
        %v1873 = vpop.xlane.xlu0 %1872
        %v1874 = vadd.f32 %v1591, %v1592
        %v1875 = vadd.f32 %v1874, %v1593
        %v1876 = vadd.f32 %v1875, %v1594
        %v1877 = vadd.f32 %v1876, %v1595
        %v1878 = vadd.f32 %v1877, %v1596
        %v1879 = vadd.f32 %v1878, %v1597
        %v1880 = vadd.f32 %v1879, %v1598
        %1881 = vadd.xlane.f32.xlu0 %v1880
        %v1882 = vpop.xlane.xlu0 %1881
        %v1883 = vadd.f32 %v1599, %v1600
        %v1884 = vadd.f32 %v1883, %v1601
        %v1885 = vadd.f32 %v1884, %v1602
        %v1886 = vadd.f32 %v1885, %v1603
        %v1887 = vadd.f32 %v1886, %v1604
        %v1888 = vadd.f32 %v1887, %v1605
        %v1889 = vadd.f32 %v1888, %v1606
        %1890 = vadd.xlane.f32.xlu0 %v1889
        %v1891 = vpop.xlane.xlu0 %1890
        %v1892 = vadd.f32 %v1607, %v1608
        %v1893 = vadd.f32 %v1892, %v1609
        %v1894 = vadd.f32 %v1893, %v1610
        %v1895 = vadd.f32 %v1894, %v1611
        %v1896 = vadd.f32 %v1895, %v1612
        %v1897 = vadd.f32 %v1896, %v1613
        %v1898 = vadd.f32 %v1897, %v1614
        %1899 = vadd.xlane.f32.xlu0 %v1898
        %v1900 = vpop.xlane.xlu0 %1899
        %v1901 = vadd.f32 %v1615, %v1616
        %v1902 = vadd.f32 %v1901, %v1617
        %v1903 = vadd.f32 %v1902, %v1618
        %v1904 = vadd.f32 %v1903, %v1619
        %v1905 = vadd.f32 %v1904, %v1620
        %v1906 = vadd.f32 %v1905, %v1621
        %v1907 = vadd.f32 %v1906, %v1622
        %1908 = vadd.xlane.f32.xlu0 %v1907
        %v1909 = vpop.xlane.xlu0 %1908
        %v1910 = vadd.f32 %v1623, %v1624
        %v1911 = vadd.f32 %v1910, %v1625
        %v1912 = vadd.f32 %v1911, %v1626
        %v1913 = vadd.f32 %v1912, %v1627
        %v1914 = vadd.f32 %v1913, %v1628
        %v1915 = vadd.f32 %v1914, %v1629
        %v1916 = vadd.f32 %v1915, %v1630
        %1917 = vadd.xlane.f32.xlu0 %v1916
        %v1918 = vpop.xlane.xlu0 %1917
        %p1919 = scmp.eq.s32.totalorder %s28, 0
        // Predicated region
        $region45: #{glow_base_forward_pallas.1} parent=31 // pred_check
          %p1920 = pneg %p1919
        $region46: #{glow_base_forward_pallas.1} parent=31 // pred_check_branch
          %1922 = sbr.rel (%p1920) target = $region48
        $region47: #{glow_base_forward_pallas.1} parent=31 // pred_region
          %v1923 = vlaneseq
          %vm1924 = vcmp.ge.s32.totalorder %v1923, 0
          %vm1925 = vcmp.lt.s32.totalorder %v1923, 256
          %vm1926 = vmand %vm1924, %vm1925
          %1927 = vst.msk [vmem:[%s294] sm:$0x3] %vm1926, 0.0
        $region48: #{glow_base_forward_pallas.1} parent=31 // pred_fallthru
          _
        %v1928 = vld [vmem:[%s294] sm:$0x3]
        %v1929 = vmul.f32 %v1639, 0.5
        %v1930 = vmul.f32 %v1648, 0.5
        %v1931 = vmul.f32 %v1657, 0.5
        %v1932 = vmul.f32 %v1666, 0.5
        %v1933 = vmul.f32 %v1675, 0.5
        %v1934 = vmul.f32 %v1684, 0.5
        %v1935 = vmul.f32 %v1693, 0.5
        %v1936 = vmul.f32 %v1702, 0.5
        %v1937 = vmul.f32 %v1711, 0.5
        %v1938 = vmul.f32 %v1720, 0.5
        %v1939 = vmul.f32 %v1729, 0.5
        %v1940 = vmul.f32 %v1738, 0.5
        %v1941 = vmul.f32 %v1747, 0.5
        %v1942 = vmul.f32 %v1756, 0.5
        %v1943 = vmul.f32 %v1765, 0.5
        %v1944 = vmul.f32 %v1774, 0.5
        %v1945 = vmul.f32 %v1783, 0.5
        %v1946 = vmul.f32 %v1792, 0.5
        %v1947 = vmul.f32 %v1801, 0.5
        %v1948 = vmul.f32 %v1810, 0.5
        %v1949 = vmul.f32 %v1819, 0.5
        %v1950 = vmul.f32 %v1828, 0.5
        %v1951 = vmul.f32 %v1837, 0.5
        %v1952 = vmul.f32 %v1846, 0.5
        %v1953 = vmul.f32 %v1855, 0.5
        %v1954 = vmul.f32 %v1864, 0.5
        %v1955 = vmul.f32 %v1873, 0.5
        %v1956 = vmul.f32 %v1882, 0.5
        %v1957 = vmul.f32 %v1891, 0.5
        %v1958 = vmul.f32 %v1900, 0.5
        %v1959 = vmul.f32 %v1909, 0.5
        %v1960 = vmul.f32 %v1918, 0.5
        %v1993 = vperm.slane %v1929, 0
        %v1994 = vperm.slane %v1929, 1
        %v1995 = vperm.slane %v1929, 2
        %v1996 = vperm.slane %v1929, 3
        %v1997 = vperm.slane %v1929, 4
        %v1998 = vperm.slane %v1929, 5
        %v1999 = vperm.slane %v1929, 6
        %v2000 = vperm.slane %v1929, 7
        %v2001 = vperm.slane %v1930, 0
        %v2002 = vperm.slane %v1930, 1
        %v2003 = vperm.slane %v1930, 2
        %v2004 = vperm.slane %v1930, 3
        %v2005 = vperm.slane %v1930, 4
        %v2006 = vperm.slane %v1930, 5
        %v2007 = vperm.slane %v1930, 6
        %v2008 = vperm.slane %v1930, 7
        %v2009 = vperm.slane %v1931, 0
        %v2010 = vperm.slane %v1931, 1
        %v2011 = vperm.slane %v1931, 2
        %v2012 = vperm.slane %v1931, 3
        %v2013 = vperm.slane %v1931, 4
        %v2014 = vperm.slane %v1931, 5
        %v2015 = vperm.slane %v1931, 6
        %v2016 = vperm.slane %v1931, 7
        %v2017 = vperm.slane %v1932, 0
        %v2018 = vperm.slane %v1932, 1
        %v2019 = vperm.slane %v1932, 2
        %v2020 = vperm.slane %v1932, 3
        %v2021 = vperm.slane %v1932, 4
        %v2022 = vperm.slane %v1932, 5
        %v2023 = vperm.slane %v1932, 6
        %v2024 = vperm.slane %v1932, 7
        %v2025 = vperm.slane %v1933, 0
        %v2026 = vperm.slane %v1933, 1
        %v2027 = vperm.slane %v1933, 2
        %v2028 = vperm.slane %v1933, 3
        %v2029 = vperm.slane %v1933, 4
        %v2030 = vperm.slane %v1933, 5
        %v2031 = vperm.slane %v1933, 6
        %v2032 = vperm.slane %v1933, 7
        %v2033 = vperm.slane %v1934, 0
        %v2034 = vperm.slane %v1934, 1
        %v2035 = vperm.slane %v1934, 2
        %v2036 = vperm.slane %v1934, 3
        %v2037 = vperm.slane %v1934, 4
        %v2038 = vperm.slane %v1934, 5
        %v2039 = vperm.slane %v1934, 6
        %v2040 = vperm.slane %v1934, 7
        %v2041 = vperm.slane %v1935, 0
        %v2042 = vperm.slane %v1935, 1
        %v2043 = vperm.slane %v1935, 2
        %v2044 = vperm.slane %v1935, 3
        %v2045 = vperm.slane %v1935, 4
        %v2046 = vperm.slane %v1935, 5
        %v2047 = vperm.slane %v1935, 6
        %v2048 = vperm.slane %v1935, 7
        %v2049 = vperm.slane %v1936, 0
        %v2050 = vperm.slane %v1936, 1
        %v2051 = vperm.slane %v1936, 2
        %v2052 = vperm.slane %v1936, 3
        %v2053 = vperm.slane %v1936, 4
        %v2054 = vperm.slane %v1936, 5
        %v2055 = vperm.slane %v1936, 6
        %v2056 = vperm.slane %v1936, 7
        %v2057 = vperm.slane %v1937, 0
        %v2058 = vperm.slane %v1937, 1
        %v2059 = vperm.slane %v1937, 2
        %v2060 = vperm.slane %v1937, 3
        %v2061 = vperm.slane %v1937, 4
        %v2062 = vperm.slane %v1937, 5
        %v2063 = vperm.slane %v1937, 6
        %v2064 = vperm.slane %v1937, 7
        %v2065 = vperm.slane %v1938, 0
        %v2066 = vperm.slane %v1938, 1
        %v2067 = vperm.slane %v1938, 2
        %v2068 = vperm.slane %v1938, 3
        %v2069 = vperm.slane %v1938, 4
        %v2070 = vperm.slane %v1938, 5
        %v2071 = vperm.slane %v1938, 6
        %v2072 = vperm.slane %v1938, 7
        %v2073 = vperm.slane %v1939, 0
        %v2074 = vperm.slane %v1939, 1
        %v2075 = vperm.slane %v1939, 2
        %v2076 = vperm.slane %v1939, 3
        %v2077 = vperm.slane %v1939, 4
        %v2078 = vperm.slane %v1939, 5
        %v2079 = vperm.slane %v1939, 6
        %v2080 = vperm.slane %v1939, 7
        %v2081 = vperm.slane %v1940, 0
        %v2082 = vperm.slane %v1940, 1
        %v2083 = vperm.slane %v1940, 2
        %v2084 = vperm.slane %v1940, 3
        %v2085 = vperm.slane %v1940, 4
        %v2086 = vperm.slane %v1940, 5
        %v2087 = vperm.slane %v1940, 6
        %v2088 = vperm.slane %v1940, 7
        %v2089 = vperm.slane %v1941, 0
        %v2090 = vperm.slane %v1941, 1
        %v2091 = vperm.slane %v1941, 2
        %v2092 = vperm.slane %v1941, 3
        %v2093 = vperm.slane %v1941, 4
        %v2094 = vperm.slane %v1941, 5
        %v2095 = vperm.slane %v1941, 6
        %v2096 = vperm.slane %v1941, 7
        %v2097 = vperm.slane %v1942, 0
        %v2098 = vperm.slane %v1942, 1
        %v2099 = vperm.slane %v1942, 2
        %v2100 = vperm.slane %v1942, 3
        %v2101 = vperm.slane %v1942, 4
        %v2102 = vperm.slane %v1942, 5
        %v2103 = vperm.slane %v1942, 6
        %v2104 = vperm.slane %v1942, 7
        %v2105 = vperm.slane %v1943, 0
        %v2106 = vperm.slane %v1943, 1
        %v2107 = vperm.slane %v1943, 2
        %v2108 = vperm.slane %v1943, 3
        %v2109 = vperm.slane %v1943, 4
        %v2110 = vperm.slane %v1943, 5
        %v2111 = vperm.slane %v1943, 6
        %v2112 = vperm.slane %v1943, 7
        %v2113 = vperm.slane %v1944, 0
        %v2114 = vperm.slane %v1944, 1
        %v2115 = vperm.slane %v1944, 2
        %v2116 = vperm.slane %v1944, 3
        %v2117 = vperm.slane %v1944, 4
        %v2118 = vperm.slane %v1944, 5
        %v2119 = vperm.slane %v1944, 6
        %v2120 = vperm.slane %v1944, 7
        %v2121 = vperm.slane %v1945, 0
        %v2122 = vperm.slane %v1945, 1
        %v2123 = vperm.slane %v1945, 2
        %v2124 = vperm.slane %v1945, 3
        %v2125 = vperm.slane %v1945, 4
        %v2126 = vperm.slane %v1945, 5
        %v2127 = vperm.slane %v1945, 6
        %v2128 = vperm.slane %v1945, 7
        %v2129 = vperm.slane %v1946, 0
        %v2130 = vperm.slane %v1946, 1
        %v2131 = vperm.slane %v1946, 2
        %v2132 = vperm.slane %v1946, 3
        %v2133 = vperm.slane %v1946, 4
        %v2134 = vperm.slane %v1946, 5
        %v2135 = vperm.slane %v1946, 6
        %v2136 = vperm.slane %v1946, 7
        %v2137 = vperm.slane %v1947, 0
        %v2138 = vperm.slane %v1947, 1
        %v2139 = vperm.slane %v1947, 2
        %v2140 = vperm.slane %v1947, 3
        %v2141 = vperm.slane %v1947, 4
        %v2142 = vperm.slane %v1947, 5
        %v2143 = vperm.slane %v1947, 6
        %v2144 = vperm.slane %v1947, 7
        %v2145 = vperm.slane %v1948, 0
        %v2146 = vperm.slane %v1948, 1
        %v2147 = vperm.slane %v1948, 2
        %v2148 = vperm.slane %v1948, 3
        %v2149 = vperm.slane %v1948, 4
        %v2150 = vperm.slane %v1948, 5
        %v2151 = vperm.slane %v1948, 6
        %v2152 = vperm.slane %v1948, 7
        %v2153 = vperm.slane %v1949, 0
        %v2154 = vperm.slane %v1949, 1
        %v2155 = vperm.slane %v1949, 2
        %v2156 = vperm.slane %v1949, 3
        %v2157 = vperm.slane %v1949, 4
        %v2158 = vperm.slane %v1949, 5
        %v2159 = vperm.slane %v1949, 6
        %v2160 = vperm.slane %v1949, 7
        %v2161 = vperm.slane %v1950, 0
        %v2162 = vperm.slane %v1950, 1
        %v2163 = vperm.slane %v1950, 2
        %v2164 = vperm.slane %v1950, 3
        %v2165 = vperm.slane %v1950, 4
        %v2166 = vperm.slane %v1950, 5
        %v2167 = vperm.slane %v1950, 6
        %v2168 = vperm.slane %v1950, 7
        %v2169 = vperm.slane %v1951, 0
        %v2170 = vperm.slane %v1951, 1
        %v2171 = vperm.slane %v1951, 2
        %v2172 = vperm.slane %v1951, 3
        %v2173 = vperm.slane %v1951, 4
        %v2174 = vperm.slane %v1951, 5
        %v2175 = vperm.slane %v1951, 6
        %v2176 = vperm.slane %v1951, 7
        %v2177 = vperm.slane %v1952, 0
        %v2178 = vperm.slane %v1952, 1
        %v2179 = vperm.slane %v1952, 2
        %v2180 = vperm.slane %v1952, 3
        %v2181 = vperm.slane %v1952, 4
        %v2182 = vperm.slane %v1952, 5
        %v2183 = vperm.slane %v1952, 6
        %v2184 = vperm.slane %v1952, 7
        %v2185 = vperm.slane %v1953, 0
        %v2186 = vperm.slane %v1953, 1
        %v2187 = vperm.slane %v1953, 2
        %v2188 = vperm.slane %v1953, 3
        %v2189 = vperm.slane %v1953, 4
        %v2190 = vperm.slane %v1953, 5
        %v2191 = vperm.slane %v1953, 6
        %v2192 = vperm.slane %v1953, 7
        %v2193 = vperm.slane %v1954, 0
        %v2194 = vperm.slane %v1954, 1
        %v2195 = vperm.slane %v1954, 2
        %v2196 = vperm.slane %v1954, 3
        %v2197 = vperm.slane %v1954, 4
        %v2198 = vperm.slane %v1954, 5
        %v2199 = vperm.slane %v1954, 6
        %v2200 = vperm.slane %v1954, 7
        %v2201 = vperm.slane %v1955, 0
        %v2202 = vperm.slane %v1955, 1
        %v2203 = vperm.slane %v1955, 2
        %v2204 = vperm.slane %v1955, 3
        %v2205 = vperm.slane %v1955, 4
        %v2206 = vperm.slane %v1955, 5
        %v2207 = vperm.slane %v1955, 6
        %v2208 = vperm.slane %v1955, 7
        %v2209 = vperm.slane %v1956, 0
        %v2210 = vperm.slane %v1956, 1
        %v2211 = vperm.slane %v1956, 2
        %v2212 = vperm.slane %v1956, 3
        %v2213 = vperm.slane %v1956, 4
        %v2214 = vperm.slane %v1956, 5
        %v2215 = vperm.slane %v1956, 6
        %v2216 = vperm.slane %v1956, 7
        %v2217 = vperm.slane %v1957, 0
        %v2218 = vperm.slane %v1957, 1
        %v2219 = vperm.slane %v1957, 2
        %v2220 = vperm.slane %v1957, 3
        %v2221 = vperm.slane %v1957, 4
        %v2222 = vperm.slane %v1957, 5
        %v2223 = vperm.slane %v1957, 6
        %v2224 = vperm.slane %v1957, 7
        %v2225 = vperm.slane %v1958, 0
        %v2226 = vperm.slane %v1958, 1
        %v2227 = vperm.slane %v1958, 2
        %v2228 = vperm.slane %v1958, 3
        %v2229 = vperm.slane %v1958, 4
        %v2230 = vperm.slane %v1958, 5
        %v2231 = vperm.slane %v1958, 6
        %v2232 = vperm.slane %v1958, 7
        %v2233 = vperm.slane %v1959, 0
        %v2234 = vperm.slane %v1959, 1
        %v2235 = vperm.slane %v1959, 2
        %v2236 = vperm.slane %v1959, 3
        %v2237 = vperm.slane %v1959, 4
        %v2238 = vperm.slane %v1959, 5
        %v2239 = vperm.slane %v1959, 6
        %v2240 = vperm.slane %v1959, 7
        %v2241 = vperm.slane %v1960, 0
        %v2242 = vperm.slane %v1960, 1
        %v2243 = vperm.slane %v1960, 2
        %v2244 = vperm.slane %v1960, 3
        %v2245 = vperm.slane %v1960, 4
        %v2246 = vperm.slane %v1960, 5
        %v2247 = vperm.slane %v1960, 6
        %v2248 = vperm.slane %v1960, 7
        %2249 = vst [vmem:[#allocation1] ss:$9 sm:$0xff] %v1993
        %s2250 = scalar_lea.vmem [#allocation1], 1
        %2251 = vst [vmem:[%s2250] ss:$9 sm:$0xff] %v1994
        %s2252 = scalar_lea.vmem [#allocation1], 2
        %2253 = vst [vmem:[%s2252] ss:$9 sm:$0xff] %v1995
        %s2254 = scalar_lea.vmem [#allocation1], 3
        %2255 = vst [vmem:[%s2254] ss:$9 sm:$0xff] %v1996
        %s2256 = scalar_lea.vmem [#allocation1], 4
        %2257 = vst [vmem:[%s2256] ss:$9 sm:$0xff] %v1997
        %s2258 = scalar_lea.vmem [#allocation1], 5
        %2259 = vst [vmem:[%s2258] ss:$9 sm:$0xff] %v1998
        %s2260 = scalar_lea.vmem [#allocation1], 6
        %2261 = vst [vmem:[%s2260] ss:$9 sm:$0xff] %v1999
        %s2262 = scalar_lea.vmem [#allocation1], 7
        %2263 = vst [vmem:[%s2262] ss:$9 sm:$0xff] %v2000
        %v2264 = vld [vmem:[#allocation1] sm:$0xff]
        %2265 = vst [vmem:[#allocation1] ss:$9 sm:$0xff] %v2001
        %2266 = vst [vmem:[%s2250] ss:$9 sm:$0xff] %v2002
        %2267 = vst [vmem:[%s2252] ss:$9 sm:$0xff] %v2003
        %2268 = vst [vmem:[%s2254] ss:$9 sm:$0xff] %v2004
        %2269 = vst [vmem:[%s2256] ss:$9 sm:$0xff] %v2005
        %2270 = vst [vmem:[%s2258] ss:$9 sm:$0xff] %v2006
        %2271 = vst [vmem:[%s2260] ss:$9 sm:$0xff] %v2007
        %2272 = vst [vmem:[%s2262] ss:$9 sm:$0xff] %v2008
        %v2273 = vld [vmem:[#allocation1] sm:$0xff]
        %2274 = vst [vmem:[#allocation1] ss:$9 sm:$0xff] %v2009
        %2275 = vst [vmem:[%s2250] ss:$9 sm:$0xff] %v2010
        %2276 = vst [vmem:[%s2252] ss:$9 sm:$0xff] %v2011
        %2277 = vst [vmem:[%s2254] ss:$9 sm:$0xff] %v2012
        %2278 = vst [vmem:[%s2256] ss:$9 sm:$0xff] %v2013
        %2279 = vst [vmem:[%s2258] ss:$9 sm:$0xff] %v2014
        %2280 = vst [vmem:[%s2260] ss:$9 sm:$0xff] %v2015
        %2281 = vst [vmem:[%s2262] ss:$9 sm:$0xff] %v2016
        %v2282 = vld [vmem:[#allocation1] sm:$0xff]
        %2283 = vst [vmem:[#allocation1] ss:$9 sm:$0xff] %v2017
        %2284 = vst [vmem:[%s2250] ss:$9 sm:$0xff] %v2018
        %2285 = vst [vmem:[%s2252] ss:$9 sm:$0xff] %v2019
        %2286 = vst [vmem:[%s2254] ss:$9 sm:$0xff] %v2020
        %2287 = vst [vmem:[%s2256] ss:$9 sm:$0xff] %v2021
        %2288 = vst [vmem:[%s2258] ss:$9 sm:$0xff] %v2022
        %2289 = vst [vmem:[%s2260] ss:$9 sm:$0xff] %v2023
        %2290 = vst [vmem:[%s2262] ss:$9 sm:$0xff] %v2024
        %v2291 = vld [vmem:[#allocation1] sm:$0xff]
        %2292 = vst [vmem:[#allocation1] ss:$9 sm:$0xff] %v2025
        %2293 = vst [vmem:[%s2250] ss:$9 sm:$0xff] %v2026
        %2294 = vst [vmem:[%s2252] ss:$9 sm:$0xff] %v2027
        %2295 = vst [vmem:[%s2254] ss:$9 sm:$0xff] %v2028
        %2296 = vst [vmem:[%s2256] ss:$9 sm:$0xff] %v2029
        %2297 = vst [vmem:[%s2258] ss:$9 sm:$0xff] %v2030
        %2298 = vst [vmem:[%s2260] ss:$9 sm:$0xff] %v2031
        %2299 = vst [vmem:[%s2262] ss:$9 sm:$0xff] %v2032
        %v2300 = vld [vmem:[#allocation1] sm:$0xff]
        %2301 = vst [vmem:[#allocation1] ss:$9 sm:$0xff] %v2033
        %2302 = vst [vmem:[%s2250] ss:$9 sm:$0xff] %v2034
        %2303 = vst [vmem:[%s2252] ss:$9 sm:$0xff] %v2035
        %2304 = vst [vmem:[%s2254] ss:$9 sm:$0xff] %v2036
        %2305 = vst [vmem:[%s2256] ss:$9 sm:$0xff] %v2037
        %2306 = vst [vmem:[%s2258] ss:$9 sm:$0xff] %v2038
        %2307 = vst [vmem:[%s2260] ss:$9 sm:$0xff] %v2039
        %2308 = vst [vmem:[%s2262] ss:$9 sm:$0xff] %v2040
        %v2309 = vld [vmem:[#allocation1] sm:$0xff]
        %2310 = vst [vmem:[#allocation1] ss:$9 sm:$0xff] %v2041
        %2311 = vst [vmem:[%s2250] ss:$9 sm:$0xff] %v2042
        %2312 = vst [vmem:[%s2252] ss:$9 sm:$0xff] %v2043
        %2313 = vst [vmem:[%s2254] ss:$9 sm:$0xff] %v2044
        %2314 = vst [vmem:[%s2256] ss:$9 sm:$0xff] %v2045
        %2315 = vst [vmem:[%s2258] ss:$9 sm:$0xff] %v2046
        %2316 = vst [vmem:[%s2260] ss:$9 sm:$0xff] %v2047
        %2317 = vst [vmem:[%s2262] ss:$9 sm:$0xff] %v2048
        %v2318 = vld [vmem:[#allocation1] sm:$0xff]
        %2319 = vst [vmem:[#allocation1] ss:$9 sm:$0xff] %v2049
        %2320 = vst [vmem:[%s2250] ss:$9 sm:$0xff] %v2050
        %2321 = vst [vmem:[%s2252] ss:$9 sm:$0xff] %v2051
        %2322 = vst [vmem:[%s2254] ss:$9 sm:$0xff] %v2052
        %2323 = vst [vmem:[%s2256] ss:$9 sm:$0xff] %v2053
        %2324 = vst [vmem:[%s2258] ss:$9 sm:$0xff] %v2054
        %2325 = vst [vmem:[%s2260] ss:$9 sm:$0xff] %v2055
        %2326 = vst [vmem:[%s2262] ss:$9 sm:$0xff] %v2056
        %v2327 = vld [vmem:[#allocation1] sm:$0xff]
        %2328 = vst [vmem:[#allocation1] ss:$9 sm:$0xff] %v2057
        %2329 = vst [vmem:[%s2250] ss:$9 sm:$0xff] %v2058
        %2330 = vst [vmem:[%s2252] ss:$9 sm:$0xff] %v2059
        %2331 = vst [vmem:[%s2254] ss:$9 sm:$0xff] %v2060
        %2332 = vst [vmem:[%s2256] ss:$9 sm:$0xff] %v2061
        %2333 = vst [vmem:[%s2258] ss:$9 sm:$0xff] %v2062
        %2334 = vst [vmem:[%s2260] ss:$9 sm:$0xff] %v2063
        %2335 = vst [vmem:[%s2262] ss:$9 sm:$0xff] %v2064
        %v2336 = vld [vmem:[#allocation1] sm:$0xff]
        %2337 = vst [vmem:[#allocation1] ss:$9 sm:$0xff] %v2065
        %2338 = vst [vmem:[%s2250] ss:$9 sm:$0xff] %v2066
        %2339 = vst [vmem:[%s2252] ss:$9 sm:$0xff] %v2067
        %2340 = vst [vmem:[%s2254] ss:$9 sm:$0xff] %v2068
        %2341 = vst [vmem:[%s2256] ss:$9 sm:$0xff] %v2069
        %2342 = vst [vmem:[%s2258] ss:$9 sm:$0xff] %v2070
        %2343 = vst [vmem:[%s2260] ss:$9 sm:$0xff] %v2071
        %2344 = vst [vmem:[%s2262] ss:$9 sm:$0xff] %v2072
        %v2345 = vld [vmem:[#allocation1] sm:$0xff]
        %2346 = vst [vmem:[#allocation1] ss:$9 sm:$0xff] %v2073
        %2347 = vst [vmem:[%s2250] ss:$9 sm:$0xff] %v2074
        %2348 = vst [vmem:[%s2252] ss:$9 sm:$0xff] %v2075
        %2349 = vst [vmem:[%s2254] ss:$9 sm:$0xff] %v2076
        %2350 = vst [vmem:[%s2256] ss:$9 sm:$0xff] %v2077
        %2351 = vst [vmem:[%s2258] ss:$9 sm:$0xff] %v2078
        %2352 = vst [vmem:[%s2260] ss:$9 sm:$0xff] %v2079
        %2353 = vst [vmem:[%s2262] ss:$9 sm:$0xff] %v2080
        %v2354 = vld [vmem:[#allocation1] sm:$0xff]
        %2355 = vst [vmem:[#allocation1] ss:$9 sm:$0xff] %v2081
        %2356 = vst [vmem:[%s2250] ss:$9 sm:$0xff] %v2082
        %2357 = vst [vmem:[%s2252] ss:$9 sm:$0xff] %v2083
        %2358 = vst [vmem:[%s2254] ss:$9 sm:$0xff] %v2084
        %2359 = vst [vmem:[%s2256] ss:$9 sm:$0xff] %v2085
        %2360 = vst [vmem:[%s2258] ss:$9 sm:$0xff] %v2086
        %2361 = vst [vmem:[%s2260] ss:$9 sm:$0xff] %v2087
        %2362 = vst [vmem:[%s2262] ss:$9 sm:$0xff] %v2088
        %v2363 = vld [vmem:[#allocation1] sm:$0xff]
        %2364 = vst [vmem:[#allocation1] ss:$9 sm:$0xff] %v2089
        %2365 = vst [vmem:[%s2250] ss:$9 sm:$0xff] %v2090
        %2366 = vst [vmem:[%s2252] ss:$9 sm:$0xff] %v2091
        %2367 = vst [vmem:[%s2254] ss:$9 sm:$0xff] %v2092
        %2368 = vst [vmem:[%s2256] ss:$9 sm:$0xff] %v2093
        %2369 = vst [vmem:[%s2258] ss:$9 sm:$0xff] %v2094
        %2370 = vst [vmem:[%s2260] ss:$9 sm:$0xff] %v2095
        %2371 = vst [vmem:[%s2262] ss:$9 sm:$0xff] %v2096
        %v2372 = vld [vmem:[#allocation1] sm:$0xff]
        %2373 = vst [vmem:[#allocation1] ss:$9 sm:$0xff] %v2097
        %2374 = vst [vmem:[%s2250] ss:$9 sm:$0xff] %v2098
        %2375 = vst [vmem:[%s2252] ss:$9 sm:$0xff] %v2099
        %2376 = vst [vmem:[%s2254] ss:$9 sm:$0xff] %v2100
        %2377 = vst [vmem:[%s2256] ss:$9 sm:$0xff] %v2101
        %2378 = vst [vmem:[%s2258] ss:$9 sm:$0xff] %v2102
        %2379 = vst [vmem:[%s2260] ss:$9 sm:$0xff] %v2103
        %2380 = vst [vmem:[%s2262] ss:$9 sm:$0xff] %v2104
        %v2381 = vld [vmem:[#allocation1] sm:$0xff]
        %2382 = vst [vmem:[#allocation1] ss:$9 sm:$0xff] %v2105
        %2383 = vst [vmem:[%s2250] ss:$9 sm:$0xff] %v2106
        %2384 = vst [vmem:[%s2252] ss:$9 sm:$0xff] %v2107
        %2385 = vst [vmem:[%s2254] ss:$9 sm:$0xff] %v2108
        %2386 = vst [vmem:[%s2256] ss:$9 sm:$0xff] %v2109
        %2387 = vst [vmem:[%s2258] ss:$9 sm:$0xff] %v2110
        %2388 = vst [vmem:[%s2260] ss:$9 sm:$0xff] %v2111
        %2389 = vst [vmem:[%s2262] ss:$9 sm:$0xff] %v2112
        %v2390 = vld [vmem:[#allocation1] sm:$0xff]
        %2391 = vst [vmem:[#allocation1] ss:$9 sm:$0xff] %v2113
        %2392 = vst [vmem:[%s2250] ss:$9 sm:$0xff] %v2114
        %2393 = vst [vmem:[%s2252] ss:$9 sm:$0xff] %v2115
        %2394 = vst [vmem:[%s2254] ss:$9 sm:$0xff] %v2116
        %2395 = vst [vmem:[%s2256] ss:$9 sm:$0xff] %v2117
        %2396 = vst [vmem:[%s2258] ss:$9 sm:$0xff] %v2118
        %2397 = vst [vmem:[%s2260] ss:$9 sm:$0xff] %v2119
        %2398 = vst [vmem:[%s2262] ss:$9 sm:$0xff] %v2120
        %v2399 = vld [vmem:[#allocation1] sm:$0xff]
        %2400 = vst [vmem:[#allocation1] ss:$9 sm:$0xff] %v2121
        %2401 = vst [vmem:[%s2250] ss:$9 sm:$0xff] %v2122
        %2402 = vst [vmem:[%s2252] ss:$9 sm:$0xff] %v2123
        %2403 = vst [vmem:[%s2254] ss:$9 sm:$0xff] %v2124
        %2404 = vst [vmem:[%s2256] ss:$9 sm:$0xff] %v2125
        %2405 = vst [vmem:[%s2258] ss:$9 sm:$0xff] %v2126
        %2406 = vst [vmem:[%s2260] ss:$9 sm:$0xff] %v2127
        %2407 = vst [vmem:[%s2262] ss:$9 sm:$0xff] %v2128
        %v2408 = vld [vmem:[#allocation1] sm:$0xff]
        %2409 = vst [vmem:[#allocation1] ss:$9 sm:$0xff] %v2129
        %2410 = vst [vmem:[%s2250] ss:$9 sm:$0xff] %v2130
        %2411 = vst [vmem:[%s2252] ss:$9 sm:$0xff] %v2131
        %2412 = vst [vmem:[%s2254] ss:$9 sm:$0xff] %v2132
        %2413 = vst [vmem:[%s2256] ss:$9 sm:$0xff] %v2133
        %2414 = vst [vmem:[%s2258] ss:$9 sm:$0xff] %v2134
        %2415 = vst [vmem:[%s2260] ss:$9 sm:$0xff] %v2135
        %2416 = vst [vmem:[%s2262] ss:$9 sm:$0xff] %v2136
        %v2417 = vld [vmem:[#allocation1] sm:$0xff]
        %2418 = vst [vmem:[#allocation1] ss:$9 sm:$0xff] %v2137
        %2419 = vst [vmem:[%s2250] ss:$9 sm:$0xff] %v2138
        %2420 = vst [vmem:[%s2252] ss:$9 sm:$0xff] %v2139
        %2421 = vst [vmem:[%s2254] ss:$9 sm:$0xff] %v2140
        %2422 = vst [vmem:[%s2256] ss:$9 sm:$0xff] %v2141
        %2423 = vst [vmem:[%s2258] ss:$9 sm:$0xff] %v2142
        %2424 = vst [vmem:[%s2260] ss:$9 sm:$0xff] %v2143
        %2425 = vst [vmem:[%s2262] ss:$9 sm:$0xff] %v2144
        %v2426 = vld [vmem:[#allocation1] sm:$0xff]
        %2427 = vst [vmem:[#allocation1] ss:$9 sm:$0xff] %v2145
        %2428 = vst [vmem:[%s2250] ss:$9 sm:$0xff] %v2146
        %2429 = vst [vmem:[%s2252] ss:$9 sm:$0xff] %v2147
        %2430 = vst [vmem:[%s2254] ss:$9 sm:$0xff] %v2148
        %2431 = vst [vmem:[%s2256] ss:$9 sm:$0xff] %v2149
        %2432 = vst [vmem:[%s2258] ss:$9 sm:$0xff] %v2150
        %2433 = vst [vmem:[%s2260] ss:$9 sm:$0xff] %v2151
        %2434 = vst [vmem:[%s2262] ss:$9 sm:$0xff] %v2152
        %v2435 = vld [vmem:[#allocation1] sm:$0xff]
        %2436 = vst [vmem:[#allocation1] ss:$9 sm:$0xff] %v2153
        %2437 = vst [vmem:[%s2250] ss:$9 sm:$0xff] %v2154
        %2438 = vst [vmem:[%s2252] ss:$9 sm:$0xff] %v2155
        %2439 = vst [vmem:[%s2254] ss:$9 sm:$0xff] %v2156
        %2440 = vst [vmem:[%s2256] ss:$9 sm:$0xff] %v2157
        %2441 = vst [vmem:[%s2258] ss:$9 sm:$0xff] %v2158
        %2442 = vst [vmem:[%s2260] ss:$9 sm:$0xff] %v2159
        %2443 = vst [vmem:[%s2262] ss:$9 sm:$0xff] %v2160
        %v2444 = vld [vmem:[#allocation1] sm:$0xff]
        %2445 = vst [vmem:[#allocation1] ss:$9 sm:$0xff] %v2161
        %2446 = vst [vmem:[%s2250] ss:$9 sm:$0xff] %v2162
        %2447 = vst [vmem:[%s2252] ss:$9 sm:$0xff] %v2163
        %2448 = vst [vmem:[%s2254] ss:$9 sm:$0xff] %v2164
        %2449 = vst [vmem:[%s2256] ss:$9 sm:$0xff] %v2165
        %2450 = vst [vmem:[%s2258] ss:$9 sm:$0xff] %v2166
        %2451 = vst [vmem:[%s2260] ss:$9 sm:$0xff] %v2167
        %2452 = vst [vmem:[%s2262] ss:$9 sm:$0xff] %v2168
        %v2453 = vld [vmem:[#allocation1] sm:$0xff]
        %2454 = vst [vmem:[#allocation1] ss:$9 sm:$0xff] %v2169
        %2455 = vst [vmem:[%s2250] ss:$9 sm:$0xff] %v2170
        %2456 = vst [vmem:[%s2252] ss:$9 sm:$0xff] %v2171
        %2457 = vst [vmem:[%s2254] ss:$9 sm:$0xff] %v2172
        %2458 = vst [vmem:[%s2256] ss:$9 sm:$0xff] %v2173
        %2459 = vst [vmem:[%s2258] ss:$9 sm:$0xff] %v2174
        %2460 = vst [vmem:[%s2260] ss:$9 sm:$0xff] %v2175
        %2461 = vst [vmem:[%s2262] ss:$9 sm:$0xff] %v2176
        %v2462 = vld [vmem:[#allocation1] sm:$0xff]
        %2463 = vst [vmem:[#allocation1] ss:$9 sm:$0xff] %v2177
        %2464 = vst [vmem:[%s2250] ss:$9 sm:$0xff] %v2178
        %2465 = vst [vmem:[%s2252] ss:$9 sm:$0xff] %v2179
        %2466 = vst [vmem:[%s2254] ss:$9 sm:$0xff] %v2180
        %2467 = vst [vmem:[%s2256] ss:$9 sm:$0xff] %v2181
        %2468 = vst [vmem:[%s2258] ss:$9 sm:$0xff] %v2182
        %2469 = vst [vmem:[%s2260] ss:$9 sm:$0xff] %v2183
        %2470 = vst [vmem:[%s2262] ss:$9 sm:$0xff] %v2184
        %v2471 = vld [vmem:[#allocation1] sm:$0xff]
        %2472 = vst [vmem:[#allocation1] ss:$9 sm:$0xff] %v2185
        %2473 = vst [vmem:[%s2250] ss:$9 sm:$0xff] %v2186
        %2474 = vst [vmem:[%s2252] ss:$9 sm:$0xff] %v2187
        %2475 = vst [vmem:[%s2254] ss:$9 sm:$0xff] %v2188
        %2476 = vst [vmem:[%s2256] ss:$9 sm:$0xff] %v2189
        %2477 = vst [vmem:[%s2258] ss:$9 sm:$0xff] %v2190
        %2478 = vst [vmem:[%s2260] ss:$9 sm:$0xff] %v2191
        %2479 = vst [vmem:[%s2262] ss:$9 sm:$0xff] %v2192
        %v2480 = vld [vmem:[#allocation1] sm:$0xff]
        %2481 = vst [vmem:[#allocation1] ss:$9 sm:$0xff] %v2193
        %2482 = vst [vmem:[%s2250] ss:$9 sm:$0xff] %v2194
        %2483 = vst [vmem:[%s2252] ss:$9 sm:$0xff] %v2195
        %2484 = vst [vmem:[%s2254] ss:$9 sm:$0xff] %v2196
        %2485 = vst [vmem:[%s2256] ss:$9 sm:$0xff] %v2197
        %2486 = vst [vmem:[%s2258] ss:$9 sm:$0xff] %v2198
        %2487 = vst [vmem:[%s2260] ss:$9 sm:$0xff] %v2199
        %2488 = vst [vmem:[%s2262] ss:$9 sm:$0xff] %v2200
        %v2489 = vld [vmem:[#allocation1] sm:$0xff]
        %2490 = vst [vmem:[#allocation1] ss:$9 sm:$0xff] %v2201
        %2491 = vst [vmem:[%s2250] ss:$9 sm:$0xff] %v2202
        %2492 = vst [vmem:[%s2252] ss:$9 sm:$0xff] %v2203
        %2493 = vst [vmem:[%s2254] ss:$9 sm:$0xff] %v2204
        %2494 = vst [vmem:[%s2256] ss:$9 sm:$0xff] %v2205
        %2495 = vst [vmem:[%s2258] ss:$9 sm:$0xff] %v2206
        %2496 = vst [vmem:[%s2260] ss:$9 sm:$0xff] %v2207
        %2497 = vst [vmem:[%s2262] ss:$9 sm:$0xff] %v2208
        %v2498 = vld [vmem:[#allocation1] sm:$0xff]
        %2499 = vst [vmem:[#allocation1] ss:$9 sm:$0xff] %v2209
        %2500 = vst [vmem:[%s2250] ss:$9 sm:$0xff] %v2210
        %2501 = vst [vmem:[%s2252] ss:$9 sm:$0xff] %v2211
        %2502 = vst [vmem:[%s2254] ss:$9 sm:$0xff] %v2212
        %2503 = vst [vmem:[%s2256] ss:$9 sm:$0xff] %v2213
        %2504 = vst [vmem:[%s2258] ss:$9 sm:$0xff] %v2214
        %2505 = vst [vmem:[%s2260] ss:$9 sm:$0xff] %v2215
        %2506 = vst [vmem:[%s2262] ss:$9 sm:$0xff] %v2216
        %v2507 = vld [vmem:[#allocation1] sm:$0xff]
        %2508 = vst [vmem:[#allocation1] ss:$9 sm:$0xff] %v2217
        %2509 = vst [vmem:[%s2250] ss:$9 sm:$0xff] %v2218
        %2510 = vst [vmem:[%s2252] ss:$9 sm:$0xff] %v2219
        %2511 = vst [vmem:[%s2254] ss:$9 sm:$0xff] %v2220
        %2512 = vst [vmem:[%s2256] ss:$9 sm:$0xff] %v2221
        %2513 = vst [vmem:[%s2258] ss:$9 sm:$0xff] %v2222
        %2514 = vst [vmem:[%s2260] ss:$9 sm:$0xff] %v2223
        %2515 = vst [vmem:[%s2262] ss:$9 sm:$0xff] %v2224
        %v2516 = vld [vmem:[#allocation1] sm:$0xff]
        %2517 = vst [vmem:[#allocation1] ss:$9 sm:$0xff] %v2225
        %2518 = vst [vmem:[%s2250] ss:$9 sm:$0xff] %v2226
        %2519 = vst [vmem:[%s2252] ss:$9 sm:$0xff] %v2227
        %2520 = vst [vmem:[%s2254] ss:$9 sm:$0xff] %v2228
        %2521 = vst [vmem:[%s2256] ss:$9 sm:$0xff] %v2229
        %2522 = vst [vmem:[%s2258] ss:$9 sm:$0xff] %v2230
        %2523 = vst [vmem:[%s2260] ss:$9 sm:$0xff] %v2231
        %2524 = vst [vmem:[%s2262] ss:$9 sm:$0xff] %v2232
        %v2525 = vld [vmem:[#allocation1] sm:$0xff]
        %2526 = vst [vmem:[#allocation1] ss:$9 sm:$0xff] %v2233
        %2527 = vst [vmem:[%s2250] ss:$9 sm:$0xff] %v2234
        %2528 = vst [vmem:[%s2252] ss:$9 sm:$0xff] %v2235
        %2529 = vst [vmem:[%s2254] ss:$9 sm:$0xff] %v2236
        %2530 = vst [vmem:[%s2256] ss:$9 sm:$0xff] %v2237
        %2531 = vst [vmem:[%s2258] ss:$9 sm:$0xff] %v2238
        %2532 = vst [vmem:[%s2260] ss:$9 sm:$0xff] %v2239
        %2533 = vst [vmem:[%s2262] ss:$9 sm:$0xff] %v2240
        %v2534 = vld [vmem:[#allocation1] sm:$0xff]
        %2535 = vst [vmem:[#allocation1] ss:$9 sm:$0xff] %v2241
        %2536 = vst [vmem:[%s2250] ss:$9 sm:$0xff] %v2242
        %2537 = vst [vmem:[%s2252] ss:$9 sm:$0xff] %v2243
        %2538 = vst [vmem:[%s2254] ss:$9 sm:$0xff] %v2244
        %2539 = vst [vmem:[%s2256] ss:$9 sm:$0xff] %v2245
        %2540 = vst [vmem:[%s2258] ss:$9 sm:$0xff] %v2246
        %2541 = vst [vmem:[%s2260] ss:$9 sm:$0xff] %v2247
        %2542 = vst [vmem:[%s2262] ss:$9 sm:$0xff] %v2248
        %v2543 = vld [vmem:[#allocation1] sm:$0xff]
        %2544 = vset.pattern.permute.xlu0 0
        %2545 = vperm.xlu0 %2544, %v2264
        %v2546 = vpop.permute.xlu0 %2545
        %2547 = vset.pattern.permute.xlu0 0
        %2548 = vperm.xlu0 %2547, %v2273
        %v2549 = vpop.permute.xlu0 %2548
        %2550 = vset.pattern.permute.xlu0 0
        %2551 = vperm.xlu0 %2550, %v2282
        %v2552 = vpop.permute.xlu0 %2551
        %2553 = vset.pattern.permute.xlu0 0
        %2554 = vperm.xlu0 %2553, %v2291
        %v2555 = vpop.permute.xlu0 %2554
        %2556 = vset.pattern.permute.xlu0 0
        %2557 = vperm.xlu0 %2556, %v2300
        %v2558 = vpop.permute.xlu0 %2557
        %2559 = vset.pattern.permute.xlu0 0
        %2560 = vperm.xlu0 %2559, %v2309
        %v2561 = vpop.permute.xlu0 %2560
        %2562 = vset.pattern.permute.xlu0 0
        %2563 = vperm.xlu0 %2562, %v2318
        %v2564 = vpop.permute.xlu0 %2563
        %2565 = vset.pattern.permute.xlu0 0
        %2566 = vperm.xlu0 %2565, %v2327
        %v2567 = vpop.permute.xlu0 %2566
        %2568 = vset.pattern.permute.xlu0 0
        %2569 = vperm.xlu0 %2568, %v2336
        %v2570 = vpop.permute.xlu0 %2569
        %2571 = vset.pattern.permute.xlu0 0
        %2572 = vperm.xlu0 %2571, %v2345
        %v2573 = vpop.permute.xlu0 %2572
        %2574 = vset.pattern.permute.xlu0 0
        %2575 = vperm.xlu0 %2574, %v2354
        %v2576 = vpop.permute.xlu0 %2575
        %2577 = vset.pattern.permute.xlu0 0
        %2578 = vperm.xlu0 %2577, %v2363
        %v2579 = vpop.permute.xlu0 %2578
        %2580 = vset.pattern.permute.xlu0 0
        %2581 = vperm.xlu0 %2580, %v2372
        %v2582 = vpop.permute.xlu0 %2581
        %2583 = vset.pattern.permute.xlu0 0
        %2584 = vperm.xlu0 %2583, %v2381
        %v2585 = vpop.permute.xlu0 %2584
        %2586 = vset.pattern.permute.xlu0 0
        %2587 = vperm.xlu0 %2586, %v2390
        %v2588 = vpop.permute.xlu0 %2587
        %2589 = vset.pattern.permute.xlu0 0
        %2590 = vperm.xlu0 %2589, %v2399
        %v2591 = vpop.permute.xlu0 %2590
        %2592 = vset.pattern.permute.xlu0 0
        %2593 = vperm.xlu0 %2592, %v2408
        %v2594 = vpop.permute.xlu0 %2593
        %2595 = vset.pattern.permute.xlu0 0
        %2596 = vperm.xlu0 %2595, %v2417
        %v2597 = vpop.permute.xlu0 %2596
        %2598 = vset.pattern.permute.xlu0 0
        %2599 = vperm.xlu0 %2598, %v2426
        %v2600 = vpop.permute.xlu0 %2599
        %2601 = vset.pattern.permute.xlu0 0
        %2602 = vperm.xlu0 %2601, %v2435
        %v2603 = vpop.permute.xlu0 %2602
        %2604 = vset.pattern.permute.xlu0 0
        %2605 = vperm.xlu0 %2604, %v2444
        %v2606 = vpop.permute.xlu0 %2605
        %2607 = vset.pattern.permute.xlu0 0
        %2608 = vperm.xlu0 %2607, %v2453
        %v2609 = vpop.permute.xlu0 %2608
        %2610 = vset.pattern.permute.xlu0 0
        %2611 = vperm.xlu0 %2610, %v2462
        %v2612 = vpop.permute.xlu0 %2611
        %2613 = vset.pattern.permute.xlu0 0
        %2614 = vperm.xlu0 %2613, %v2471
        %v2615 = vpop.permute.xlu0 %2614
        %2616 = vset.pattern.permute.xlu0 0
        %2617 = vperm.xlu0 %2616, %v2480
        %v2618 = vpop.permute.xlu0 %2617
        %2619 = vset.pattern.permute.xlu0 0
        %2620 = vperm.xlu0 %2619, %v2489
        %v2621 = vpop.permute.xlu0 %2620
        %2622 = vset.pattern.permute.xlu0 0
        %2623 = vperm.xlu0 %2622, %v2498
        %v2624 = vpop.permute.xlu0 %2623
        %2625 = vset.pattern.permute.xlu0 0
        %2626 = vperm.xlu0 %2625, %v2507
        %v2627 = vpop.permute.xlu0 %2626
        %2628 = vset.pattern.permute.xlu0 0
        %2629 = vperm.xlu0 %2628, %v2516
        %v2630 = vpop.permute.xlu0 %2629
        %2631 = vset.pattern.permute.xlu0 0
        %2632 = vperm.xlu0 %2631, %v2525
        %v2633 = vpop.permute.xlu0 %2632
        %2634 = vset.pattern.permute.xlu0 0
        %2635 = vperm.xlu0 %2634, %v2534
        %v2636 = vpop.permute.xlu0 %2635
        %2637 = vset.pattern.permute.xlu0 0
        %2638 = vperm.xlu0 %2637, %v2543
        %v2639 = vpop.permute.xlu0 %2638
        %v2640 = vlaneseq
        %v2641 = vand.u32 %v2640, 127
        %v2642 = vperm.slane %v2546, %v2641
        %v2643 = vadd.s32 %v2641, 4294967288
        %v2644 = vperm.slane %v2549, %v2643
        %vm2645 = vcmask 130112
        %v2646 = vsel %vm2645, %v2644, %v2642
        %v2647 = vadd.s32 %v2641, 4294967280
        %v2648 = vperm.slane %v2552, %v2647
        %vm2649 = vcmask 195712
        %v2650 = vsel %vm2649, %v2648, %v2646
        %v2651 = vadd.s32 %v2641, 4294967272
        %v2652 = vperm.slane %v2555, %v2651
        %vm2653 = vcmask 261312
        %v2654 = vsel %vm2653, %v2652, %v2650
        %v2655 = vadd.s32 %v2641, 4294967264
        %v2656 = vperm.slane %v2558, %v2655
        %vm2657 = vcmask 326912
        %v2658 = vsel %vm2657, %v2656, %v2654
        %v2659 = vadd.s32 %v2641, 4294967256
        %v2660 = vperm.slane %v2561, %v2659
        %vm2661 = vcmask 392512
        %v2662 = vsel %vm2661, %v2660, %v2658
        %v2663 = vadd.s32 %v2641, 4294967248
        %v2664 = vperm.slane %v2564, %v2663
        %vm2665 = vcmask 458112
        %v2666 = vsel %vm2665, %v2664, %v2662
        %v2667 = vadd.s32 %v2641, 4294967240
        %v2668 = vperm.slane %v2567, %v2667
        %vm2669 = vcmask 523712
        %v2670 = vsel %vm2669, %v2668, %v2666
        %v2671 = vadd.s32 %v2641, 4294967232
        %v2672 = vperm.slane %v2570, %v2671
        %vm2673 = vcmask 589312
        %v2674 = vsel %vm2673, %v2672, %v2670
        %v2675 = vadd.s32 %v2641, 4294967224
        %v2676 = vperm.slane %v2573, %v2675
        %vm2677 = vcmask 654912
        %v2678 = vsel %vm2677, %v2676, %v2674
        %v2679 = vadd.s32 %v2641, 4294967216
        %v2680 = vperm.slane %v2576, %v2679
        %vm2681 = vcmask 720512
        %v2682 = vsel %vm2681, %v2680, %v2678
        %v2683 = vadd.s32 %v2641, 4294967208
        %v2684 = vperm.slane %v2579, %v2683
        %vm2685 = vcmask 786112
        %v2686 = vsel %vm2685, %v2684, %v2682
        %v2687 = vadd.s32 %v2641, 4294967200
        %v2688 = vperm.slane %v2582, %v2687
        %vm2689 = vcmask 851712
        %v2690 = vsel %vm2689, %v2688, %v2686
        %v2691 = vadd.s32 %v2641, 4294967192
        %v2692 = vperm.slane %v2585, %v2691
        %vm2693 = vcmask 917312
        %v2694 = vsel %vm2693, %v2692, %v2690
        %v2695 = vadd.s32 %v2641, 4294967184
        %v2696 = vperm.slane %v2588, %v2695
        %vm2697 = vcmask 982912
        %v2698 = vsel %vm2697, %v2696, %v2694
        %v2699 = vadd.s32 %v2641, 4294967176
        %v2700 = vperm.slane %v2591, %v2699
        %vm2701 = vcmask 1048512
        %v2702 = vsel %vm2701, %v2700, %v2698
        %v2703 = vperm.slane %v2594, %v2641
        %v2704 = vperm.slane %v2597, %v2643
        %v2705 = vsel %vm2645, %v2704, %v2703
        %v2706 = vperm.slane %v2600, %v2647
        %v2707 = vsel %vm2649, %v2706, %v2705
        %v2708 = vperm.slane %v2603, %v2651
        %v2709 = vsel %vm2653, %v2708, %v2707
        %v2710 = vperm.slane %v2606, %v2655
        %v2711 = vsel %vm2657, %v2710, %v2709
        %v2712 = vperm.slane %v2609, %v2659
        %v2713 = vsel %vm2661, %v2712, %v2711
        %v2714 = vperm.slane %v2612, %v2663
        %v2715 = vsel %vm2665, %v2714, %v2713
        %v2716 = vperm.slane %v2615, %v2667
        %v2717 = vsel %vm2669, %v2716, %v2715
        %v2718 = vperm.slane %v2618, %v2671
        %v2719 = vsel %vm2673, %v2718, %v2717
        %v2720 = vperm.slane %v2621, %v2675
        %v2721 = vsel %vm2677, %v2720, %v2719
        %v2722 = vperm.slane %v2624, %v2679
        %v2723 = vsel %vm2681, %v2722, %v2721
        %v2724 = vperm.slane %v2627, %v2683
        %v2725 = vsel %vm2685, %v2724, %v2723
        %v2726 = vperm.slane %v2630, %v2687
        %v2727 = vsel %vm2689, %v2726, %v2725
        %v2728 = vperm.slane %v2633, %v2691
        %v2729 = vsel %vm2693, %v2728, %v2727
        %v2730 = vperm.slane %v2636, %v2695
        %v2731 = vsel %vm2697, %v2730, %v2729
        %v2732 = vperm.slane %v2639, %v2699
        %v2733 = vsel %vm2701, %v2732, %v2731
        %v2734 = vrot.slane %v2733, 7
        %vm2735 = vcmask 1040384
        %v2736 = vsel %vm2735, %v2702, %v2734
        %v2738 = vsub.f32 %v1928, %v2736
        %v2739 = vlaneseq
        %vm2740 = vcmp.ge.s32.totalorder %v2739, 0
        %vm2741 = vcmp.lt.s32.totalorder %v2739, 256
        %vm2742 = vmand %vm2740, %vm2741
        %2743 = vst.msk [vmem:[%s294] sm:$0x3] %vm2742, %v2738
        %s2744 = sand.u32 %s125, 1
        %s2745 = scalar_lea.sflag [#allocation4], %s2744
        %s2746 = sand.u32 %s125, 1
        %s2747 = smul.addr %s2746, 2048
        %s2748 = scalar_lea.vmem [#allocation8], %s2747
        %s2749 = sand.u32 %s151, 1
        %s2750 = sand.u32 %s151, 1
        %s2751 = smul.addr %s2750, 2
        %s2752 = scalar_lea.vmem [#allocation9], %s2751
        // Predicated region
        $region49: #{glow_base_forward_pallas.1} parent=31 // pred_check
          %p2753 = pneg %p135
        $region50: #{glow_base_forward_pallas.1} parent=31 // pred_check_branch
          %2755 = sbr.rel (%p2753) target = $region52
        $region51: #{glow_base_forward_pallas.1} parent=31 // pred_region
          %s2756 = smul.u32 32, %s27
          %s2757 = smul.u32 8, %s28
          %s2758 = ssub.s32 33, %s2756
          %p2759 = scmp.lt.s32.totalorder %s2758, 32
          %s2760 = scalar_select %p2759, %s2758, 32
          %s2761 = smul.u32 8, %s2760
          %s2762 = smul.u32 %s2761, 8
          %s2763 = ssub.s32 2048, %s2762
          %s2764 = sshll.u32 %s2763, 4
          %2765 = vsyncadd %s2745, %s2764
          %p2766 = scmp.ne.s32.totalorder 0, %s2762
          %s2767 = smul.addr %s2756, 8
          %s2768 = sadd.s32 %s2757, %s2767
          %s2769 = smul.addr %s2768, 8
          %s2770 = scalar_lea.hbm %s3, %s2769
          %s2771 = smul.u32 64, %s2760
          %s2772 = sshll.u32 %s2748, 4
          %s2773 = int_to_ptr.vmem [resolvable:$true] %s2772
          %s2774 = sshll.u32 %s2770, 4
          %s2775 = int_to_ptr.hbm [resolvable:$true] %s2774
          %s2776 = sshll.u32 %s2771, 4
          %2780 = dma.vmem_to_hbm [thread:$0]  (%p2766), %s2773, %s2776, %s2775, %s2745, 1024, 1024, 64
        $region52: #{glow_base_forward_pallas.1} parent=31 // pred_fallthru
          _
        // Predicated region
        $region53: #{glow_base_forward_pallas.1} parent=31 // pred_check
          %p2781 = pneg %p161
        $region54: #{glow_base_forward_pallas.1} parent=31 // pred_check_branch
          %2783 = sbr.rel (%p2781) target = $region56
        $region55: #{glow_base_forward_pallas.1} parent=31 // pred_region
          %s2784 = smul.u32 2, %s27
          %s2785 = ssub.s32 3, %s2784
          %p2786 = scmp.lt.s32.totalorder %s2785, 2
          %s2787 = scalar_select %p2786, %s2785, 2
          %p2788 = scmp.ne.s32.totalorder 0, %s2787
          %s2789 = scalar_lea.vmem %s4, %s2784
          // Predicated region
          $region57: #{glow_base_forward_pallas.1} parent=55 // pred_check
            %p2790 = pneg %p2788
          $region58: #{glow_base_forward_pallas.1} parent=55 // pred_check_branch
            %2792 = sbr.rel (%p2790) target = $region60
          $region59: #{glow_base_forward_pallas.1} parent=55 // pred_region
            %p2793 = scmp.lt.u32.totalorder %s2787, 8
            %p2794 = pneg %p2793
            // Predicated region
            $region61: #{glow_base_forward_pallas.1} parent=59 // pred_check
              _
            $region62: #{glow_base_forward_pallas.1} parent=59 // pred_check_branch
              %2796 = sbr.rel (%p2793) target = $region64
            $region63: #{glow_base_forward_pallas.1} parent=59 // pred_region
              %s2812 = sand.u32 %s2787, 7
              %p2813 = scmp.eq.s32.totalorder %s2812, 0
              // Predicated region
              $region76: #{glow_base_forward_pallas.1} parent=63 // pred_check
                %p2814 = pneg %p2813
              $region77: #{glow_base_forward_pallas.1} parent=63 // pred_check_branch
                %2816 = sbr.rel (%p2814) target = $region79
              $region78: #{glow_base_forward_pallas.1} parent=63 // pred_region
                %s2817 = sshrl.u32 %s2787, 3
                %s2818 = sshrl.u32 %s2817, 5
                // While loop
                $region80: #{glow_base_forward_pallas.1} parent=78 // loop_pre_header
                  _
                $region81: #{glow_base_forward_pallas.1} parent=78 // loop_header
                  %s2820 = sphi 0, %s2822
                  %p2821 = scmp.ge.s32.totalorder %s2820, %s2818
                  %s2825 = sphi 0, %s2894
                  %s2826 = sphi %s2752, %s2897
                  %s2827 = sphi %s2789, %s2898
                $region82: #{glow_base_forward_pallas.1} parent=78 // loop_header_branch
                  %2824 = sbr.rel (%p2821) target = $region86
                $region83: #{glow_base_forward_pallas.1} parent=78 // loop_body
                  %v2828 = vld [vmem:[%s2826] sm:$0xff]
                  %2829 = vst [vmem:[%s2827] sm:$0xff] %v2828
                  %v2830 = vld [vmem:[%s2826 + $0x8] sm:$0xff]
                  %2831 = vst [vmem:[%s2827 + $0x8] sm:$0xff] %v2830
                  %v2832 = vld [vmem:[%s2826 + $0x10] sm:$0xff]
                  %2833 = vst [vmem:[%s2827 + $0x10] sm:$0xff] %v2832
                  %v2834 = vld [vmem:[%s2826 + $0x18] sm:$0xff]
                  %2835 = vst [vmem:[%s2827 + $0x18] sm:$0xff] %v2834
                  %v2836 = vld [vmem:[%s2826 + $0x20] sm:$0xff]
                  %2837 = vst [vmem:[%s2827 + $0x20] sm:$0xff] %v2836
                  %v2838 = vld [vmem:[%s2826 + $0x28] sm:$0xff]
                  %2839 = vst [vmem:[%s2827 + $0x28] sm:$0xff] %v2838
                  %v2840 = vld [vmem:[%s2826 + $0x30] sm:$0xff]
                  %2841 = vst [vmem:[%s2827 + $0x30] sm:$0xff] %v2840
                  %v2842 = vld [vmem:[%s2826 + $0x38] sm:$0xff]
                  %2843 = vst [vmem:[%s2827 + $0x38] sm:$0xff] %v2842
                  %v2844 = vld [vmem:[%s2826 + $0x40] sm:$0xff]
                  %2845 = vst [vmem:[%s2827 + $0x40] sm:$0xff] %v2844
                  %v2846 = vld [vmem:[%s2826 + $0x48] sm:$0xff]
                  %2847 = vst [vmem:[%s2827 + $0x48] sm:$0xff] %v2846
                  %v2848 = vld [vmem:[%s2826 + $0x50] sm:$0xff]
                  %2849 = vst [vmem:[%s2827 + $0x50] sm:$0xff] %v2848
                  %v2850 = vld [vmem:[%s2826 + $0x58] sm:$0xff]
                  %2851 = vst [vmem:[%s2827 + $0x58] sm:$0xff] %v2850
                  %v2852 = vld [vmem:[%s2826 + $0x60] sm:$0xff]
                  %2853 = vst [vmem:[%s2827 + $0x60] sm:$0xff] %v2852
                  %v2854 = vld [vmem:[%s2826 + $0x68] sm:$0xff]
                  %2855 = vst [vmem:[%s2827 + $0x68] sm:$0xff] %v2854
                  %v2856 = vld [vmem:[%s2826 + $0x70] sm:$0xff]
                  %2857 = vst [vmem:[%s2827 + $0x70] sm:$0xff] %v2856
                  %v2858 = vld [vmem:[%s2826 + $0x78] sm:$0xff]
                  %2859 = vst [vmem:[%s2827 + $0x78] sm:$0xff] %v2858
                  %v2860 = vld [vmem:[%s2826 + $0x80] sm:$0xff]
                  %2861 = vst [vmem:[%s2827 + $0x80] sm:$0xff] %v2860
                  %v2862 = vld [vmem:[%s2826 + $0x88] sm:$0xff]
                  %2863 = vst [vmem:[%s2827 + $0x88] sm:$0xff] %v2862
                  %v2864 = vld [vmem:[%s2826 + $0x90] sm:$0xff]
                  %2865 = vst [vmem:[%s2827 + $0x90] sm:$0xff] %v2864
                  %v2866 = vld [vmem:[%s2826 + $0x98] sm:$0xff]
                  %2867 = vst [vmem:[%s2827 + $0x98] sm:$0xff] %v2866
                  %v2868 = vld [vmem:[%s2826 + $0xa0] sm:$0xff]
                  %2869 = vst [vmem:[%s2827 + $0xa0] sm:$0xff] %v2868
                  %v2870 = vld [vmem:[%s2826 + $0xa8] sm:$0xff]
                  %2871 = vst [vmem:[%s2827 + $0xa8] sm:$0xff] %v2870
                  %v2872 = vld [vmem:[%s2826 + $0xb0] sm:$0xff]
                  %2873 = vst [vmem:[%s2827 + $0xb0] sm:$0xff] %v2872
                  %v2874 = vld [vmem:[%s2826 + $0xb8] sm:$0xff]
                  %2875 = vst [vmem:[%s2827 + $0xb8] sm:$0xff] %v2874
                  %v2876 = vld [vmem:[%s2826 + $0xc0] sm:$0xff]
                  %2877 = vst [vmem:[%s2827 + $0xc0] sm:$0xff] %v2876
                  %v2878 = vld [vmem:[%s2826 + $0xc8] sm:$0xff]
                  %2879 = vst [vmem:[%s2827 + $0xc8] sm:$0xff] %v2878
                  %v2880 = vld [vmem:[%s2826 + $0xd0] sm:$0xff]
                  %2881 = vst [vmem:[%s2827 + $0xd0] sm:$0xff] %v2880
                  %v2882 = vld [vmem:[%s2826 + $0xd8] sm:$0xff]
                  %2883 = vst [vmem:[%s2827 + $0xd8] sm:$0xff] %v2882
                  %v2884 = vld [vmem:[%s2826 + $0xe0] sm:$0xff]
                  %2885 = vst [vmem:[%s2827 + $0xe0] sm:$0xff] %v2884
                  %v2886 = vld [vmem:[%s2826 + $0xe8] sm:$0xff]
                  %2887 = vst [vmem:[%s2827 + $0xe8] sm:$0xff] %v2886
                  %v2888 = vld [vmem:[%s2826 + $0xf0] sm:$0xff]
                  %2889 = vst [vmem:[%s2827 + $0xf0] sm:$0xff] %v2888
                  %v2890 = vld [vmem:[%s2826 + $0xf8] sm:$0xff]
                  %2891 = vst [vmem:[%s2827 + $0xf8] sm:$0xff] %v2890
                  %s2892 = sadd.s32 1, %s2825
                  %p2893 = scmp.ge.s32.totalorder %s2892, %s2818
                  %s2894 = scalar_select %p2893, 0, %s2892
                  %s2895 = smul.u32 %s2894, 256
                  %s2896 = smul.u32 %s2894, 256
                  %s2897 = scalar_lea.vmem %s2752, %s2895 [#allocation9]
                  %s2898 = scalar_lea.vmem %s2789, %s2896
                $region84: #{glow_base_forward_pallas.1} parent=78 // loop_footer
                  %s2822 = sadd.s32 %s2820, 1
                $region85: #{glow_base_forward_pallas.1} parent=78 // loop_footer_branch
                  %2819 = sbr.rel target = $region81
                $region86: #{glow_base_forward_pallas.1} parent=78 // loop_exit
                  _
                %s2899 = sshrl.u32 %s2817, 5
                %s2900 = sand.u32 %s2817, 31
                %s2901 = smul.u32 %s2899, 32
                %s2902 = smul.u32 8, %s2901
                %s2903 = scalar_lea.vmem %s2752, %s2902 [#allocation9]
                %s2904 = smul.u32 8, %s2901
                %s2905 = scalar_lea.vmem %s2789, %s2904
                // While loop
                $region87: #{glow_base_forward_pallas.1} parent=78 // loop_pre_header
                  _
                $region88: #{glow_base_forward_pallas.1} parent=78 // loop_header
                  %s2907 = sphi 0, %s2909
                  %p2908 = scmp.ge.s32.totalorder %s2907, %s2900
                  %s2912 = sphi 0, %s2919
                  %s2913 = sphi %s2903, %s2922
                  %s2914 = sphi %s2905, %s2923
                $region89: #{glow_base_forward_pallas.1} parent=78 // loop_header_branch
                  %2911 = sbr.rel (%p2908) target = $region93
                $region90: #{glow_base_forward_pallas.1} parent=78 // loop_body
                  %v2915 = vld [vmem:[%s2913] sm:$0xff]
                  %2916 = vst [vmem:[%s2914] sm:$0xff] %v2915
                  %s2917 = sadd.s32 1, %s2912
                  %p2918 = scmp.ge.s32.totalorder %s2917, %s2900
                  %s2919 = scalar_select %p2918, 0, %s2917
                  %s2920 = smul.u32 %s2919, 8
                  %s2921 = smul.u32 %s2919, 8
                  %s2922 = scalar_lea.vmem %s2903, %s2920 [#allocation9]
                  %s2923 = scalar_lea.vmem %s2905, %s2921
                $region91: #{glow_base_forward_pallas.1} parent=78 // loop_footer
                  %s2909 = sadd.s32 %s2907, 1
                $region92: #{glow_base_forward_pallas.1} parent=78 // loop_footer_branch
                  %2906 = sbr.rel target = $region88
                $region93: #{glow_base_forward_pallas.1} parent=78 // loop_exit
                  _
              $region79: #{glow_base_forward_pallas.1} parent=63 // pred_fallthru
                _
              %p2924 = pneg %p2813
              // Predicated region
              $region94: #{glow_base_forward_pallas.1} parent=63 // pred_check
                _
              $region95: #{glow_base_forward_pallas.1} parent=63 // pred_check_branch
                %2926 = sbr.rel (%p2813) target = $region97
              $region96: #{glow_base_forward_pallas.1} parent=63 // pred_region
                %s2927 = sand.u32 %s2787, 7
                %s2928 = ssub.s32 %s2787, %s2927
                %s2929 = scalar_lea.vmem %s2752, %s2928 [#allocation9]
                %s2930 = ssub.s32 %s2787, %s2927
                %s2931 = scalar_lea.vmem %s2789, %s2930
                %s2932 = sshrl.u32 %s2787, 3
                %s2933 = sshrl.u32 %s2932, 5
                // While loop
                $region98: #{glow_base_forward_pallas.1} parent=96 // loop_pre_header
                  _
                $region99: #{glow_base_forward_pallas.1} parent=96 // loop_header
                  %s2935 = sphi 0, %s2937
                  %p2936 = scmp.ge.s32.totalorder %s2935, %s2933
                  %s2940 = sphi 0, %s3009
                  %s2941 = sphi %s2752, %s3012
                  %s2942 = sphi %s2789, %s3013
                $region100: #{glow_base_forward_pallas.1} parent=96 // loop_header_branch
                  %2939 = sbr.rel (%p2936) target = $region104
                $region101: #{glow_base_forward_pallas.1} parent=96 // loop_body
                  %v2943 = vld [vmem:[%s2941] sm:$0xff]
                  %2944 = vst [vmem:[%s2942] sm:$0xff] %v2943
                  %v2945 = vld [vmem:[%s2941 + $0x8] sm:$0xff]
                  %2946 = vst [vmem:[%s2942 + $0x8] sm:$0xff] %v2945
                  %v2947 = vld [vmem:[%s2941 + $0x10] sm:$0xff]
                  %2948 = vst [vmem:[%s2942 + $0x10] sm:$0xff] %v2947
                  %v2949 = vld [vmem:[%s2941 + $0x18] sm:$0xff]
                  %2950 = vst [vmem:[%s2942 + $0x18] sm:$0xff] %v2949
                  %v2951 = vld [vmem:[%s2941 + $0x20] sm:$0xff]
                  %2952 = vst [vmem:[%s2942 + $0x20] sm:$0xff] %v2951
                  %v2953 = vld [vmem:[%s2941 + $0x28] sm:$0xff]
                  %2954 = vst [vmem:[%s2942 + $0x28] sm:$0xff] %v2953
                  %v2955 = vld [vmem:[%s2941 + $0x30] sm:$0xff]
                  %2956 = vst [vmem:[%s2942 + $0x30] sm:$0xff] %v2955
                  %v2957 = vld [vmem:[%s2941 + $0x38] sm:$0xff]
                  %2958 = vst [vmem:[%s2942 + $0x38] sm:$0xff] %v2957
                  %v2959 = vld [vmem:[%s2941 + $0x40] sm:$0xff]
                  %2960 = vst [vmem:[%s2942 + $0x40] sm:$0xff] %v2959
                  %v2961 = vld [vmem:[%s2941 + $0x48] sm:$0xff]
                  %2962 = vst [vmem:[%s2942 + $0x48] sm:$0xff] %v2961
                  %v2963 = vld [vmem:[%s2941 + $0x50] sm:$0xff]
                  %2964 = vst [vmem:[%s2942 + $0x50] sm:$0xff] %v2963
                  %v2965 = vld [vmem:[%s2941 + $0x58] sm:$0xff]
                  %2966 = vst [vmem:[%s2942 + $0x58] sm:$0xff] %v2965
                  %v2967 = vld [vmem:[%s2941 + $0x60] sm:$0xff]
                  %2968 = vst [vmem:[%s2942 + $0x60] sm:$0xff] %v2967
                  %v2969 = vld [vmem:[%s2941 + $0x68] sm:$0xff]
                  %2970 = vst [vmem:[%s2942 + $0x68] sm:$0xff] %v2969
                  %v2971 = vld [vmem:[%s2941 + $0x70] sm:$0xff]
                  %2972 = vst [vmem:[%s2942 + $0x70] sm:$0xff] %v2971
                  %v2973 = vld [vmem:[%s2941 + $0x78] sm:$0xff]
                  %2974 = vst [vmem:[%s2942 + $0x78] sm:$0xff] %v2973
                  %v2975 = vld [vmem:[%s2941 + $0x80] sm:$0xff]
                  %2976 = vst [vmem:[%s2942 + $0x80] sm:$0xff] %v2975
                  %v2977 = vld [vmem:[%s2941 + $0x88] sm:$0xff]
                  %2978 = vst [vmem:[%s2942 + $0x88] sm:$0xff] %v2977
                  %v2979 = vld [vmem:[%s2941 + $0x90] sm:$0xff]
                  %2980 = vst [vmem:[%s2942 + $0x90] sm:$0xff] %v2979
                  %v2981 = vld [vmem:[%s2941 + $0x98] sm:$0xff]
                  %2982 = vst [vmem:[%s2942 + $0x98] sm:$0xff] %v2981
                  %v2983 = vld [vmem:[%s2941 + $0xa0] sm:$0xff]
                  %2984 = vst [vmem:[%s2942 + $0xa0] sm:$0xff] %v2983
                  %v2985 = vld [vmem:[%s2941 + $0xa8] sm:$0xff]
                  %2986 = vst [vmem:[%s2942 + $0xa8] sm:$0xff] %v2985
                  %v2987 = vld [vmem:[%s2941 + $0xb0] sm:$0xff]
                  %2988 = vst [vmem:[%s2942 + $0xb0] sm:$0xff] %v2987
                  %v2989 = vld [vmem:[%s2941 + $0xb8] sm:$0xff]
                  %2990 = vst [vmem:[%s2942 + $0xb8] sm:$0xff] %v2989
                  %v2991 = vld [vmem:[%s2941 + $0xc0] sm:$0xff]
                  %2992 = vst [vmem:[%s2942 + $0xc0] sm:$0xff] %v2991
                  %v2993 = vld [vmem:[%s2941 + $0xc8] sm:$0xff]
                  %2994 = vst [vmem:[%s2942 + $0xc8] sm:$0xff] %v2993
                  %v2995 = vld [vmem:[%s2941 + $0xd0] sm:$0xff]
                  %2996 = vst [vmem:[%s2942 + $0xd0] sm:$0xff] %v2995
                  %v2997 = vld [vmem:[%s2941 + $0xd8] sm:$0xff]
                  %2998 = vst [vmem:[%s2942 + $0xd8] sm:$0xff] %v2997
                  %v2999 = vld [vmem:[%s2941 + $0xe0] sm:$0xff]
                  %3000 = vst [vmem:[%s2942 + $0xe0] sm:$0xff] %v2999
                  %v3001 = vld [vmem:[%s2941 + $0xe8] sm:$0xff]
                  %3002 = vst [vmem:[%s2942 + $0xe8] sm:$0xff] %v3001
                  %v3003 = vld [vmem:[%s2941 + $0xf0] sm:$0xff]
                  %3004 = vst [vmem:[%s2942 + $0xf0] sm:$0xff] %v3003
                  %v3005 = vld [vmem:[%s2941 + $0xf8] sm:$0xff]
                  %3006 = vst [vmem:[%s2942 + $0xf8] sm:$0xff] %v3005
                  %s3007 = sadd.s32 1, %s2940
                  %p3008 = scmp.ge.s32.totalorder %s3007, %s2933
                  %s3009 = scalar_select %p3008, 0, %s3007
                  %s3010 = smul.u32 %s3009, 256
                  %s3011 = smul.u32 %s3009, 256
                  %s3012 = scalar_lea.vmem %s2752, %s3010 [#allocation9]
                  %s3013 = scalar_lea.vmem %s2789, %s3011
                $region102: #{glow_base_forward_pallas.1} parent=96 // loop_footer
                  %s2937 = sadd.s32 %s2935, 1
                $region103: #{glow_base_forward_pallas.1} parent=96 // loop_footer_branch
                  %2934 = sbr.rel target = $region99
                $region104: #{glow_base_forward_pallas.1} parent=96 // loop_exit
                  _
                %s3014 = sshrl.u32 %s2932, 5
                %s3015 = sand.u32 %s2932, 31
                %s3016 = smul.u32 %s3014, 32
                %s3017 = smul.u32 8, %s3016
                %s3018 = scalar_lea.vmem %s2752, %s3017 [#allocation9]
                %s3019 = smul.u32 8, %s3016
                %s3020 = scalar_lea.vmem %s2789, %s3019
                // While loop
                $region105: #{glow_base_forward_pallas.1} parent=96 // loop_pre_header
                  _
                $region106: #{glow_base_forward_pallas.1} parent=96 // loop_header
                  %s3022 = sphi 0, %s3024
                  %p3023 = scmp.ge.s32.totalorder %s3022, %s3015
                  %s3027 = sphi 0, %s3034
                  %s3028 = sphi %s3018, %s3037
                  %s3029 = sphi %s3020, %s3038
                $region107: #{glow_base_forward_pallas.1} parent=96 // loop_header_branch
                  %3026 = sbr.rel (%p3023) target = $region111
                $region108: #{glow_base_forward_pallas.1} parent=96 // loop_body
                  %v3030 = vld [vmem:[%s3028] sm:$0xff]
                  %3031 = vst [vmem:[%s3029] sm:$0xff] %v3030
                  %s3032 = sadd.s32 1, %s3027
                  %p3033 = scmp.ge.s32.totalorder %s3032, %s3015
                  %s3034 = scalar_select %p3033, 0, %s3032
                  %s3035 = smul.u32 %s3034, 8
                  %s3036 = smul.u32 %s3034, 8
                  %s3037 = scalar_lea.vmem %s3018, %s3035 [#allocation9]
                  %s3038 = scalar_lea.vmem %s3020, %s3036
                $region109: #{glow_base_forward_pallas.1} parent=96 // loop_footer
                  %s3024 = sadd.s32 %s3022, 1
                $region110: #{glow_base_forward_pallas.1} parent=96 // loop_footer_branch
                  %3021 = sbr.rel target = $region106
                $region111: #{glow_base_forward_pallas.1} parent=96 // loop_exit
                  _
                %s3039 = sshll.u32 1, %s2927
                %s3040 = ssub.s32 %s3039, 1
                loop: start=0, step=1, limit=1
                $region112: #{glow_base_forward_pallas.1} parent=96 // loop_pre_header
                  _
                $region113: #{glow_base_forward_pallas.1} parent=96 // loop_header
                  %s3042 = sphi 0, %s3046
                  %p3043 = scmp.ge.s32.totalorder %s3042, 1
                  %s3047 = sphi %s2929, %s2929
                  %s3048 = sphi %s2931, %s2931
                $region114: #{glow_base_forward_pallas.1} parent=96 // loop_header_branch
                  %3045 = sbr.rel (%p3043) target = $region118
                $region115: #{glow_base_forward_pallas.1} parent=96 // loop_body
                  %v3049 = vld [vmem:[%s3047] sm:%s3040]
                  %3050 = vst [vmem:[%s3048] sm:%s3040] %v3049
                $region116: #{glow_base_forward_pallas.1} parent=96 // loop_footer
                  %s3046 = sadd.s32 1, %s3042
                $region117: #{glow_base_forward_pallas.1} parent=96 // loop_footer_branch
                  %3041 = sbr.rel target = $region113
                $region118: #{glow_base_forward_pallas.1} parent=96 // loop_exit
                  _
              $region97: #{glow_base_forward_pallas.1} parent=63 // pred_fallthru
                _
            $region64: #{glow_base_forward_pallas.1} parent=59 // pred_fallthru
              _
            // Predicated region
            $region65: #{glow_base_forward_pallas.1} parent=59 // pred_check
              %p2797 = pneg %p2793
            $region66: #{glow_base_forward_pallas.1} parent=59 // pred_check_branch
              %2799 = sbr.rel (%p2797) target = $region68
            $region67: #{glow_base_forward_pallas.1} parent=59 // pred_region
              %s2800 = sshll.u32 1, %s2787
              %s2801 = ssub.s32 %s2800, 1
              loop: start=0, step=1, limit=1
              $region69: #{glow_base_forward_pallas.1} parent=67 // loop_pre_header
                _
              $region70: #{glow_base_forward_pallas.1} parent=67 // loop_header
                %s2803 = sphi 0, %s2807
                %p2804 = scmp.ge.s32.totalorder %s2803, 1
                %s2808 = sphi %s2752, %s2752
                %s2809 = sphi %s2789, %s2789
              $region71: #{glow_base_forward_pallas.1} parent=67 // loop_header_branch
                %2806 = sbr.rel (%p2804) target = $region75
              $region72: #{glow_base_forward_pallas.1} parent=67 // loop_body
                %v2810 = vld [vmem:[%s2808] sm:%s2801]
                %2811 = vst [vmem:[%s2809] sm:%s2801] %v2810
              $region73: #{glow_base_forward_pallas.1} parent=67 // loop_footer
                %s2807 = sadd.s32 1, %s2803
              $region74: #{glow_base_forward_pallas.1} parent=67 // loop_footer_branch
                %2802 = sbr.rel target = $region70
              $region75: #{glow_base_forward_pallas.1} parent=67 // loop_exit
                _
            $region68: #{glow_base_forward_pallas.1} parent=59 // pred_fallthru
              _
          $region60: #{glow_base_forward_pallas.1} parent=55 // pred_fallthru
            _
          %3051 = vnop
        $region56: #{glow_base_forward_pallas.1} parent=31 // pred_fallthru
          _
      $region32: #{glow_base_forward_pallas.1} parent=5 // pred_fallthru
        _
      %p3052 = scmp.le.s32.totalorder 2, %s18
      // Predicated region
      $region119: #{glow_base_forward_pallas.1} parent=5 // pred_check
        %p3053 = pneg %p3052
      $region120: #{glow_base_forward_pallas.1} parent=5 // pred_check_branch
        %3055 = sbr.rel (%p3053) target = $region122
      $region121: #{glow_base_forward_pallas.1} parent=5 // pred_region
        %s3056 = ssub.s32 %s18, 2
        // Predicated region
        $region123: #{glow_base_forward_pallas.1} parent=121 // pred_check
          %p3057 = pneg %p141
        $region124: #{glow_base_forward_pallas.1} parent=121 // pred_check_branch
          %3059 = sbr.rel (%p3057) target = $region126
        $region125: #{glow_base_forward_pallas.1} parent=121 // pred_region
          %s3060 = sand.u32 %s126, 1
          %s3061 = scalar_lea.sflag [#allocation4], %s3060
          %s3062 = sand.u32 %s126, 1
          %s3063 = smul.addr %s3062, 2048
          %s3064 = scalar_lea.vmem [#allocation8], %s3063
          %3066 = dma.done %s3061, 32768
        $region126: #{glow_base_forward_pallas.1} parent=121 // pred_fallthru
          _
        // Predicated region
        $region127: #{glow_base_forward_pallas.1} parent=121 // pred_check
          %p3067 = pneg %p167
        $region128: #{glow_base_forward_pallas.1} parent=121 // pred_check_branch
          %3069 = sbr.rel (%p3067) target = $region130
        $region129: #{glow_base_forward_pallas.1} parent=121 // pred_region
          %s3070 = sand.u32 %s152, 1
          %s3071 = sand.u32 %s152, 1
          %s3072 = smul.addr %s3071, 2
          %s3073 = scalar_lea.vmem [#allocation9], %s3072
        $region130: #{glow_base_forward_pallas.1} parent=121 // pred_fallthru
          _
      $region122: #{glow_base_forward_pallas.1} parent=5 // pred_fallthru
        _
    $region6: #{glow_base_forward_pallas.1} parent=1 // loop_footer
      %s22 = sadd.s32 1, %s18
    $region7: #{glow_base_forward_pallas.1} parent=1 // loop_footer_branch
      %17 = sbr.rel target = $region3
    $region8: #{glow_base_forward_pallas.1} parent=1 // loop_exit
      _
    %3074 = vsyncpa [#allocation3], 1
    %s3075 = scalar_lea.sflag [#allocation3], 1
    %3076 = vsyncpa %s3075, 1
    %3077 = vsyncpa [#allocation6], 1
    %3078 = vsyncpa [#allocation4], 1
    %s3079 = scalar_lea.sflag [#allocation4], 1
    %3080 = vsyncpa %s3079, 1

</llo_original>
